<compile_context>
chip_gen: v7x
topology: tpu7x:2x2x1
jax: 0.10.0
libtpu: 0.0.40
codegen_flags: <defaults>
</compile_context>

<pallas_src>
import functools

import jax
import jax.numpy as jnp
import numpy as np
from jax.experimental import pallas as pl
from jax.experimental.pallas import tpu as pltpu


def _spec_kernel(cur_ref, nxt_ref, basis_ref, out_ref, *, r, tile, sub, f, fp):
    """cur_ref  : (tile, hop) bf16 -- hop-chunks [i*tile, (i+1)*tile) of one batch elem.
       nxt_ref  : (ov, hop)   bf16 -- first `ov` chunks past the tile (frame overlap).
       basis_ref: (2*fp, n_fft) bf16 -- stacked [win*cos ; -win*sin], halves padded to fp rows.
       out_ref  : (f, tile)   f32  -- magnitude tile, frames on the lane axis."""
    tile_rows = cur_ref.shape[0]

    def rows(start, size):
        # Static sublane slice of chunk rows [start, start+size), spanning cur|nxt.
        if start + size <= tile_rows:
            return cur_ref[start:start + size, :]
        head = cur_ref[start:tile_rows, :]
        tail = nxt_ref[0:start + size - tile_rows, :]
        return jnp.concatenate([head, tail], axis=0)

    basis = basis_ref[...]                                   # (2*fp, n_fft) bf16
    for s in range(tile // sub):                             # static sub-tile loop
        base = s * sub
        # One frame = r consecutive hop-chunks; build (sub, n_fft) bf16 once and run a
        # single K=n_fft MXU contraction (internal accumulation, no split-K partials).
        frame = jnp.concatenate([rows(base + j, sub) for j in range(r)], axis=1)
        prod = jnp.einsum('fk,tk->ft', basis, frame,
                          preferred_element_type=jnp.float32)   # (2*fp, sub) f32
        re = prod[:fp, :]                                       # sublane-aligned halves
        im = prod[fp:, :]
        mag = jnp.sqrt(re * re + im * im + 1e-6)
        out_ref[:, base:base + sub] = mag[:f, :]


class LinearSpectrogram:
    """JAX/Pallas port of the PyTorch LinearSpectrogram module (mode='pow2_sqrt')."""

    def __init__(self, n_fft=2048, win_length=2048, hop_length=512, center=False,
                 mode="pow2_sqrt", frames_per_tile=512, sub_tile=256):
        assert n_fft == win_length, "port assumes win_length == n_fft (module default)"
        assert center is False and mode == "pow2_sqrt"
        assert n_fft % hop_length == 0, "kernel assumes hop_length divides n_fft"
        assert hop_length % 128 == 0, "hop chunks must be lane-dense"
        assert frames_per_tile % sub_tile == 0 and sub_tile % 128 == 0
        # TODO(synk): center=True / win_length != n_fft paths are not ported.
        self.n_fft = n_fft
        self.win_length = win_length
        self.hop_length = hop_length
        self.n_freqs = n_fft // 2 + 1
        self.n_freqs_pad = ((self.n_freqs + 7) // 8) * 8     # aligned re/im halves
        self.frames_per_tile = frames_per_tile
        self.sub_tile = sub_tile

        # Periodic Hann window (torch.hann_window default) folded into a single
        # stacked real-DFT basis [win*cos ; -win*sin] of shape (2*Fp, n_fft).
        # Built in float64 with the angle reduced mod n_fft (exact), one rounding
        # to bf16 so the MXU runs at full bf16 rate.
        F, Fp = self.n_freqs, self.n_freqs_pad
        n = np.arange(win_length, dtype=np.float64)
        window = 0.5 * (1.0 - np.cos(2.0 * np.pi * n / win_length))
        kn = (np.arange(F, dtype=np.int64)[:, None]
              * np.arange(n_fft, dtype=np.int64)[None, :]) % n_fft
        ang = 2.0 * np.pi * kn.astype(np.float64) / float(n_fft)
        basis = np.zeros((2 * Fp, n_fft), dtype=np.float32)
        basis[:F] = window[None, :] * np.cos(ang)
        basis[Fp:Fp + F] = -window[None, :] * np.sin(ang)
        self.basis = jnp.asarray(basis, dtype=jnp.bfloat16)

    def __call__(self, y):
        # y: (B, T) or (B, 1, T)
        if y.ndim == 3:
            y = jnp.squeeze(y, axis=1)
        y = y.astype(jnp.float32)
        pad_l = (self.win_length - self.hop_length) // 2
        pad_r = (self.win_length - self.hop_length + 1) // 2
        y = jnp.pad(y, ((0, 0), (pad_l, pad_r)), mode="reflect")

        B, L = y.shape
        hop, n_fft = self.hop_length, self.n_fft
        F, Fp = self.n_freqs, self.n_freqs_pad
        r = n_fft // hop
        n_frames = (L - n_fft) // hop + 1

        tile, sub = self.frames_per_tile, self.sub_tile
        n_tiles = pl.cdiv(n_frames, tile)
        n_frames_pad = n_tiles * tile

        # Overlap block: the last frame of a tile extends r-1 chunks past the tile.
        ov = 8
        while ov < r - 1:
            ov *= 2
        assert tile % ov == 0, "frames_per_tile must be divisible by the overlap block"

        n_chunks_pad = n_frames_pad + ov
        L_need = n_chunks_pad * hop
        if L_need >= L:
            y = jnp.pad(y, ((0, 0), (0, L_need - L)))
        else:
            y = y[:, :L_need]
        # bf16 chunks: halves input HBM traffic and feeds the MXU directly.
        chunks = y.reshape(B, n_chunks_pad, hop).astype(jnp.bfloat16)

        kernel = functools.partial(_spec_kernel, r=r, tile=tile, sub=sub, f=F, fp=Fp)

        out_bytes = B * F * n_frames_pad * 4
        cost = pl.CostEstimate(
            flops=int(2 * (2 * Fp) * n_fft * n_frames_pad * B),
            transcendentals=int(B * F * n_frames_pad),
            bytes_accessed=int(chunks.size * 2 + self.basis.size * 2 + out_bytes))

        # Explicit scoped-VMEM budget: 1x bf16 basis (Buffered(1)) + 2x chunk blocks
        # + 2x output blocks + per-sub-tile frame/product intermediates, with headroom.
        # Capped at 56 MiB so it also fits v7x's 64 MiB per-TensorCore VMEM.
        vmem_need = (self.basis.size * 2
                     + 2 * tile * hop * 2 + 2 * ov * hop * 2
                     + 2 * F * tile * 4
                     + sub * n_fft * 2 + 2 * (2 * Fp) * sub * 4)
        vmem_limit = int(min(max(int(vmem_need * 1.5) + (4 << 20), 16 << 20), 56 << 20))

        tpb = tile // ov     # overlap-block index stride per tile

        out = pl.pallas_call(
            kernel,
            out_shape=jax.ShapeDtypeStruct((B, F, n_frames_pad), jnp.float32),
            grid=(B, n_tiles),
            in_specs=[
                # Chunk tile owned by this grid step: O(tile) VMEM, not O(audio).
                pl.BlockSpec((None, tile, hop), lambda b, i: (b, i, 0)),
                # Small overlap block just past the tile (last frames spill into it).
                pl.BlockSpec((None, ov, hop), lambda b, i: (b, (i + 1) * tpb, 0)),
                # Constant stacked basis: single-buffered, it never changes.
                pl.BlockSpec((2 * Fp, n_fft), lambda b, i: (0, 0),
                             pipeline_mode=pl.Buffered(buffer_count=1)),
            ],
            out_specs=pl.BlockSpec((None, F, tile), lambda b, i: (b, 0, i)),
            compiler_params=pltpu.CompilerParams(
                dimension_semantics=("parallel", "parallel"),
                vmem_limit_bytes=vmem_limit),
            cost_estimate=cost,
        )(chunks, chunks, self.basis)

        return out[:, :, :n_frames]       # no-op when n_frames is tile-aligned


def _reference(y, model):
    """Pure-jnp f32 reference (same math via rfft) for verification."""
    if y.ndim == 3:
        y = jnp.squeeze(y, axis=1)
    y = y.astype(jnp.float32)
    pad_l = (model.win_length - model.hop_length) // 2
    pad_r = (model.win_length - model.hop_length + 1) // 2
    y = jnp.pad(y, ((0, 0), (pad_l, pad_r)), mode="reflect")
    B, L = y.shape
    n_frames = (L - model.n_fft) // model.hop_length + 1
    idx = (jnp.arange(n_frames)[:, None] * model.hop_length
           + jnp.arange(model.n_fft)[None, :])
    frames = y[:, idx]                                       # (B, T, n_fft)
    n = jnp.arange(model.win_length, dtype=jnp.float32)
    window = 0.5 * (1.0 - jnp.cos(2.0 * jnp.pi * n / model.win_length))
    spec = jnp.fft.rfft(frames * window[None, None, :], n=model.n_fft, axis=-1)
    mag = jnp.sqrt(jnp.real(spec) ** 2 + jnp.imag(spec) ** 2 + 1e-6)
    return jnp.transpose(mag, (0, 2, 1))                     # (B, F, n_frames)


if __name__ == "__main__":
    key = jax.random.PRNGKey(0)
    # Scaled-down STFT keeping the module's n_fft/hop ratio of 4 (defaults 2048/512).
    # ~3 s of mono audio -> 1024 frames -> grid (B=2, n_tiles=2), which exercises the
    # tile-boundary / overlap-block path on every tile.
    B, T = 2, 131072
    n_fft, win, hop = 512, 512, 128
    y = jax.random.normal(key, (B, 1, T), dtype=jnp.float32)

    model = LinearSpectrogram(n_fft=n_fft, win_length=win, hop_length=hop,
                              center=False, mode="pow2_sqrt")
    out = jax.block_until_ready(jax.jit(model.__call__)(y))   # (2, 257, 1024)

    ref = _reference(y, model)
    assert out.shape == ref.shape, (out.shape, ref.shape)
    out_np = np.asarray(out, dtype=np.float32)
    ref_np = np.asarray(ref, dtype=np.float32)
    # bf16 MXU operands -> accuracy at bf16 level (tolerance loosened per perf review;
    # the f32 multi-pass MXU path was the dominant cost of the previous version).
    scaled = np.max(np.abs(out_np - ref_np)) / np.max(np.abs(ref_np))
    assert scaled < 1e-2, f"scaled max error too large: {scaled}"
    np.testing.assert_allclose(out_np, ref_np, rtol=5e-2, atol=3e-1)
    print("KERNEL_OK")
</pallas_src>

<mosaic_0001>
module attributes {stable_mosaic.version = 11 : i64} {
  func.func @_spec_kernel(%arg0: i32, %arg1: i32, %arg2: memref<1x512x128xbf16, #tpu.memory_space<vmem>>, %arg3: memref<1x8x128xbf16, #tpu.memory_space<vmem>>, %arg4: memref<528x512xbf16, #tpu.memory_space<vmem>>, %arg5: memref<1x257x512xf32, #tpu.memory_space<vmem>>) attributes {dimension_semantics = [#tpu.dimension_semantics<parallel>, #tpu.dimension_semantics<parallel>], iteration_bounds = array<i64: 2, 2>, scalar_prefetch = 0 : i64, scratch_operands = 0 : i64, tpu.core_type = #tpu.core_type<tc>, window_params = [{transform_indices = @transform_0, window_bounds = array<i64: 1, 512, 128>}, {transform_indices = @transform_1, window_bounds = array<i64: 1, 8, 128>}, {pipeline_mode = #tpu.pipeline_mode<synchronous>, transform_indices = @transform_2, window_bounds = array<i64: 528, 512>}, {transform_indices = @transform_3, window_bounds = array<i64: 1, 257, 512>}]} {
    %c0 = arith.constant 0 : index
    %c0_0 = arith.constant 0 : index
    %0 = vector.load %arg4[%c0, %c0_0] : memref<528x512xbf16, #tpu.memory_space<vmem>>, vector<528x512xbf16>
    %c0_1 = arith.constant 0 : index
    %c0_2 = arith.constant 0 : index
    %c0_3 = arith.constant 0 : index
    %1 = vector.load %arg2[%c0_1, %c0_2, %c0_3] : memref<1x512x128xbf16, #tpu.memory_space<vmem>>, vector<1x256x128xbf16>
    %2 = vector.shape_cast %1 : vector<1x256x128xbf16> to vector<256x128xbf16>
    %c0_4 = arith.constant 0 : index
    %c1 = arith.constant 1 : index
    %c0_5 = arith.constant 0 : index
    %3 = vector.load %arg2[%c0_4, %c1, %c0_5] : memref<1x512x128xbf16, #tpu.memory_space<vmem>>, vector<1x256x128xbf16>
    %4 = vector.shape_cast %3 : vector<1x256x128xbf16> to vector<256x128xbf16>
    %c0_6 = arith.constant 0 : index
    %c2 = arith.constant 2 : index
    %c0_7 = arith.constant 0 : index
    %5 = vector.load %arg2[%c0_6, %c2, %c0_7] : memref<1x512x128xbf16, #tpu.memory_space<vmem>>, vector<1x256x128xbf16>
    %6 = vector.shape_cast %5 : vector<1x256x128xbf16> to vector<256x128xbf16>
    %c0_8 = arith.constant 0 : index
    %c3 = arith.constant 3 : index
    %c0_9 = arith.constant 0 : index
    %7 = vector.load %arg2[%c0_8, %c3, %c0_9] : memref<1x512x128xbf16, #tpu.memory_space<vmem>>, vector<1x256x128xbf16>
    %8 = vector.shape_cast %7 : vector<1x256x128xbf16> to vector<256x128xbf16>
    %9 = tpu.concatenate %2, %4, %6, %8 in 1 : vector<256x128xbf16>, vector<256x128xbf16>, vector<256x128xbf16>, vector<256x128xbf16> -> vector<256x512xbf16>
    "tpu.trace_start"() <{level = 10 : i32, message = "fk,tk->ft"}> : () -> ()
    %cst = arith.constant dense<0.000000e+00> : vector<528x256xf32>
    %10 = tpu.matmul %0, %9, %cst {dimension_numbers = #tpu.dot_dimension_numbers<[1], [1], [0], [0], [0, 0, 1, 0], [], []>} : vector<528x512xbf16>, vector<256x512xbf16>, vector<528x256xf32> -> vector<528x256xf32>
    "tpu.trace_stop"() : () -> ()
    %11 = vector.extract_strided_slice %10 {offsets = [0, 0], sizes = [264, 256], strides = [1, 1]} : vector<528x256xf32> to vector<264x256xf32>
    %12 = vector.extract_strided_slice %10 {offsets = [264, 0], sizes = [264, 256], strides = [1, 1]} : vector<528x256xf32> to vector<264x256xf32>
    %13 = arith.mulf %11, %11 : vector<264x256xf32>
    %14 = arith.mulf %12, %12 : vector<264x256xf32>
    %15 = arith.addf %13, %14 : vector<264x256xf32>
    %cst_10 = arith.constant 9.99999997E-7 : f32
    %16 = vector.broadcast %cst_10 : f32 to vector<264x256xf32>
    %17 = arith.addf %15, %16 : vector<264x256xf32>
    %18 = math.sqrt %17 : vector<264x256xf32>
    %19 = vector.extract_strided_slice %18 {offsets = [0, 0], sizes = [257, 256], strides = [1, 1]} : vector<264x256xf32> to vector<257x256xf32>
    %c0_11 = arith.constant 0 : index
    %c0_12 = arith.constant 0 : index
    %c0_13 = arith.constant 0 : index
    %20 = vector.load %arg5[%c0_11, %c0_12, %c0_13] : memref<1x257x512xf32, #tpu.memory_space<vmem>>, vector<1x257x256xf32>
    %21 = vector.shape_cast %20 : vector<1x257x256xf32> to vector<257x256xf32>
    %22 = vector.shape_cast %19 : vector<257x256xf32> to vector<1x257x256xf32>
    tpu.vector_store %arg5[%c0_11, %c0_12, %c0_13], %22 {strides = array<i32>} : memref<1x257x512xf32, #tpu.memory_space<vmem>>, vector<1x257x256xf32>,
    %c0_14 = arith.constant 0 : index
    %c256 = arith.constant 256 : index
    %c0_15 = arith.constant 0 : index
    %23 = vector.load %arg2[%c0_14, %c256, %c0_15] : memref<1x512x128xbf16, #tpu.memory_space<vmem>>, vector<1x256x128xbf16>
    %24 = vector.shape_cast %23 : vector<1x256x128xbf16> to vector<256x128xbf16>
    %c0_16 = arith.constant 0 : index
    %c257 = arith.constant 257 : index
    %c0_17 = arith.constant 0 : index
    %25 = vector.load %arg2[%c0_16, %c257, %c0_17] : memref<1x512x128xbf16, #tpu.memory_space<vmem>>, vector<1x255x128xbf16>
    %26 = vector.shape_cast %25 : vector<1x255x128xbf16> to vector<255x128xbf16>
    %c0_18 = arith.constant 0 : index
    %c0_19 = arith.constant 0 : index
    %c0_20 = arith.constant 0 : index
    %27 = vector.load %arg3[%c0_18, %c0_19, %c0_20] : memref<1x8x128xbf16, #tpu.memory_space<vmem>>, vector<1x1x128xbf16>
    %28 = vector.shape_cast %27 : vector<1x1x128xbf16> to vector<1x128xbf16>
    %29 = tpu.concatenate %26, %28 in 0 : vector<255x128xbf16>, vector<1x128xbf16> -> vector<256x128xbf16>
    %c0_21 = arith.constant 0 : index
    %c258 = arith.constant 258 : index
    %c0_22 = arith.constant 0 : index
    %30 = vector.load %arg2[%c0_21, %c258, %c0_22] : memref<1x512x128xbf16, #tpu.memory_space<vmem>>, vector<1x254x128xbf16>
    %31 = vector.shape_cast %30 : vector<1x254x128xbf16> to vector<254x128xbf16>
    %c0_23 = arith.constant 0 : index
    %c0_24 = arith.constant 0 : index
    %c0_25 = arith.constant 0 : index
    %32 = vector.load %arg3[%c0_23, %c0_24, %c0_25] : memref<1x8x128xbf16, #tpu.memory_space<vmem>>, vector<1x2x128xbf16>
    %33 = vector.shape_cast %32 : vector<1x2x128xbf16> to vector<2x128xbf16>
    %34 = tpu.concatenate %31, %33 in 0 : vector<254x128xbf16>, vector<2x128xbf16> -> vector<256x128xbf16>
    %c0_26 = arith.constant 0 : index
    %c259 = arith.constant 259 : index
    %c0_27 = arith.constant 0 : index
    %35 = vector.load %arg2[%c0_26, %c259, %c0_27] : memref<1x512x128xbf16, #tpu.memory_space<vmem>>, vector<1x253x128xbf16>
    %36 = vector.shape_cast %35 : vector<1x253x128xbf16> to vector<253x128xbf16>
    %c0_28 = arith.constant 0 : index
    %c0_29 = arith.constant 0 : index
    %c0_30 = arith.constant 0 : index
    %37 = vector.load %arg3[%c0_28, %c0_29, %c0_30] : memref<1x8x128xbf16, #tpu.memory_space<vmem>>, vector<1x3x128xbf16>
    %38 = vector.shape_cast %37 : vector<1x3x128xbf16> to vector<3x128xbf16>
    %39 = tpu.concatenate %36, %38 in 0 : vector<253x128xbf16>, vector<3x128xbf16> -> vector<256x128xbf16>
    %40 = tpu.concatenate %24, %29, %34, %39 in 1 : vector<256x128xbf16>, vector<256x128xbf16>, vector<256x128xbf16>, vector<256x128xbf16> -> vector<256x512xbf16>
    "tpu.trace_start"() <{level = 10 : i32, message = "fk,tk->ft"}> : () -> ()
    %cst_31 = arith.constant dense<0.000000e+00> : vector<528x256xf32>
    %41 = tpu.matmul %0, %40, %cst_31 {dimension_numbers = #tpu.dot_dimension_numbers<[1], [1], [0], [0], [0, 0, 1, 0], [], []>} : vector<528x512xbf16>, vector<256x512xbf16>, vector<528x256xf32> -> vector<528x256xf32>
    "tpu.trace_stop"() : () -> ()
    %42 = vector.extract_strided_slice %41 {offsets = [0, 0], sizes = [264, 256], strides = [1, 1]} : vector<528x256xf32> to vector<264x256xf32>
    %43 = vector.extract_strided_slice %41 {offsets = [264, 0], sizes = [264, 256], strides = [1, 1]} : vector<528x256xf32> to vector<264x256xf32>
    %44 = arith.mulf %42, %42 : vector<264x256xf32>
    %45 = arith.mulf %43, %43 : vector<264x256xf32>
    %46 = arith.addf %44, %45 : vector<264x256xf32>
    %cst_32 = arith.constant 9.99999997E-7 : f32
    %47 = vector.broadcast %cst_32 : f32 to vector<264x256xf32>
    %48 = arith.addf %46, %47 : vector<264x256xf32>
    %49 = math.sqrt %48 : vector<264x256xf32>
    %50 = vector.extract_strided_slice %49 {offsets = [0, 0], sizes = [257, 256], strides = [1, 1]} : vector<264x256xf32> to vector<257x256xf32>
    %c0_33 = arith.constant 0 : index
    %c0_34 = arith.constant 0 : index
    %c256_35 = arith.constant 256 : index
    %51 = vector.load %arg5[%c0_33, %c0_34, %c256_35] : memref<1x257x512xf32, #tpu.memory_space<vmem>>, vector<1x257x256xf32>
    %52 = vector.shape_cast %51 : vector<1x257x256xf32> to vector<257x256xf32>
    %53 = vector.shape_cast %50 : vector<257x256xf32> to vector<1x257x256xf32>
    tpu.vector_store %arg5[%c0_33, %c0_34, %c256_35], %53 {strides = array<i32>} : memref<1x257x512xf32, #tpu.memory_space<vmem>>, vector<1x257x256xf32>,
    return
  }
  func.func @transform_0(%arg0: i32, %arg1: i32) -> (i32, i32, i32) {
    %c0_i32 = arith.constant 0 : i32
    %c0_i32_0 = arith.constant 0 : i32
    return %arg0, %arg1, %c0_i32 : i32, i32, i32
  }
  func.func @transform_1(%arg0: i32, %arg1: i32) -> (i32, i32, i32) {
    %c1_i32 = arith.constant 1 : i32
    %0 = arith.addi %arg1, %c1_i32 : i32
    %c64_i32 = arith.constant 64 : i32
    %1 = arith.muli %0, %c64_i32 : i32
    %c0_i32 = arith.constant 0 : i32
    %c0_i32_0 = arith.constant 0 : i32
    return %arg0, %1, %c0_i32 : i32, i32, i32
  }
  func.func @transform_2(%arg0: i32, %arg1: i32) -> (i32, i32) {
    %c0_i32 = arith.constant 0 : i32
    %c0_i32_0 = arith.constant 0 : i32
    %c0_i32_1 = arith.constant 0 : i32
    return %c0_i32, %c0_i32_0 : i32, i32
  }
  func.func @transform_3(%arg0: i32, %arg1: i32) -> (i32, i32, i32) {
    %c0_i32 = arith.constant 0 : i32
    %c0_i32_0 = arith.constant 0 : i32
    return %arg0, %c0_i32, %arg1 : i32, i32, i32
  }
}

</mosaic_0001>

<llo_original>
// kernel: reverse.1
$region0: #{reverse.1}
  %s0 = inlined_call_operand.vmem [shape: bf16[2,256], index: 0, kind: input, shape index: {}]
  %s1 = inlined_call_operand.vmem [shape: bf16[2,256], index: 1, kind: output, shape index: {}]
  %v2 = vlaneseq
  %v3 = vsub.s32 127, %v2
  %4 = vset.pattern.permute.xlu0 %v3
  $region1: #{reverse.1} parent=0
    #allocation0 [shape = 'u8[4096]{0}', space=vmem, size = 0x1000, scoped, tag = 'operand span for operand 0']
    #allocation1 [shape = 'u8[1024]{0}', space=vmem, size = 0x400, scoped, tag = 'packed  for operand 0']
    #allocation2 [shape = 'u8[4096]{0}', space=vmem, size = 0x1000, scoped, tag = 'operand span for operand 1']
    #allocation3 [shape = 'u8[1024]{0}', space=vmem, size = 0x400, scoped, tag = 'packed  for operand 1']
    loop: start=0, step=1, limit=4
    $region2: #{reverse.1} parent=1 // loop_pre_header
      _
    $region3: #{reverse.1} parent=1 // loop_header
      %s6 = sphi 0, %s10
      %p7 = scmp.ge.s32.totalorder %s6, 4
      %s13 = sphi 0, %s25
      %s14 = sphi 0, %s21
      %s15 = sphi 0, %s13
      %s16 = sphi 0, %s14
      %s17 = sphi 0, %s15
      %s18 = sphi 0, %s16
    $region4: #{reverse.1} parent=1 // loop_header_branch
      %9 = sbr.rel (%p7) target = $region8
    $region5: #{reverse.1} parent=1 // loop_body
      %s11 = ssub.s32 %s6, 1
      %s12 = ssub.s32 %s6, 2
      %s19 = sadd.s32 1, %s14
      %p20 = scmp.ge.s32.totalorder %s19, 2
      %s21 = scalar_select %p20, 0, %s19
      %s22 = sadd.s32 1, %s13
      %s23 = scalar_select %p20, %s22, %s13
      %p24 = scmp.ge.s32.totalorder %s23, 1
      %s25 = scalar_select %p24, 0, %s23
      %p26 = scmp.le.s32.totalorder 1, %s6
      %p27 = scmp.lt.s32.totalorder %s6, 3
      %p28 = pnand %p26, %p27
      %p29 = pneg %p28
      // Predicated region
      $region9: #{reverse.1} parent=5 // pred_check
        _
      $region10: #{reverse.1} parent=5 // pred_check_branch
        %31 = sbr.rel (%p28) target = $region12
      $region11: #{reverse.1} parent=5 // pred_region
        %s32 = ssub.s32 %s6, 1
      $region12: #{reverse.1} parent=5 // pred_fallthru
        _
      %p33 = scmp.lt.s32.totalorder %s6, 2
      // Predicated region
      $region13: #{reverse.1} parent=5 // pred_check
        %p34 = pneg %p33
      $region14: #{reverse.1} parent=5 // pred_check_branch
        %36 = sbr.rel (%p34) target = $region16
      $region15: #{reverse.1} parent=5 // pred_region
        %s37 = sand.u32 %s6, 1
        %s38 = sand.u32 %s6, 1
        %s39 = scalar_lea.vmem [#allocation1], %s38
        %s40 = ssub.s32 1, %s14
        %s41 = smul.addr %s13, 2
        %s42 = sadd.s32 %s40, %s41
        %s43 = scalar_lea.vmem %s0, %s42
        // Predicated region
        $region17: #{reverse.1} parent=15 // pred_check
          _
        $region18: #{reverse.1} parent=15 // pred_check_branch
          %45 = sbr.rel (0) target = $region20
        $region19: #{reverse.1} parent=15 // pred_region
          // Predicated region
          $region21: #{reverse.1} parent=19 // pred_check
            _
          $region22: #{reverse.1} parent=19 // pred_check_branch
            %47 = sbr.rel target = $region24
          $region23: #{reverse.1} parent=19 // pred_region
            // Predicated region
            $region36: #{reverse.1} parent=23 // pred_check
              _
            $region37: #{reverse.1} parent=23 // pred_check_branch
              %62 = sbr.rel (0) target = $region39
            $region38: #{reverse.1} parent=23 // pred_region
              loop: start=0, step=1, limit=1
              $region40: #{reverse.1} parent=38 // loop_pre_header
                _
              $region41: #{reverse.1} parent=38 // loop_header
                %s65 = sphi 0, %s69
                %p66 = scmp.ge.s32.totalorder %s65, 1
                %s70 = sphi %s43, %s43
                %s71 = sphi %s39, %s39
              $region42: #{reverse.1} parent=38 // loop_header_branch
                %68 = sbr.rel (%p66) target = $region46
              $region43: #{reverse.1} parent=38 // loop_body
                %v72 = vld [vmem:[%s70] sm:$0x1]
                %73 = vst [vmem:[%s71] sm:$0x1] %v72
              $region44: #{reverse.1} parent=38 // loop_footer
                %s69 = sadd.s32 1, %s65
              $region45: #{reverse.1} parent=38 // loop_footer_branch
                %64 = sbr.rel target = $region41
              $region46: #{reverse.1} parent=38 // loop_exit
                _
            $region39: #{reverse.1} parent=23 // pred_fallthru
              _
          $region24: #{reverse.1} parent=19 // pred_fallthru
            _
          // Predicated region
          $region25: #{reverse.1} parent=19 // pred_check
            _
          $region26: #{reverse.1} parent=19 // pred_check_branch
            %49 = sbr.rel (0) target = $region28
          $region27: #{reverse.1} parent=19 // pred_region
            loop: start=0, step=1, limit=1
            $region29: #{reverse.1} parent=27 // loop_pre_header
              _
            $region30: #{reverse.1} parent=27 // loop_header
              %s52 = sphi 0, %s56
              %p53 = scmp.ge.s32.totalorder %s52, 1
              %s57 = sphi %s43, %s43
              %s58 = sphi %s39, %s39
            $region31: #{reverse.1} parent=27 // loop_header_branch
              %55 = sbr.rel (%p53) target = $region35
            $region32: #{reverse.1} parent=27 // loop_body
              %v59 = vld [vmem:[%s57] sm:$0x1]
              %60 = vst [vmem:[%s58] sm:$0x1] %v59
            $region33: #{reverse.1} parent=27 // loop_footer
              %s56 = sadd.s32 1, %s52
            $region34: #{reverse.1} parent=27 // loop_footer_branch
              %51 = sbr.rel target = $region30
            $region35: #{reverse.1} parent=27 // loop_exit
              _
          $region28: #{reverse.1} parent=19 // pred_fallthru
            _
        $region20: #{reverse.1} parent=15 // pred_fallthru
          _
        %74 = vnop
      $region16: #{reverse.1} parent=5 // pred_fallthru
        _
      %p75 = scmp.le.s32.totalorder 1, %s6
      %p76 = scmp.lt.s32.totalorder %s6, 3
      %p77 = pnand %p75, %p76
      %p78 = pneg %p77
      // Predicated region
      $region47: #{reverse.1} parent=5 // pred_check
        _
      $region48: #{reverse.1} parent=5 // pred_check_branch
        %80 = sbr.rel (%p77) target = $region50
      $region49: #{reverse.1} parent=5 // pred_region
        %s81 = ssub.s32 %s6, 1
        %s82 = sand.u32 %s11, 1
        %s83 = sand.u32 %s11, 1
        %s84 = scalar_lea.vmem [#allocation1], %s83
        %s85 = sand.u32 %s11, 1
        %s86 = sand.u32 %s11, 1
        %s87 = scalar_lea.vmem [#allocation1], %s86
        %s88 = sand.u32 %s11, 1
        %s89 = sand.u32 %s11, 1
        %s90 = scalar_lea.vmem [#allocation3], %s89
        %s92 = smul.u32 1, 2
        %s93 = sshllo.u32 0, %s92
        %s94 = sshrl.u32 %s93, 1
        %s95 = sor.u32 %s93, %s94
        %s96 = sand.u32 %s95, 85
        %s97 = sshrl.u32 %s96, 1
        %s98 = sor.u32 %s96, %s97
        %s99 = sand.u32 51, %s98
        %s100 = sshrl.u32 %s99, 2
        %s101 = sor.u32 %s99, %s100
        %s102 = sand.u32 15, %s101
        %v103 = vld [vmem:[%s87] sm:%s102]
        %v104 = vunpack.c.l.bf16 %v103
        %v105 = vunpack.c.h.bf16 %v103
        %106 = vst [vmem:[#allocation0] sm:%s93] %v104
        %s107 = ssub.s32 1, %s16
        %v108 = vld [vmem:[#allocation0] sm:$0xff]
        %109 = vperm.xlu0 %4, %v108
        %v110 = vpop.permute.xlu0 %109
        %111 = vst [vmem:[#allocation2] sm:$0xff] %v110
        %s113 = smul.u32 1, 2
        %s114 = sshllo.u32 0, %s113
        %s115 = sshrl.u32 %s113, 1
        %v116 = vld [vmem:[#allocation2] sm:%s114]
        %v117 = vpack.c.bf16 0.0, %v116
        %s118 = sshllo.u32 0, %s115
        %119 = vst [vmem:[%s90] sm:%s118] %v117
        %s120 = sand.u32 %s11, 1
        %s121 = sand.u32 %s11, 1
        %s122 = scalar_lea.vmem [#allocation3], %s121
        %s123 = smul.addr %s15, 2
        %s124 = sadd.s32 %s16, %s123
        %s125 = scalar_lea.vmem %s1, %s124
        // Predicated region
        $region51: #{reverse.1} parent=49 // pred_check
          _
        $region52: #{reverse.1} parent=49 // pred_check_branch
          %127 = sbr.rel (0) target = $region54
        $region53: #{reverse.1} parent=49 // pred_region
          // Predicated region
          $region55: #{reverse.1} parent=53 // pred_check
            _
          $region56: #{reverse.1} parent=53 // pred_check_branch
            %129 = sbr.rel target = $region58
          $region57: #{reverse.1} parent=53 // pred_region
            // Predicated region
            $region70: #{reverse.1} parent=57 // pred_check
              _
            $region71: #{reverse.1} parent=57 // pred_check_branch
              %144 = sbr.rel (0) target = $region73
            $region72: #{reverse.1} parent=57 // pred_region
              loop: start=0, step=1, limit=1
              $region74: #{reverse.1} parent=72 // loop_pre_header
                _
              $region75: #{reverse.1} parent=72 // loop_header
                %s147 = sphi 0, %s151
                %p148 = scmp.ge.s32.totalorder %s147, 1
                %s152 = sphi %s122, %s122
                %s153 = sphi %s125, %s125
              $region76: #{reverse.1} parent=72 // loop_header_branch
                %150 = sbr.rel (%p148) target = $region80
              $region77: #{reverse.1} parent=72 // loop_body
                %v154 = vld [vmem:[%s152] sm:$0x1]
                %155 = vst [vmem:[%s153] sm:$0x1] %v154
              $region78: #{reverse.1} parent=72 // loop_footer
                %s151 = sadd.s32 1, %s147
              $region79: #{reverse.1} parent=72 // loop_footer_branch
                %146 = sbr.rel target = $region75
              $region80: #{reverse.1} parent=72 // loop_exit
                _
            $region73: #{reverse.1} parent=57 // pred_fallthru
              _
          $region58: #{reverse.1} parent=53 // pred_fallthru
            _
          // Predicated region
          $region59: #{reverse.1} parent=53 // pred_check
            _
          $region60: #{reverse.1} parent=53 // pred_check_branch
            %131 = sbr.rel (0) target = $region62
          $region61: #{reverse.1} parent=53 // pred_region
            loop: start=0, step=1, limit=1
            $region63: #{reverse.1} parent=61 // loop_pre_header
              _
            $region64: #{reverse.1} parent=61 // loop_header
              %s134 = sphi 0, %s138
              %p135 = scmp.ge.s32.totalorder %s134, 1
              %s139 = sphi %s122, %s122
              %s140 = sphi %s125, %s125
            $region65: #{reverse.1} parent=61 // loop_header_branch
              %137 = sbr.rel (%p135) target = $region69
            $region66: #{reverse.1} parent=61 // loop_body
              %v141 = vld [vmem:[%s139] sm:$0x1]
              %142 = vst [vmem:[%s140] sm:$0x1] %v141
            $region67: #{reverse.1} parent=61 // loop_footer
              %s138 = sadd.s32 1, %s134
            $region68: #{reverse.1} parent=61 // loop_footer_branch
              %133 = sbr.rel target = $region64
            $region69: #{reverse.1} parent=61 // loop_exit
              _
          $region62: #{reverse.1} parent=53 // pred_fallthru
            _
        $region54: #{reverse.1} parent=49 // pred_fallthru
          _
        %156 = vnop
      $region50: #{reverse.1} parent=5 // pred_fallthru
        _
      %p157 = scmp.le.s32.totalorder 2, %s6
      // Predicated region
      $region81: #{reverse.1} parent=5 // pred_check
        %p158 = pneg %p157
      $region82: #{reverse.1} parent=5 // pred_check_branch
        %160 = sbr.rel (%p158) target = $region84
      $region83: #{reverse.1} parent=5 // pred_region
        %s161 = ssub.s32 %s6, 2
        %s162 = sand.u32 %s12, 1
        %s163 = sand.u32 %s12, 1
        %s164 = scalar_lea.vmem [#allocation3], %s163
      $region84: #{reverse.1} parent=5 // pred_fallthru
        _
    $region6: #{reverse.1} parent=1 // loop_footer
      %s10 = sadd.s32 1, %s6
    $region7: #{reverse.1} parent=1 // loop_footer_branch
      %5 = sbr.rel target = $region3
    $region8: #{reverse.1} parent=1 // loop_exit
      _

// kernel: custom-call
$region0: #{custom-call}
  %s0 = inlined_call_operand.vmem [shape: bf16[2,131456], index: 0, kind: output, shape index: {}]

// kernel: a_call__.1
$region0: #{a_call__.1}
  #allocation0 [shape = 'u32[]', space=smem, size = 0x4, offset = 0x4, fixed_abs, tag = 'smem constant byte address 0x4 - core index']
  #allocation1 [shape = 'u32[144,128]{1,0:T(1,128)}', space=vmem, size = 0x12000, scoped, tag = 'internal scratch']
  %s0 = inlined_call_operand.vmem [shape: bf16[2,1032,128], index: 0, kind: input, shape index: {}, may-alias: {0,1}]
  %s1 = inlined_call_operand.vmem [shape: bf16[2,1032,128], index: 1, kind: input, shape index: {}, may-alias: {0,1}]
  %s2 = inlined_call_operand.vmem [shape: bf16[528,512], index: 2, kind: input, shape index: {}]
  %s3 = inlined_call_operand.vmem [shape: f32[2,257,1024], index: 3, kind: output, shape index: {}]
  %s4 = sld [smem:[#allocation0]]
  $region64: #{a_call__.1} parent=0
    _
  %s6 = ssub.s32 1, %s4
  %s7 = scalar_select 0, %s6, %s4
  $region1: #{a_call__.1} parent=0
    #allocation2 [shape = 'u8[1081344]{0}', space=vmem, size = 0x108000, scoped, tag = 'output window, operand 0']
    loop: start=0, step=1, limit=6
    $region2: #{a_call__.1} parent=1 // loop_pre_header
      _
    $region3: #{a_call__.1} parent=1 // loop_header
      %s9 = sphi 0, %s13
      %p10 = scmp.ge.s32.totalorder %s9, 6
      %s16 = sphi 0, %s28
      %s17 = sphi 0, %s24
      %s18 = sphi 0, %s16
      %s19 = sphi 0, %s17
      %s20 = sphi 0, %s18
      %s21 = sphi 0, %s19
      %s33 = sphi 0, %s35
      %s36 = sphi 0, %s33
      %s37 = sphi 0, %s36
      %s53 = sphi 0, %s37
      %s65 = sphi 0, %s67
      %s68 = sphi 0, %s65
      %s69 = sphi 0, %s68
      %s85 = sphi 0, %s69
      %s89 = sphi 0, %s89
      %s91 = sphi 0, %s89
      %s92 = sphi 0, %s91
      %s106 = sphi 0, %s92
      %s114 = sphi 0, %s116
      %s117 = sphi 0, %s114
      %s118 = sphi 0, %s117
      %s134 = sphi 0, %s118
    $region4: #{a_call__.1} parent=1 // loop_header_branch
      %12 = sbr.rel (%p10) target = $region8
    $region5: #{a_call__.1} parent=1 // loop_body
      %s14 = ssub.s32 %s9, 1
      %s15 = ssub.s32 %s9, 2
      %s22 = sadd.s32 1, %s17
      %p23 = scmp.ge.s32.totalorder %s22, 2
      %s24 = scalar_select %p23, 0, %s22
      %s25 = sadd.s32 1, %s16
      %s26 = scalar_select %p23, %s25, %s16
      %p27 = scmp.ge.s32.totalorder %s26, 2
      %s28 = scalar_select %p27, 0, %s26
      %s29 = ssub.s32 %s16, %s28
      %s30 = ssub.s32 %s17, %s24
      %s31 = sor.u32 %s29, %s30
      %p32 = scmp.eq.s32.totalorder %s31, 0
      %s34 = sadd.s32 %s33, 1
      %s35 = scalar_select %p32, %s33, %s34
      %p38 = pneg %p32
      %p39 = scmp.eq.s32.totalorder %s9, 3
      %p40 = por %p38, %p39
      %p41 = scmp.ne.s32.totalorder %s33, %s36
      %p42 = scmp.eq.s32.totalorder %s9, 0
      %p43 = por %p41, %p42
      %p44 = scmp.ne.s32.totalorder %s33, %s36
      %p45 = scmp.eq.s32.totalorder %s14, 3
      %p46 = por %p44, %p45
      %p47 = scmp.ne.s32.totalorder %s36, %s37
      %p48 = scmp.eq.s32.totalorder %s14, 0
      %p49 = por %p47, %p48
      %p50 = scmp.ne.s32.totalorder %s36, %s37
      %p51 = scmp.eq.s32.totalorder %s15, 3
      %p52 = por %p50, %p51
      %p54 = scmp.ne.s32.totalorder %s37, %s53
      %p55 = scmp.eq.s32.totalorder %s15, 0
      %p56 = por %p54, %p55
      %s57 = sadd.s32 %s17, 1
      %s58 = smul.u32 %s57, 64
      %s59 = sadd.s32 %s24, 1
      %s60 = smul.u32 %s59, 64
      %s61 = ssub.s32 %s16, %s28
      %s62 = ssub.s32 %s58, %s60
      %s63 = sor.u32 %s61, %s62
      %p64 = scmp.eq.s32.totalorder %s63, 0
      %s66 = sadd.s32 %s65, 1
      %s67 = scalar_select %p64, %s65, %s66
      %p70 = pneg %p64
      %p71 = scmp.eq.s32.totalorder %s9, 3
      %p72 = por %p70, %p71
      %p73 = scmp.ne.s32.totalorder %s65, %s68
      %p74 = scmp.eq.s32.totalorder %s9, 0
      %p75 = por %p73, %p74
      %p76 = scmp.ne.s32.totalorder %s65, %s68
      %p77 = scmp.eq.s32.totalorder %s14, 3
      %p78 = por %p76, %p77
      %p79 = scmp.ne.s32.totalorder %s68, %s69
      %p80 = scmp.eq.s32.totalorder %s14, 0
      %p81 = por %p79, %p80
      %p82 = scmp.ne.s32.totalorder %s68, %s69
      %p83 = scmp.eq.s32.totalorder %s15, 3
      %p84 = por %p82, %p83
      %p86 = scmp.ne.s32.totalorder %s69, %s85
      %p87 = scmp.eq.s32.totalorder %s15, 0
      %p88 = por %p86, %p87
      %s90 = sadd.s32 %s89, 1
      %p93 = scmp.eq.s32.totalorder %s9, 3
      %p94 = scmp.ne.s32.totalorder %s89, %s91
      %p95 = scmp.eq.s32.totalorder %s9, 0
      %p96 = por %p94, %p95
      %p97 = scmp.ne.s32.totalorder %s89, %s91
      %p98 = scmp.eq.s32.totalorder %s14, 3
      %p99 = por %p97, %p98
      %p100 = scmp.ne.s32.totalorder %s91, %s92
      %p101 = scmp.eq.s32.totalorder %s14, 0
      %p102 = por %p100, %p101
      %p103 = scmp.ne.s32.totalorder %s91, %s92
      %p104 = scmp.eq.s32.totalorder %s15, 3
      %p105 = por %p103, %p104
      %p107 = scmp.ne.s32.totalorder %s92, %s106
      %p108 = scmp.eq.s32.totalorder %s15, 0
      %p109 = por %p107, %p108
      %s110 = ssub.s32 %s16, %s28
      %s111 = ssub.s32 %s17, %s24
      %s112 = sor.u32 %s110, %s111
      %p113 = scmp.eq.s32.totalorder %s112, 0
      %s115 = sadd.s32 %s114, 1
      %s116 = scalar_select %p113, %s114, %s115
      %p119 = pneg %p113
      %p120 = scmp.eq.s32.totalorder %s9, 3
      %p121 = por %p119, %p120
      %p122 = scmp.ne.s32.totalorder %s114, %s117
      %p123 = scmp.eq.s32.totalorder %s9, 0
      %p124 = por %p122, %p123
      %p125 = scmp.ne.s32.totalorder %s114, %s117
      %p126 = scmp.eq.s32.totalorder %s14, 3
      %p127 = por %p125, %p126
      %p128 = scmp.ne.s32.totalorder %s117, %s118
      %p129 = scmp.eq.s32.totalorder %s14, 0
      %p130 = por %p128, %p129
      %p131 = scmp.ne.s32.totalorder %s117, %s118
      %p132 = scmp.eq.s32.totalorder %s15, 3
      %p133 = por %p131, %p132
      %p135 = scmp.ne.s32.totalorder %s118, %s134
      %p136 = scmp.eq.s32.totalorder %s15, 0
      %p137 = por %p135, %p136
      %p138 = scmp.le.s32.totalorder 1, %s9
      %p139 = scmp.lt.s32.totalorder %s9, 5
      %p140 = pnand %p138, %p139
      %p141 = pneg %p140
      // Predicated region
      $region9: #{a_call__.1} parent=5 // pred_check
        _
      $region10: #{a_call__.1} parent=5 // pred_check_branch
        %143 = sbr.rel (%p140) target = $region12
      $region11: #{a_call__.1} parent=5 // pred_region
        %s144 = ssub.s32 %s9, 1
        // Predicated region
        $region13: #{a_call__.1} parent=11 // pred_check
          %p145 = pneg %p102
        $region14: #{a_call__.1} parent=11 // pred_check_branch
          %147 = sbr.rel (%p145) target = $region16
        $region15: #{a_call__.1} parent=11 // pred_region
          _
        $region16: #{a_call__.1} parent=11 // pred_fallthru
          _
      $region12: #{a_call__.1} parent=5 // pred_fallthru
        _
      %p148 = scmp.lt.s32.totalorder %s9, 4
      // Predicated region
      $region17: #{a_call__.1} parent=5 // pred_check
        %p149 = pneg %p148
      $region18: #{a_call__.1} parent=5 // pred_check_branch
        %151 = sbr.rel (%p149) target = $region20
      $region19: #{a_call__.1} parent=5 // pred_region
        // Predicated region
        $region21: #{a_call__.1} parent=19 // pred_check
          %p152 = pneg %p43
        $region22: #{a_call__.1} parent=19 // pred_check_branch
          %154 = sbr.rel (%p152) target = $region24
        $region23: #{a_call__.1} parent=19 // pred_region
          %s155 = smul.u32 64, %s17
          %s156 = ssub.s32 129, %s155
          %p157 = scmp.lt.s32.totalorder %s156, 64
          %s158 = scalar_select %p157, %s156, 64
          %s159 = smul.u32 64, %s158
          %p160 = scmp.lt.s32.totalorder %s16, 1
          %s161 = scalar_select %p160, %s16, 1
          %p162 = scmp.lt.s32.totalorder %s155, 128
          %s163 = scalar_select %p162, %s155, 128
          %s164 = smul.addr %s161, 129
          %s165 = sadd.s32 %s163, %s164
          %s166 = smul.addr %s165, 4
          %s167 = scalar_lea.vmem %s0, %s166
          %s168 = smul.u32 64, %s17
          %s169 = ssub.s32 129, %s168
          %p170 = scmp.lt.s32.totalorder %s169, 64
          %s171 = scalar_select %p170, %s169, 64
          %s172 = smul.u32 64, %s171
        $region24: #{a_call__.1} parent=19 // pred_fallthru
          _
        // Predicated region
        $region25: #{a_call__.1} parent=19 // pred_check
          %p173 = pneg %p75
        $region26: #{a_call__.1} parent=19 // pred_check_branch
          %175 = sbr.rel (%p173) target = $region28
        $region27: #{a_call__.1} parent=19 // pred_region
          %s176 = sadd.s32 %s17, 1
          %s177 = smul.u32 %s176, 64
          %p178 = scmp.lt.s32.totalorder %s16, 1
          %s179 = scalar_select %p178, %s16, 1
          %p180 = scmp.lt.s32.totalorder %s177, 128
          %s181 = scalar_select %p180, %s177, 128
          %s182 = smul.addr %s179, 129
          %s183 = sadd.s32 %s181, %s182
          %s184 = smul.addr %s183, 4
          %s185 = scalar_lea.vmem %s1, %s184
          %s186 = sadd.s32 %s17, 1
          %s187 = smul.u32 %s186, 64
        $region28: #{a_call__.1} parent=19 // pred_fallthru
          _
      $region20: #{a_call__.1} parent=5 // pred_fallthru
        _
      %p188 = scmp.le.s32.totalorder 1, %s9
      %p189 = scmp.lt.s32.totalorder %s9, 5
      %p190 = pnand %p188, %p189
      %p191 = pneg %p190
      // Predicated region
      $region29: #{a_call__.1} parent=5 // pred_check
        _
      $region30: #{a_call__.1} parent=5 // pred_check_branch
        %193 = sbr.rel (%p190) target = $region32
      $region31: #{a_call__.1} parent=5 // pred_region
        %s194 = ssub.s32 %s9, 1
        %s195 = smul.u32 64, %s19
        %s196 = ssub.s32 129, %s195
        %p197 = scmp.lt.s32.totalorder %s196, 64
        %s198 = scalar_select %p197, %s196, 64
        %s199 = smul.u32 64, %s198
        %p200 = scmp.lt.s32.totalorder %s18, 1
        %s201 = scalar_select %p200, %s18, 1
        %p202 = scmp.lt.s32.totalorder %s195, 128
        %s203 = scalar_select %p202, %s195, 128
        %s204 = smul.addr %s201, 129
        %s205 = sadd.s32 %s203, %s204
        %s206 = smul.addr %s205, 4
        %s207 = scalar_lea.vmem %s0, %s206
        %p208 = pneg %p49
        %p209 = pneg %p46
        %s210 = sadd.s32 %s19, 1
        %s211 = smul.u32 %s210, 64
        %p212 = scmp.lt.s32.totalorder %s18, 1
        %s213 = scalar_select %p212, %s18, 1
        %p214 = scmp.lt.s32.totalorder %s211, 128
        %s215 = scalar_select %p214, %s211, 128
        %s216 = smul.addr %s213, 129
        %s217 = sadd.s32 %s215, %s216
        %s218 = smul.addr %s217, 4
        %s219 = scalar_lea.vmem %s1, %s218
        %p220 = pneg %p81
        %p221 = pneg %p78
        %p222 = pneg %p102
        %p223 = pneg %p99
        %p224 = pneg %p130
        %p225 = pneg %p127
        %s226 = sand.u32 %s117, 1
        %s227 = sand.u32 %s117, 1
        %s228 = smul.addr %s227, 1056
        %s229 = scalar_lea.vmem [#allocation2], %s228
        %s230 = smul.u32 64, %s19
        %s231 = ssub.s32 129, %s230
        %p232 = scmp.lt.s32.totalorder %s231, 64
        %s233 = scalar_select %p232, %s231, 64
        %s234 = smul.u32 64, %s233
        %p235 = scmp.lt.s32.totalorder %s18, 1
        %s236 = scalar_select %p235, %s18, 1
        %p237 = scmp.lt.s32.totalorder %s230, 128
        %s238 = scalar_select %p237, %s230, 128
        %s239 = smul.addr %s236, 129
        %s240 = sadd.s32 %s238, %s239
        %s241 = smul.addr %s240, 4
        %s242 = scalar_lea.vmem %s0, %s241
        %s243 = smul.u32 64, %s19
        %s244 = ssub.s32 129, %s243
        %p245 = scmp.lt.s32.totalorder %s244, 64
        %s246 = scalar_select %p245, %s244, 64
        %s247 = smul.u32 64, %s246
        %s248 = sadd.s32 %s19, 1
        %s249 = smul.u32 %s248, 64
        %p250 = scmp.lt.s32.totalorder %s18, 1
        %s251 = scalar_select %p250, %s18, 1
        %p252 = scmp.lt.s32.totalorder %s249, 128
        %s253 = scalar_select %p252, %s249, 128
        %s254 = smul.addr %s251, 129
        %s255 = sadd.s32 %s253, %s254
        %s256 = smul.addr %s255, 4
        %s257 = scalar_lea.vmem %s1, %s256
        %s258 = sadd.s32 %s19, 1
        %s259 = smul.u32 %s258, 64
        %s260 = smul.u32 4, %s19
        %v261 = vld [vmem:[%s2] sm:$0xff]
        %v262 = vld [vmem:[%s2 + $0x8] sm:$0xff]
        %v263 = vld [vmem:[%s2 + $0x10] sm:$0xff]
        %v264 = vld [vmem:[%s2 + $0x18] sm:$0xff]
        %v265 = vld [vmem:[%s2 + $0x20] sm:$0xff]
        %v266 = vld [vmem:[%s2 + $0x28] sm:$0xff]
        %v267 = vld [vmem:[%s2 + $0x30] sm:$0xff]
        %v268 = vld [vmem:[%s2 + $0x38] sm:$0xff]
        %v269 = vld [vmem:[%s2 + $0x40] sm:$0xff]
        %v270 = vld [vmem:[%s2 + $0x48] sm:$0xff]
        %v271 = vld [vmem:[%s2 + $0x50] sm:$0xff]
        %v272 = vld [vmem:[%s2 + $0x58] sm:$0xff]
        %v273 = vld [vmem:[%s2 + $0x60] sm:$0xff]
        %v274 = vld [vmem:[%s2 + $0x68] sm:$0xff]
        %v275 = vld [vmem:[%s2 + $0x70] sm:$0xff]
        %v276 = vld [vmem:[%s2 + $0x78] sm:$0xff]
        %v277 = vld [vmem:[%s2 + $0x80] sm:$0xff]
        %v278 = vld [vmem:[%s2 + $0x88] sm:$0xff]
        %v279 = vld [vmem:[%s2 + $0x90] sm:$0xff]
        %v280 = vld [vmem:[%s2 + $0x98] sm:$0xff]
        %v281 = vld [vmem:[%s2 + $0xa0] sm:$0xff]
        %v282 = vld [vmem:[%s2 + $0xa8] sm:$0xff]
        %v283 = vld [vmem:[%s2 + $0xb0] sm:$0xff]
        %v284 = vld [vmem:[%s2 + $0xb8] sm:$0xff]
        %v285 = vld [vmem:[%s2 + $0xc0] sm:$0xff]
        %v286 = vld [vmem:[%s2 + $0xc8] sm:$0xff]
        %v287 = vld [vmem:[%s2 + $0xd0] sm:$0xff]
        %v288 = vld [vmem:[%s2 + $0xd8] sm:$0xff]
        %v289 = vld [vmem:[%s2 + $0xe0] sm:$0xff]
        %v290 = vld [vmem:[%s2 + $0xe8] sm:$0xff]
        %v291 = vld [vmem:[%s2 + $0xf0] sm:$0xff]
        %v292 = vld [vmem:[%s2 + $0xf8] sm:$0xff]
        %v293 = vld [vmem:[%s2 + $0x100] sm:$0xff]
        %v294 = vld [vmem:[%s2 + $0x108] sm:$0xff]
        %v295 = vld [vmem:[%s2 + $0x110] sm:$0xff]
        %v296 = vld [vmem:[%s2 + $0x118] sm:$0xff]
        %v297 = vld [vmem:[%s2 + $0x120] sm:$0xff]
        %v298 = vld [vmem:[%s2 + $0x128] sm:$0xff]
        %v299 = vld [vmem:[%s2 + $0x130] sm:$0xff]
        %v300 = vld [vmem:[%s2 + $0x138] sm:$0xff]
        %v301 = vld [vmem:[%s2 + $0x140] sm:$0xff]
        %v302 = vld [vmem:[%s2 + $0x148] sm:$0xff]
        %v303 = vld [vmem:[%s2 + $0x150] sm:$0xff]
        %v304 = vld [vmem:[%s2 + $0x158] sm:$0xff]
        %v305 = vld [vmem:[%s2 + $0x160] sm:$0xff]
        %v306 = vld [vmem:[%s2 + $0x168] sm:$0xff]
        %v307 = vld [vmem:[%s2 + $0x170] sm:$0xff]
        %v308 = vld [vmem:[%s2 + $0x178] sm:$0xff]
        %v309 = vld [vmem:[%s2 + $0x180] sm:$0xff]
        %v310 = vld [vmem:[%s2 + $0x188] sm:$0xff]
        %v311 = vld [vmem:[%s2 + $0x190] sm:$0xff]
        %v312 = vld [vmem:[%s2 + $0x198] sm:$0xff]
        %v313 = vld [vmem:[%s2 + $0x1a0] sm:$0xff]
        %v314 = vld [vmem:[%s2 + $0x1a8] sm:$0xff]
        %v315 = vld [vmem:[%s2 + $0x1b0] sm:$0xff]
        %v316 = vld [vmem:[%s2 + $0x1b8] sm:$0xff]
        %v317 = vld [vmem:[%s2 + $0x1c0] sm:$0xff]
        %v318 = vld [vmem:[%s2 + $0x1c8] sm:$0xff]
        %v319 = vld [vmem:[%s2 + $0x1d0] sm:$0xff]
        %v320 = vld [vmem:[%s2 + $0x1d8] sm:$0xff]
        %v321 = vld [vmem:[%s2 + $0x1e0] sm:$0xff]
        %v322 = vld [vmem:[%s2 + $0x1e8] sm:$0xff]
        %v323 = vld [vmem:[%s2 + $0x1f0] sm:$0xff]
        %v324 = vld [vmem:[%s2 + $0x1f8] sm:$0xff]
        %v325 = vld [vmem:[%s2 + $0x200] sm:$0xff]
        %v326 = vld [vmem:[%s2 + $0x208] sm:$0xff]
        %v327 = vld [vmem:[%s2 + $0x210] sm:$0xff]
        %v328 = vld [vmem:[%s2 + $0x218] sm:$0xff]
        %v329 = vld [vmem:[%s2 + $0x220] sm:$0xff]
        %v330 = vld [vmem:[%s2 + $0x228] sm:$0xff]
        %v331 = vld [vmem:[%s2 + $0x230] sm:$0xff]
        %v332 = vld [vmem:[%s2 + $0x238] sm:$0xff]
        %v333 = vld [vmem:[%s2 + $0x240] sm:$0xff]
        %v334 = vld [vmem:[%s2 + $0x248] sm:$0xff]
        %v335 = vld [vmem:[%s2 + $0x250] sm:$0xff]
        %v336 = vld [vmem:[%s2 + $0x258] sm:$0xff]
        %v337 = vld [vmem:[%s2 + $0x260] sm:$0xff]
        %v338 = vld [vmem:[%s2 + $0x268] sm:$0xff]
        %v339 = vld [vmem:[%s2 + $0x270] sm:$0xff]
        %v340 = vld [vmem:[%s2 + $0x278] sm:$0xff]
        %v341 = vld [vmem:[%s2 + $0x280] sm:$0xff]
        %v342 = vld [vmem:[%s2 + $0x288] sm:$0xff]
        %v343 = vld [vmem:[%s2 + $0x290] sm:$0xff]
        %v344 = vld [vmem:[%s2 + $0x298] sm:$0xff]
        %v345 = vld [vmem:[%s2 + $0x2a0] sm:$0xff]
        %v346 = vld [vmem:[%s2 + $0x2a8] sm:$0xff]
        %v347 = vld [vmem:[%s2 + $0x2b0] sm:$0xff]
        %v348 = vld [vmem:[%s2 + $0x2b8] sm:$0xff]
        %v349 = vld [vmem:[%s2 + $0x2c0] sm:$0xff]
        %v350 = vld [vmem:[%s2 + $0x2c8] sm:$0xff]
        %v351 = vld [vmem:[%s2 + $0x2d0] sm:$0xff]
        %v352 = vld [vmem:[%s2 + $0x2d8] sm:$0xff]
        %v353 = vld [vmem:[%s2 + $0x2e0] sm:$0xff]
        %v354 = vld [vmem:[%s2 + $0x2e8] sm:$0xff]
        %v355 = vld [vmem:[%s2 + $0x2f0] sm:$0xff]
        %v356 = vld [vmem:[%s2 + $0x2f8] sm:$0xff]
        %v357 = vld [vmem:[%s2 + $0x300] sm:$0xff]
        %v358 = vld [vmem:[%s2 + $0x308] sm:$0xff]
        %v359 = vld [vmem:[%s2 + $0x310] sm:$0xff]
        %v360 = vld [vmem:[%s2 + $0x318] sm:$0xff]
        %v361 = vld [vmem:[%s2 + $0x320] sm:$0xff]
        %v362 = vld [vmem:[%s2 + $0x328] sm:$0xff]
        %v363 = vld [vmem:[%s2 + $0x330] sm:$0xff]
        %v364 = vld [vmem:[%s2 + $0x338] sm:$0xff]
        %v365 = vld [vmem:[%s2 + $0x340] sm:$0xff]
        %v366 = vld [vmem:[%s2 + $0x348] sm:$0xff]
        %v367 = vld [vmem:[%s2 + $0x350] sm:$0xff]
        %v368 = vld [vmem:[%s2 + $0x358] sm:$0xff]
        %v369 = vld [vmem:[%s2 + $0x360] sm:$0xff]
        %v370 = vld [vmem:[%s2 + $0x368] sm:$0xff]
        %v371 = vld [vmem:[%s2 + $0x370] sm:$0xff]
        %v372 = vld [vmem:[%s2 + $0x378] sm:$0xff]
        %v373 = vld [vmem:[%s2 + $0x380] sm:$0xff]
        %v374 = vld [vmem:[%s2 + $0x388] sm:$0xff]
        %v375 = vld [vmem:[%s2 + $0x390] sm:$0xff]
        %v376 = vld [vmem:[%s2 + $0x398] sm:$0xff]
        %v377 = vld [vmem:[%s2 + $0x3a0] sm:$0xff]
        %v378 = vld [vmem:[%s2 + $0x3a8] sm:$0xff]
        %v379 = vld [vmem:[%s2 + $0x3b0] sm:$0xff]
        %v380 = vld [vmem:[%s2 + $0x3b8] sm:$0xff]
        %v381 = vld [vmem:[%s2 + $0x3c0] sm:$0xff]
        %v382 = vld [vmem:[%s2 + $0x3c8] sm:$0xff]
        %v383 = vld [vmem:[%s2 + $0x3d0] sm:$0xff]
        %v384 = vld [vmem:[%s2 + $0x3d8] sm:$0xff]
        %v385 = vld [vmem:[%s2 + $0x3e0] sm:$0xff]
        %v386 = vld [vmem:[%s2 + $0x3e8] sm:$0xff]
        %v387 = vld [vmem:[%s2 + $0x3f0] sm:$0xff]
        %v388 = vld [vmem:[%s2 + $0x3f8] sm:$0xff]
        %v389 = vld [vmem:[%s2 + $0x400] sm:$0xff]
        %v390 = vld [vmem:[%s2 + $0x408] sm:$0xff]
        %v391 = vld [vmem:[%s2 + $0x410] sm:$0xff]
        %v392 = vld [vmem:[%s2 + $0x418] sm:$0xff]
        %v393 = vld [vmem:[%s242] sm:$0xf]
        %v394 = vld [vmem:[%s242 + $0x4] sm:$0xf]
        %v395 = vld [vmem:[%s242 + $0x8] sm:$0xf]
        %v396 = vld [vmem:[%s242 + $0xc] sm:$0xf]
        %v397 = vld [vmem:[%s242 + $0x10] sm:$0xf]
        %v398 = vld [vmem:[%s242 + $0x14] sm:$0xf]
        %v399 = vld [vmem:[%s242 + $0x18] sm:$0xf]
        %v400 = vld [vmem:[%s242 + $0x1c] sm:$0xf]
        %v401 = vld [vmem:[%s242 + $0x20] sm:$0xf]
        %v402 = vld [vmem:[%s242 + $0x24] sm:$0xf]
        %v403 = vld [vmem:[%s242 + $0x28] sm:$0xf]
        %v404 = vld [vmem:[%s242 + $0x2c] sm:$0xf]
        %v405 = vld [vmem:[%s242 + $0x30] sm:$0xf]
        %v406 = vld [vmem:[%s242 + $0x34] sm:$0xf]
        %v407 = vld [vmem:[%s242 + $0x38] sm:$0xf]
        %v408 = vld [vmem:[%s242 + $0x3c] sm:$0xf]
        %v409 = vld [vmem:[%s242 + $0x40] sm:$0xf]
        %v410 = vld [vmem:[%s242 + $0x44] sm:$0xf]
        %v411 = vld [vmem:[%s242 + $0x48] sm:$0xf]
        %v412 = vld [vmem:[%s242 + $0x4c] sm:$0xf]
        %v413 = vld [vmem:[%s242 + $0x50] sm:$0xf]
        %v414 = vld [vmem:[%s242 + $0x54] sm:$0xf]
        %v415 = vld [vmem:[%s242 + $0x58] sm:$0xf]
        %v416 = vld [vmem:[%s242 + $0x5c] sm:$0xf]
        %v417 = vld [vmem:[%s242 + $0x60] sm:$0xf]
        %v418 = vld [vmem:[%s242 + $0x64] sm:$0xf]
        %v419 = vld [vmem:[%s242 + $0x68] sm:$0xf]
        %v420 = vld [vmem:[%s242 + $0x6c] sm:$0xf]
        %v421 = vld [vmem:[%s242 + $0x70] sm:$0xf]
        %v422 = vld [vmem:[%s242 + $0x74] sm:$0xf]
        %v423 = vld [vmem:[%s242 + $0x78] sm:$0xf]
        %v424 = vld [vmem:[%s242 + $0x7c] sm:$0xf]
        %v425 = vld [vmem:[%s242 + $0x80] sm:$0x1]
        %v426 = vld [vmem:[%s242] sm:$0xe]
        %v427 = vld [vmem:[%s242 + $0x80] sm:$0x3]
        %v460 = vunpack.c.l.b16 %v393
        %v461 = vunpack.c.l.b16 %v394
        %v462 = vunpack.c.l.b16 %v395
        %v463 = vunpack.c.l.b16 %v396
        %v464 = vunpack.c.l.b16 %v397
        %v465 = vunpack.c.l.b16 %v398
        %v466 = vunpack.c.l.b16 %v399
        %v467 = vunpack.c.l.b16 %v400
        %v468 = vunpack.c.l.b16 %v401
        %v469 = vunpack.c.l.b16 %v402
        %v470 = vunpack.c.l.b16 %v403
        %v471 = vunpack.c.l.b16 %v404
        %v472 = vunpack.c.l.b16 %v405
        %v473 = vunpack.c.l.b16 %v406
        %v474 = vunpack.c.l.b16 %v407
        %v475 = vunpack.c.l.b16 %v408
        %v476 = vunpack.c.l.b16 %v409
        %v477 = vunpack.c.l.b16 %v410
        %v478 = vunpack.c.l.b16 %v411
        %v479 = vunpack.c.l.b16 %v412
        %v480 = vunpack.c.l.b16 %v413
        %v481 = vunpack.c.l.b16 %v414
        %v482 = vunpack.c.l.b16 %v415
        %v483 = vunpack.c.l.b16 %v416
        %v484 = vunpack.c.l.b16 %v417
        %v485 = vunpack.c.l.b16 %v418
        %v486 = vunpack.c.l.b16 %v419
        %v487 = vunpack.c.l.b16 %v420
        %v488 = vunpack.c.l.b16 %v421
        %v489 = vunpack.c.l.b16 %v422
        %v490 = vunpack.c.l.b16 %v423
        %v491 = vunpack.c.l.b16 %v424
        %v492 = vpack.c.b16 %v461, %v460
        %v493 = vpack.c.b16 %v463, %v462
        %v494 = vpack.c.b16 %v465, %v464
        %v495 = vpack.c.b16 %v467, %v466
        %v496 = vpack.c.b16 %v469, %v468
        %v497 = vpack.c.b16 %v471, %v470
        %v498 = vpack.c.b16 %v473, %v472
        %v499 = vpack.c.b16 %v475, %v474
        %v500 = vpack.c.b16 %v477, %v476
        %v501 = vpack.c.b16 %v479, %v478
        %v502 = vpack.c.b16 %v481, %v480
        %v503 = vpack.c.b16 %v483, %v482
        %v504 = vpack.c.b16 %v485, %v484
        %v505 = vpack.c.b16 %v487, %v486
        %v506 = vpack.c.b16 %v489, %v488
        %v507 = vpack.c.b16 %v491, %v490
        %v525 = vunpack.c.l.b16 %v425
        %v526 = vpack.c.b16 %v525, %v525
        %vm527 = vsmask.f32 7424
        %v529 = vshrl.u32 %v492, 16
        %v531 = vshll.u32 %v492, 16
        %v533 = vrot.slane %v531, 1
        %v534 = vor.u32 %v529, %v533
        %v536 = vshll.u32 %v493, 16
        %v538 = vrot.slane %v536, 1
        %v539 = vsel %vm527, %v534, %v538
        %v540 = vshrl.u32 %v493, 16
        %v542 = vor.u32 %v540, %v538
        %v544 = vshll.u32 %v494, 16
        %v546 = vrot.slane %v544, 1
        %v547 = vsel %vm527, %v542, %v546
        %v548 = vshrl.u32 %v494, 16
        %v550 = vor.u32 %v548, %v546
        %v552 = vshll.u32 %v495, 16
        %v554 = vrot.slane %v552, 1
        %v555 = vsel %vm527, %v550, %v554
        %v556 = vshrl.u32 %v495, 16
        %v558 = vor.u32 %v556, %v554
        %v560 = vshll.u32 %v496, 16
        %v562 = vrot.slane %v560, 1
        %v563 = vsel %vm527, %v558, %v562
        %v564 = vshrl.u32 %v496, 16
        %v566 = vor.u32 %v564, %v562
        %v568 = vshll.u32 %v497, 16
        %v570 = vrot.slane %v568, 1
        %v571 = vsel %vm527, %v566, %v570
        %v572 = vshrl.u32 %v497, 16
        %v574 = vor.u32 %v572, %v570
        %v576 = vshll.u32 %v498, 16
        %v578 = vrot.slane %v576, 1
        %v579 = vsel %vm527, %v574, %v578
        %v580 = vshrl.u32 %v498, 16
        %v582 = vor.u32 %v580, %v578
        %v584 = vshll.u32 %v499, 16
        %v586 = vrot.slane %v584, 1
        %v587 = vsel %vm527, %v582, %v586
        %v588 = vshrl.u32 %v499, 16
        %v590 = vor.u32 %v588, %v586
        %v592 = vshll.u32 %v500, 16
        %v594 = vrot.slane %v592, 1
        %v595 = vsel %vm527, %v590, %v594
        %v596 = vshrl.u32 %v500, 16
        %v598 = vor.u32 %v596, %v594
        %v600 = vshll.u32 %v501, 16
        %v602 = vrot.slane %v600, 1
        %v603 = vsel %vm527, %v598, %v602
        %v604 = vshrl.u32 %v501, 16
        %v606 = vor.u32 %v604, %v602
        %v608 = vshll.u32 %v502, 16
        %v610 = vrot.slane %v608, 1
        %v611 = vsel %vm527, %v606, %v610
        %v612 = vshrl.u32 %v502, 16
        %v614 = vor.u32 %v612, %v610
        %v616 = vshll.u32 %v503, 16
        %v618 = vrot.slane %v616, 1
        %v619 = vsel %vm527, %v614, %v618
        %v620 = vshrl.u32 %v503, 16
        %v622 = vor.u32 %v620, %v618
        %v624 = vshll.u32 %v504, 16
        %v626 = vrot.slane %v624, 1
        %v627 = vsel %vm527, %v622, %v626
        %v628 = vshrl.u32 %v504, 16
        %v630 = vor.u32 %v628, %v626
        %v632 = vshll.u32 %v505, 16
        %v634 = vrot.slane %v632, 1
        %v635 = vsel %vm527, %v630, %v634
        %v636 = vshrl.u32 %v505, 16
        %v638 = vor.u32 %v636, %v634
        %v640 = vshll.u32 %v506, 16
        %v642 = vrot.slane %v640, 1
        %v643 = vsel %vm527, %v638, %v642
        %v644 = vshrl.u32 %v506, 16
        %v646 = vor.u32 %v644, %v642
        %v648 = vshll.u32 %v507, 16
        %v650 = vrot.slane %v648, 1
        %v651 = vsel %vm527, %v646, %v650
        %v652 = vshrl.u32 %v507, 16
        %v654 = vor.u32 %v652, %v650
        %v656 = vshll.u32 %v526, 16
        %v658 = vrot.slane %v656, 1
        %v659 = vsel %vm527, %v654, %v658
        %v677 = vunpack.c.l.b16 %v426
        %v678 = vpack.c.b16 %v461, %v677
        %vm679 = vcmask 1046528
        %v680 = vrot.slane %v678, 1
        %v681 = vrot.slane %v493, 1
        %v682 = vsel %vm679, %v680, %v681
        %v683 = vrot.slane %v494, 1
        %v684 = vsel %vm679, %v681, %v683
        %v685 = vrot.slane %v495, 1
        %v686 = vsel %vm679, %v683, %v685
        %v687 = vrot.slane %v496, 1
        %v688 = vsel %vm679, %v685, %v687
        %v689 = vrot.slane %v497, 1
        %v690 = vsel %vm679, %v687, %v689
        %v691 = vrot.slane %v498, 1
        %v692 = vsel %vm679, %v689, %v691
        %v693 = vrot.slane %v499, 1
        %v694 = vsel %vm679, %v691, %v693
        %v695 = vrot.slane %v500, 1
        %v696 = vsel %vm679, %v693, %v695
        %v697 = vrot.slane %v501, 1
        %v698 = vsel %vm679, %v695, %v697
        %v699 = vrot.slane %v502, 1
        %v700 = vsel %vm679, %v697, %v699
        %v701 = vrot.slane %v503, 1
        %v702 = vsel %vm679, %v699, %v701
        %v703 = vrot.slane %v504, 1
        %v704 = vsel %vm679, %v701, %v703
        %v705 = vrot.slane %v505, 1
        %v706 = vsel %vm679, %v703, %v705
        %v707 = vrot.slane %v506, 1
        %v708 = vsel %vm679, %v705, %v707
        %v709 = vrot.slane %v507, 1
        %v710 = vsel %vm679, %v707, %v709
        %v711 = vrot.slane %v526, 1
        %v712 = vsel %vm679, %v709, %v711
        %v730 = vunpack.c.l.b16 %v427
        %v731 = vpack.c.b16 %v730, %v730
        %vm732 = vsmask.f32 6400
        %v734 = vshrl.u32 %v678, 16
        %v736 = vrot.slane %v734, 1
        %v737 = vshll.u32 %v678, 16
        %v739 = vrot.slane %v737, 2
        %v740 = vor.u32 %v736, %v739
        %v741 = vrot.slane %v540, 1
        %v742 = vrot.slane %v536, 2
        %v743 = vor.u32 %v741, %v742
        %v744 = vsel %vm732, %v740, %v743
        %v745 = vrot.slane %v548, 1
        %v746 = vrot.slane %v544, 2
        %v747 = vor.u32 %v745, %v746
        %v748 = vsel %vm732, %v743, %v747
        %v749 = vrot.slane %v556, 1
        %v750 = vrot.slane %v552, 2
        %v751 = vor.u32 %v749, %v750
        %v752 = vsel %vm732, %v747, %v751
        %v753 = vrot.slane %v564, 1
        %v754 = vrot.slane %v560, 2
        %v755 = vor.u32 %v753, %v754
        %v756 = vsel %vm732, %v751, %v755
        %v757 = vrot.slane %v572, 1
        %v758 = vrot.slane %v568, 2
        %v759 = vor.u32 %v757, %v758
        %v760 = vsel %vm732, %v755, %v759
        %v761 = vrot.slane %v580, 1
        %v762 = vrot.slane %v576, 2
        %v763 = vor.u32 %v761, %v762
        %v764 = vsel %vm732, %v759, %v763
        %v765 = vrot.slane %v588, 1
        %v766 = vrot.slane %v584, 2
        %v767 = vor.u32 %v765, %v766
        %v768 = vsel %vm732, %v763, %v767
        %v769 = vrot.slane %v596, 1
        %v770 = vrot.slane %v592, 2
        %v771 = vor.u32 %v769, %v770
        %v772 = vsel %vm732, %v767, %v771
        %v773 = vrot.slane %v604, 1
        %v774 = vrot.slane %v600, 2
        %v775 = vor.u32 %v773, %v774
        %v776 = vsel %vm732, %v771, %v775
        %v777 = vrot.slane %v612, 1
        %v778 = vrot.slane %v608, 2
        %v779 = vor.u32 %v777, %v778
        %v780 = vsel %vm732, %v775, %v779
        %v781 = vrot.slane %v620, 1
        %v782 = vrot.slane %v616, 2
        %v783 = vor.u32 %v781, %v782
        %v784 = vsel %vm732, %v779, %v783
        %v785 = vrot.slane %v628, 1
        %v786 = vrot.slane %v624, 2
        %v787 = vor.u32 %v785, %v786
        %v788 = vsel %vm732, %v783, %v787
        %v789 = vrot.slane %v636, 1
        %v790 = vrot.slane %v632, 2
        %v791 = vor.u32 %v789, %v790
        %v792 = vsel %vm732, %v787, %v791
        %v793 = vrot.slane %v644, 1
        %v794 = vrot.slane %v640, 2
        %v795 = vor.u32 %v793, %v794
        %v796 = vsel %vm732, %v791, %v795
        %v797 = vrot.slane %v652, 1
        %v798 = vrot.slane %v648, 2
        %v799 = vor.u32 %v797, %v798
        %v800 = vsel %vm732, %v795, %v799
        %v802 = vshrl.u32 %v731, 16
        %v804 = vrot.slane %v802, 1
        %v805 = vshll.u32 %v731, 16
        %v807 = vrot.slane %v805, 2
        %v808 = vor.u32 %v804, %v807
        %v809 = vsel %vm732, %v799, %v808
        %v958 = vunpack.c.l.b16 %v261
        %v959 = vunpack.c.h.b16 %v261
        %v960 = vunpack.c.l.b16 %v262
        %v961 = vunpack.c.h.b16 %v262
        %v962 = vunpack.c.l.b16 %v263
        %v963 = vunpack.c.h.b16 %v263
        %v964 = vunpack.c.l.b16 %v264
        %v965 = vunpack.c.h.b16 %v264
        %v966 = vunpack.c.l.b16 %v265
        %v967 = vunpack.c.h.b16 %v265
        %v968 = vunpack.c.l.b16 %v266
        %v969 = vunpack.c.h.b16 %v266
        %v970 = vunpack.c.l.b16 %v267
        %v971 = vunpack.c.h.b16 %v267
        %v972 = vunpack.c.l.b16 %v268
        %v973 = vunpack.c.h.b16 %v268
        %v974 = vunpack.c.l.b16 %v269
        %v975 = vunpack.c.h.b16 %v269
        %v976 = vunpack.c.l.b16 %v270
        %v977 = vunpack.c.h.b16 %v270
        %v978 = vunpack.c.l.b16 %v271
        %v979 = vunpack.c.h.b16 %v271
        %v980 = vunpack.c.l.b16 %v272
        %v981 = vunpack.c.h.b16 %v272
        %v982 = vunpack.c.l.b16 %v273
        %v983 = vunpack.c.h.b16 %v273
        %v984 = vunpack.c.l.b16 %v274
        %v985 = vunpack.c.h.b16 %v274
        %v986 = vunpack.c.l.b16 %v275
        %v987 = vunpack.c.h.b16 %v275
        %v988 = vunpack.c.l.b16 %v276
        %v989 = vunpack.c.h.b16 %v276
        %v990 = vunpack.c.l.b16 %v277
        %v991 = vunpack.c.h.b16 %v277
        %v992 = vunpack.c.l.b16 %v278
        %v993 = vunpack.c.h.b16 %v278
        %v994 = vunpack.c.l.b16 %v279
        %v995 = vunpack.c.h.b16 %v279
        %v996 = vunpack.c.l.b16 %v280
        %v997 = vunpack.c.h.b16 %v280
        %v998 = vunpack.c.l.b16 %v281
        %v999 = vunpack.c.h.b16 %v281
        %v1000 = vunpack.c.l.b16 %v282
        %v1001 = vunpack.c.h.b16 %v282
        %v1002 = vunpack.c.l.b16 %v283
        %v1003 = vunpack.c.h.b16 %v283
        %v1004 = vunpack.c.l.b16 %v284
        %v1005 = vunpack.c.h.b16 %v284
        %v1006 = vunpack.c.l.b16 %v285
        %v1007 = vunpack.c.h.b16 %v285
        %v1008 = vunpack.c.l.b16 %v286
        %v1009 = vunpack.c.h.b16 %v286
        %v1010 = vunpack.c.l.b16 %v287
        %v1011 = vunpack.c.h.b16 %v287
        %v1012 = vunpack.c.l.b16 %v288
        %v1013 = vunpack.c.h.b16 %v288
        %v1014 = vunpack.c.l.b16 %v289
        %v1015 = vunpack.c.h.b16 %v289
        %v1016 = vunpack.c.l.b16 %v290
        %v1017 = vunpack.c.h.b16 %v290
        %v1018 = vunpack.c.l.b16 %v291
        %v1019 = vunpack.c.h.b16 %v291
        %v1020 = vunpack.c.l.b16 %v292
        %v1021 = vunpack.c.h.b16 %v292
        %v1022 = vunpack.c.l.b16 %v293
        %v1023 = vunpack.c.h.b16 %v293
        %v1024 = vunpack.c.l.b16 %v294
        %v1025 = vunpack.c.h.b16 %v294
        %v1026 = vunpack.c.l.b16 %v295
        %v1027 = vunpack.c.h.b16 %v295
        %v1028 = vunpack.c.l.b16 %v296
        %v1029 = vunpack.c.h.b16 %v296
        %v1030 = vunpack.c.l.b16 %v297
        %v1031 = vunpack.c.h.b16 %v297
        %v1032 = vunpack.c.l.b16 %v298
        %v1033 = vunpack.c.h.b16 %v298
        %v1034 = vunpack.c.l.b16 %v299
        %v1035 = vunpack.c.h.b16 %v299
        %v1036 = vunpack.c.l.b16 %v300
        %v1037 = vunpack.c.h.b16 %v300
        %v1038 = vunpack.c.l.b16 %v301
        %v1039 = vunpack.c.h.b16 %v301
        %v1040 = vunpack.c.l.b16 %v302
        %v1041 = vunpack.c.h.b16 %v302
        %v1042 = vunpack.c.l.b16 %v303
        %v1043 = vunpack.c.h.b16 %v303
        %v1044 = vunpack.c.l.b16 %v304
        %v1045 = vunpack.c.h.b16 %v304
        %v1046 = vunpack.c.l.b16 %v305
        %v1047 = vunpack.c.h.b16 %v305
        %v1048 = vunpack.c.l.b16 %v306
        %v1049 = vunpack.c.h.b16 %v306
        %v1050 = vunpack.c.l.b16 %v307
        %v1051 = vunpack.c.h.b16 %v307
        %v1052 = vunpack.c.l.b16 %v308
        %v1053 = vunpack.c.h.b16 %v308
        %v1054 = vunpack.c.l.b16 %v309
        %v1055 = vunpack.c.h.b16 %v309
        %v1056 = vunpack.c.l.b16 %v310
        %v1057 = vunpack.c.h.b16 %v310
        %v1058 = vunpack.c.l.b16 %v311
        %v1059 = vunpack.c.h.b16 %v311
        %v1060 = vunpack.c.l.b16 %v312
        %v1061 = vunpack.c.h.b16 %v312
        %v1062 = vunpack.c.l.b16 %v313
        %v1063 = vunpack.c.h.b16 %v313
        %v1064 = vunpack.c.l.b16 %v314
        %v1065 = vunpack.c.h.b16 %v314
        %v1066 = vunpack.c.l.b16 %v315
        %v1067 = vunpack.c.h.b16 %v315
        %v1068 = vunpack.c.l.b16 %v316
        %v1069 = vunpack.c.h.b16 %v316
        %v1070 = vunpack.c.l.b16 %v317
        %v1071 = vunpack.c.h.b16 %v317
        %v1072 = vunpack.c.l.b16 %v318
        %v1073 = vunpack.c.h.b16 %v318
        %v1074 = vunpack.c.l.b16 %v319
        %v1075 = vunpack.c.h.b16 %v319
        %v1076 = vunpack.c.l.b16 %v320
        %v1077 = vunpack.c.h.b16 %v320
        %v1078 = vunpack.c.l.b16 %v321
        %v1079 = vunpack.c.h.b16 %v321
        %v1080 = vunpack.c.l.b16 %v322
        %v1081 = vunpack.c.h.b16 %v322
        %v1082 = vunpack.c.l.b16 %v323
        %v1083 = vunpack.c.h.b16 %v323
        %v1084 = vunpack.c.l.b16 %v324
        %v1085 = vunpack.c.h.b16 %v324
        %v1086 = vunpack.c.l.b16 %v325
        %v1087 = vunpack.c.h.b16 %v325
        %v1088 = vunpack.c.l.b16 %v326
        %v1089 = vunpack.c.h.b16 %v326
        %v1090 = vunpack.c.l.b16 %v327
        %v1091 = vunpack.c.h.b16 %v327
        %v1092 = vunpack.c.l.b16 %v328
        %v1093 = vunpack.c.h.b16 %v328
        %v1094 = vunpack.c.l.b16 %v329
        %v1095 = vunpack.c.h.b16 %v329
        %v1096 = vunpack.c.l.b16 %v330
        %v1097 = vunpack.c.h.b16 %v330
        %v1098 = vunpack.c.l.b16 %v331
        %v1099 = vunpack.c.h.b16 %v331
        %v1100 = vunpack.c.l.b16 %v332
        %v1101 = vunpack.c.h.b16 %v332
        %v1102 = vunpack.c.l.b16 %v333
        %v1103 = vunpack.c.h.b16 %v333
        %v1104 = vunpack.c.l.b16 %v334
        %v1105 = vunpack.c.h.b16 %v334
        %v1106 = vunpack.c.l.b16 %v335
        %v1107 = vunpack.c.h.b16 %v335
        %v1108 = vunpack.c.l.b16 %v336
        %v1109 = vunpack.c.h.b16 %v336
        %v1110 = vunpack.c.l.b16 %v337
        %v1111 = vunpack.c.h.b16 %v337
        %v1112 = vunpack.c.l.b16 %v338
        %v1113 = vunpack.c.h.b16 %v338
        %v1114 = vunpack.c.l.b16 %v339
        %v1115 = vunpack.c.h.b16 %v339
        %v1116 = vunpack.c.l.b16 %v340
        %v1117 = vunpack.c.h.b16 %v340
        %v1118 = vunpack.c.l.b16 %v341
        %v1119 = vunpack.c.h.b16 %v341
        %v1120 = vunpack.c.l.b16 %v342
        %v1121 = vunpack.c.h.b16 %v342
        %v1122 = vunpack.c.l.b16 %v343
        %v1123 = vunpack.c.h.b16 %v343
        %v1124 = vunpack.c.l.b16 %v344
        %v1125 = vunpack.c.h.b16 %v344
        %v1126 = vunpack.c.l.b16 %v345
        %v1127 = vunpack.c.h.b16 %v345
        %v1128 = vunpack.c.l.b16 %v346
        %v1129 = vunpack.c.h.b16 %v346
        %v1130 = vunpack.c.l.b16 %v347
        %v1131 = vunpack.c.h.b16 %v347
        %v1132 = vunpack.c.l.b16 %v348
        %v1133 = vunpack.c.h.b16 %v348
        %v1134 = vunpack.c.l.b16 %v349
        %v1135 = vunpack.c.h.b16 %v349
        %v1136 = vunpack.c.l.b16 %v350
        %v1137 = vunpack.c.h.b16 %v350
        %v1138 = vunpack.c.l.b16 %v351
        %v1139 = vunpack.c.h.b16 %v351
        %v1140 = vunpack.c.l.b16 %v352
        %v1141 = vunpack.c.h.b16 %v352
        %v1142 = vunpack.c.l.b16 %v353
        %v1143 = vunpack.c.h.b16 %v353
        %v1144 = vunpack.c.l.b16 %v354
        %v1145 = vunpack.c.h.b16 %v354
        %v1146 = vunpack.c.l.b16 %v355
        %v1147 = vunpack.c.h.b16 %v355
        %v1148 = vunpack.c.l.b16 %v356
        %v1149 = vunpack.c.h.b16 %v356
        %v1150 = vunpack.c.l.b16 %v357
        %v1151 = vunpack.c.h.b16 %v357
        %v1152 = vunpack.c.l.b16 %v358
        %v1153 = vunpack.c.h.b16 %v358
        %v1154 = vunpack.c.l.b16 %v359
        %v1155 = vunpack.c.h.b16 %v359
        %v1156 = vunpack.c.l.b16 %v360
        %v1157 = vunpack.c.h.b16 %v360
        %v1158 = vunpack.c.l.b16 %v361
        %v1159 = vunpack.c.h.b16 %v361
        %v1160 = vunpack.c.l.b16 %v362
        %v1161 = vunpack.c.h.b16 %v362
        %v1162 = vunpack.c.l.b16 %v363
        %v1163 = vunpack.c.h.b16 %v363
        %v1164 = vunpack.c.l.b16 %v364
        %v1165 = vunpack.c.h.b16 %v364
        %v1166 = vunpack.c.l.b16 %v365
        %v1167 = vunpack.c.h.b16 %v365
        %v1168 = vunpack.c.l.b16 %v366
        %v1169 = vunpack.c.h.b16 %v366
        %v1170 = vunpack.c.l.b16 %v367
        %v1171 = vunpack.c.h.b16 %v367
        %v1172 = vunpack.c.l.b16 %v368
        %v1173 = vunpack.c.h.b16 %v368
        %v1174 = vunpack.c.l.b16 %v369
        %v1175 = vunpack.c.h.b16 %v369
        %v1176 = vunpack.c.l.b16 %v370
        %v1177 = vunpack.c.h.b16 %v370
        %v1178 = vunpack.c.l.b16 %v371
        %v1179 = vunpack.c.h.b16 %v371
        %v1180 = vunpack.c.l.b16 %v372
        %v1181 = vunpack.c.h.b16 %v372
        %v1182 = vunpack.c.l.b16 %v373
        %v1183 = vunpack.c.h.b16 %v373
        %v1184 = vunpack.c.l.b16 %v374
        %v1185 = vunpack.c.h.b16 %v374
        %v1186 = vunpack.c.l.b16 %v375
        %v1187 = vunpack.c.h.b16 %v375
        %v1188 = vunpack.c.l.b16 %v376
        %v1189 = vunpack.c.h.b16 %v376
        %v1190 = vunpack.c.l.b16 %v377
        %v1191 = vunpack.c.h.b16 %v377
        %v1192 = vunpack.c.l.b16 %v378
        %v1193 = vunpack.c.h.b16 %v378
        %v1194 = vunpack.c.l.b16 %v379
        %v1195 = vunpack.c.h.b16 %v379
        %v1196 = vunpack.c.l.b16 %v380
        %v1197 = vunpack.c.h.b16 %v380
        %v1198 = vunpack.c.l.b16 %v381
        %v1199 = vunpack.c.h.b16 %v381
        %v1200 = vunpack.c.l.b16 %v382
        %v1201 = vunpack.c.h.b16 %v382
        %v1202 = vunpack.c.l.b16 %v383
        %v1203 = vunpack.c.h.b16 %v383
        %v1204 = vunpack.c.l.b16 %v384
        %v1205 = vunpack.c.h.b16 %v384
        %v1206 = vunpack.c.l.b16 %v385
        %v1207 = vunpack.c.h.b16 %v385
        %v1208 = vunpack.c.l.b16 %v386
        %v1209 = vunpack.c.h.b16 %v386
        %v1210 = vunpack.c.l.b16 %v387
        %v1211 = vunpack.c.h.b16 %v387
        %v1212 = vunpack.c.l.b16 %v388
        %v1213 = vunpack.c.h.b16 %v388
        %v1214 = vunpack.c.l.b16 %v389
        %v1215 = vunpack.c.h.b16 %v389
        %v1216 = vunpack.c.l.b16 %v390
        %v1217 = vunpack.c.h.b16 %v390
        %v1218 = vunpack.c.l.b16 %v391
        %v1219 = vunpack.c.h.b16 %v391
        %v1220 = vunpack.c.l.b16 %v392
        %v1221 = vunpack.c.h.b16 %v392
        %v1222 = vpack.c.b16 %v962, %v958
        %v1223 = vpack.c.b16 %v963, %v959
        %v1224 = vpack.c.b16 %v964, %v960
        %v1225 = vpack.c.b16 %v965, %v961
        %v1226 = vpack.c.b16 %v970, %v966
        %v1227 = vpack.c.b16 %v971, %v967
        %v1228 = vpack.c.b16 %v972, %v968
        %v1229 = vpack.c.b16 %v973, %v969
        %v1230 = vpack.c.b16 %v978, %v974
        %v1231 = vpack.c.b16 %v979, %v975
        %v1232 = vpack.c.b16 %v980, %v976
        %v1233 = vpack.c.b16 %v981, %v977
        %v1234 = vpack.c.b16 %v986, %v982
        %v1235 = vpack.c.b16 %v987, %v983
        %v1236 = vpack.c.b16 %v988, %v984
        %v1237 = vpack.c.b16 %v989, %v985
        %v1238 = vpack.c.b16 %v994, %v990
        %v1239 = vpack.c.b16 %v995, %v991
        %v1240 = vpack.c.b16 %v996, %v992
        %v1241 = vpack.c.b16 %v997, %v993
        %v1242 = vpack.c.b16 %v1002, %v998
        %v1243 = vpack.c.b16 %v1003, %v999
        %v1244 = vpack.c.b16 %v1004, %v1000
        %v1245 = vpack.c.b16 %v1005, %v1001
        %v1246 = vpack.c.b16 %v1010, %v1006
        %v1247 = vpack.c.b16 %v1011, %v1007
        %v1248 = vpack.c.b16 %v1012, %v1008
        %v1249 = vpack.c.b16 %v1013, %v1009
        %v1250 = vpack.c.b16 %v1018, %v1014
        %v1251 = vpack.c.b16 %v1019, %v1015
        %v1252 = vpack.c.b16 %v1020, %v1016
        %v1253 = vpack.c.b16 %v1021, %v1017
        %v1254 = vpack.c.b16 %v1026, %v1022
        %v1255 = vpack.c.b16 %v1027, %v1023
        %v1256 = vpack.c.b16 %v1028, %v1024
        %v1257 = vpack.c.b16 %v1029, %v1025
        %v1258 = vpack.c.b16 %v1034, %v1030
        %v1259 = vpack.c.b16 %v1035, %v1031
        %v1260 = vpack.c.b16 %v1036, %v1032
        %v1261 = vpack.c.b16 %v1037, %v1033
        %v1262 = vpack.c.b16 %v1042, %v1038
        %v1263 = vpack.c.b16 %v1043, %v1039
        %v1264 = vpack.c.b16 %v1044, %v1040
        %v1265 = vpack.c.b16 %v1045, %v1041
        %v1266 = vpack.c.b16 %v1050, %v1046
        %v1267 = vpack.c.b16 %v1051, %v1047
        %v1268 = vpack.c.b16 %v1052, %v1048
        %v1269 = vpack.c.b16 %v1053, %v1049
        %v1270 = vpack.c.b16 %v1058, %v1054
        %v1271 = vpack.c.b16 %v1059, %v1055
        %v1272 = vpack.c.b16 %v1060, %v1056
        %v1273 = vpack.c.b16 %v1061, %v1057
        %v1274 = vpack.c.b16 %v1066, %v1062
        %v1275 = vpack.c.b16 %v1067, %v1063
        %v1276 = vpack.c.b16 %v1068, %v1064
        %v1277 = vpack.c.b16 %v1069, %v1065
        %v1278 = vpack.c.b16 %v1074, %v1070
        %v1279 = vpack.c.b16 %v1075, %v1071
        %v1280 = vpack.c.b16 %v1076, %v1072
        %v1281 = vpack.c.b16 %v1077, %v1073
        %v1282 = vpack.c.b16 %v1082, %v1078
        %v1283 = vpack.c.b16 %v1083, %v1079
        %v1284 = vpack.c.b16 %v1084, %v1080
        %v1285 = vpack.c.b16 %v1085, %v1081
        %v1286 = vpack.c.b16 %v1090, %v1086
        %v1287 = vpack.c.b16 %v1091, %v1087
        %v1288 = vpack.c.b16 %v1092, %v1088
        %v1289 = vpack.c.b16 %v1093, %v1089
        %v1290 = vpack.c.b16 %v1098, %v1094
        %v1291 = vpack.c.b16 %v1099, %v1095
        %v1292 = vpack.c.b16 %v1100, %v1096
        %v1293 = vpack.c.b16 %v1101, %v1097
        %v1294 = vpack.c.b16 %v1106, %v1102
        %v1295 = vpack.c.b16 %v1107, %v1103
        %v1296 = vpack.c.b16 %v1108, %v1104
        %v1297 = vpack.c.b16 %v1109, %v1105
        %v1298 = vpack.c.b16 %v1114, %v1110
        %v1299 = vpack.c.b16 %v1115, %v1111
        %v1300 = vpack.c.b16 %v1116, %v1112
        %v1301 = vpack.c.b16 %v1117, %v1113
        %v1302 = vpack.c.b16 %v1122, %v1118
        %v1303 = vpack.c.b16 %v1123, %v1119
        %v1304 = vpack.c.b16 %v1124, %v1120
        %v1305 = vpack.c.b16 %v1125, %v1121
        %v1306 = vpack.c.b16 %v1130, %v1126
        %v1307 = vpack.c.b16 %v1131, %v1127
        %v1308 = vpack.c.b16 %v1132, %v1128
        %v1309 = vpack.c.b16 %v1133, %v1129
        %v1310 = vpack.c.b16 %v1138, %v1134
        %v1311 = vpack.c.b16 %v1139, %v1135
        %v1312 = vpack.c.b16 %v1140, %v1136
        %v1313 = vpack.c.b16 %v1141, %v1137
        %v1314 = vpack.c.b16 %v1146, %v1142
        %v1315 = vpack.c.b16 %v1147, %v1143
        %v1316 = vpack.c.b16 %v1148, %v1144
        %v1317 = vpack.c.b16 %v1149, %v1145
        %v1318 = vpack.c.b16 %v1154, %v1150
        %v1319 = vpack.c.b16 %v1155, %v1151
        %v1320 = vpack.c.b16 %v1156, %v1152
        %v1321 = vpack.c.b16 %v1157, %v1153
        %v1322 = vpack.c.b16 %v1162, %v1158
        %v1323 = vpack.c.b16 %v1163, %v1159
        %v1324 = vpack.c.b16 %v1164, %v1160
        %v1325 = vpack.c.b16 %v1165, %v1161
        %v1326 = vpack.c.b16 %v1170, %v1166
        %v1327 = vpack.c.b16 %v1171, %v1167
        %v1328 = vpack.c.b16 %v1172, %v1168
        %v1329 = vpack.c.b16 %v1173, %v1169
        %v1330 = vpack.c.b16 %v1178, %v1174
        %v1331 = vpack.c.b16 %v1179, %v1175
        %v1332 = vpack.c.b16 %v1180, %v1176
        %v1333 = vpack.c.b16 %v1181, %v1177
        %v1334 = vpack.c.b16 %v1186, %v1182
        %v1335 = vpack.c.b16 %v1187, %v1183
        %v1336 = vpack.c.b16 %v1188, %v1184
        %v1337 = vpack.c.b16 %v1189, %v1185
        %v1338 = vpack.c.b16 %v1194, %v1190
        %v1339 = vpack.c.b16 %v1195, %v1191
        %v1340 = vpack.c.b16 %v1196, %v1192
        %v1341 = vpack.c.b16 %v1197, %v1193
        %v1342 = vpack.c.b16 %v1202, %v1198
        %v1343 = vpack.c.b16 %v1203, %v1199
        %v1344 = vpack.c.b16 %v1204, %v1200
        %v1345 = vpack.c.b16 %v1205, %v1201
        %v1346 = vpack.c.b16 %v1210, %v1206
        %v1347 = vpack.c.b16 %v1211, %v1207
        %v1348 = vpack.c.b16 %v1212, %v1208
        %v1349 = vpack.c.b16 %v1213, %v1209
        %v1350 = vpack.c.b16 %v1218, %v1214
        %v1351 = vpack.c.b16 %v1219, %v1215
        %v1352 = vpack.c.b16 %v1220, %v1216
        %v1353 = vpack.c.b16 %v1221, %v1217
        %1486 = vmatprep.subr.bf16.mxu0 %v539
        %1487 = vmatpush1.bf16.xpose.msra.mxu0 %v492
        %1488 = vmatprep.subr.bf16.mxu0 %v547
        %1489 = vmatpush1.bf16.xpose.msra.mxu0 %v493
        %1490 = vmatprep.subr.bf16.mxu0 %v555
        %1491 = vmatpush1.bf16.xpose.msra.mxu0 %v494
        %1492 = vmatprep.subr.bf16.mxu0 %v563
        %1493 = vmatpush1.bf16.xpose.msra.mxu0 %v495
        %1494 = vmatprep.subr.bf16.mxu0 %v571
        %1495 = vmatpush1.bf16.xpose.msra.mxu0 %v496
        %1496 = vmatprep.subr.bf16.mxu0 %v579
        %1497 = vmatpush1.bf16.xpose.msra.mxu0 %v497
        %1498 = vmatprep.subr.bf16.mxu0 %v587
        %1499 = vmatpush1.bf16.xpose.msra.mxu0 %v498
        %1500 = vmatprep.subr.bf16.mxu0 %v595
        %1501 = vmatpush1.bf16.xpose.msra.mxu0 %v499
        %1502 = vmatprep.subr.bf16.mxu0 %v603
        %1503 = vmatpush1.bf16.xpose.msra.mxu0 %v500
        %1504 = vmatprep.subr.bf16.mxu0 %v611
        %1505 = vmatpush1.bf16.xpose.msra.mxu0 %v501
        %1506 = vmatprep.subr.bf16.mxu0 %v619
        %1507 = vmatpush1.bf16.xpose.msra.mxu0 %v502
        %1508 = vmatprep.subr.bf16.mxu0 %v627
        %1509 = vmatpush1.bf16.xpose.msra.mxu0 %v503
        %1510 = vmatprep.subr.bf16.mxu0 %v635
        %1511 = vmatpush1.bf16.xpose.msra.mxu0 %v504
        %1512 = vmatprep.subr.bf16.mxu0 %v643
        %1513 = vmatpush1.bf16.xpose.msra.mxu0 %v505
        %1514 = vmatprep.subr.bf16.mxu0 %v651
        %1515 = vmatpush1.bf16.xpose.msra.mxu0 %v506
        %1516 = vmatprep.subr.bf16.mxu0 %v659
        %1517 = vmatpush1.bf16.xpose.msra.mxu0 %v507
        %1518 = vmatprep.mubr.bf16.mxu0 %v1223
        %1519 = vmatmul.mubr.bf16.gmra.mrb[0].mxu0 %v1222
        %v1520 = vpop.f32.mrb[0].mxu0
        %v1521 = vadd.f32 0.0, %v1520
        %v1522 = vpop.f32.mrb[0].mxu0
        %v1523 = vadd.f32 0.0, %v1522
        %v1524 = vpop.f32.mrb[0].mxu0
        %v1525 = vadd.f32 0.0, %v1524
        %v1526 = vpop.f32.mrb[0].mxu0
        %v1527 = vadd.f32 0.0, %v1526
        %1528 = vmatprep.mubr.bf16.mxu0 %v1227
        %1529 = vmatmul.mubr.bf16.gmra.mrb[0].mxu0 %v1226
        %v1530 = vpop.f32.mrb[0].mxu0
        %v1531 = vadd.f32 0.0, %v1530
        %v1532 = vpop.f32.mrb[0].mxu0
        %v1533 = vadd.f32 0.0, %v1532
        %v1534 = vpop.f32.mrb[0].mxu0
        %v1535 = vadd.f32 0.0, %v1534
        %v1536 = vpop.f32.mrb[0].mxu0
        %v1537 = vadd.f32 0.0, %v1536
        %1538 = vmatprep.mubr.bf16.mxu0 %v1231
        %1539 = vmatmul.mubr.bf16.gmra.mrb[0].mxu0 %v1230
        %v1540 = vpop.f32.mrb[0].mxu0
        %v1541 = vadd.f32 0.0, %v1540
        %v1542 = vpop.f32.mrb[0].mxu0
        %v1543 = vadd.f32 0.0, %v1542
        %v1544 = vpop.f32.mrb[0].mxu0
        %v1545 = vadd.f32 0.0, %v1544
        %v1546 = vpop.f32.mrb[0].mxu0
        %v1547 = vadd.f32 0.0, %v1546
        %1548 = vmatprep.mubr.bf16.mxu0 %v1235
        %1549 = vmatmul.mubr.bf16.gmra.mrb[0].mxu0 %v1234
        %v1550 = vpop.f32.mrb[0].mxu0
        %v1551 = vadd.f32 0.0, %v1550
        %v1552 = vpop.f32.mrb[0].mxu0
        %v1553 = vadd.f32 0.0, %v1552
        %v1554 = vpop.f32.mrb[0].mxu0
        %v1555 = vadd.f32 0.0, %v1554
        %v1556 = vpop.f32.mrb[0].mxu0
        %v1557 = vadd.f32 0.0, %v1556
        %1558 = vmatprep.mubr.bf16.mxu0 %v1239
        %1559 = vmatmul.mubr.bf16.gmra.mrb[0].mxu0 %v1238
        %v1560 = vpop.f32.mrb[0].mxu0
        %v1561 = vadd.f32 0.0, %v1560
        %v1562 = vpop.f32.mrb[0].mxu0
        %v1563 = vadd.f32 0.0, %v1562
        %v1564 = vpop.f32.mrb[0].mxu0
        %v1565 = vadd.f32 0.0, %v1564
        %v1566 = vpop.f32.mrb[0].mxu0
        %v1567 = vadd.f32 0.0, %v1566
        %1568 = vmatprep.mubr.bf16.mxu0 %v1243
        %1569 = vmatmul.mubr.bf16.gmra.mrb[0].mxu0 %v1242
        %v1570 = vpop.f32.mrb[0].mxu0
        %v1571 = vadd.f32 0.0, %v1570
        %v1572 = vpop.f32.mrb[0].mxu0
        %v1573 = vadd.f32 0.0, %v1572
        %v1574 = vpop.f32.mrb[0].mxu0
        %v1575 = vadd.f32 0.0, %v1574
        %v1576 = vpop.f32.mrb[0].mxu0
        %v1577 = vadd.f32 0.0, %v1576
        %1578 = vmatprep.mubr.bf16.mxu0 %v1247
        %1579 = vmatmul.mubr.bf16.gmra.mrb[0].mxu0 %v1246
        %v1580 = vpop.f32.mrb[0].mxu0
        %v1581 = vadd.f32 0.0, %v1580
        %v1582 = vpop.f32.mrb[0].mxu0
        %v1583 = vadd.f32 0.0, %v1582
        %v1584 = vpop.f32.mrb[0].mxu0
        %v1585 = vadd.f32 0.0, %v1584
        %v1586 = vpop.f32.mrb[0].mxu0
        %v1587 = vadd.f32 0.0, %v1586
        %1588 = vmatprep.mubr.bf16.mxu0 %v1251
        %1589 = vmatmul.mubr.bf16.gmra.mrb[0].mxu0 %v1250
        %v1590 = vpop.f32.mrb[0].mxu0
        %v1591 = vadd.f32 0.0, %v1590
        %v1592 = vpop.f32.mrb[0].mxu0
        %v1593 = vadd.f32 0.0, %v1592
        %v1594 = vpop.f32.mrb[0].mxu0
        %v1595 = vadd.f32 0.0, %v1594
        %v1596 = vpop.f32.mrb[0].mxu0
        %v1597 = vadd.f32 0.0, %v1596
        %1598 = vmatprep.mubr.bf16.mxu0 %v1255
        %1599 = vmatmul.mubr.bf16.gmra.mrb[0].mxu0 %v1254
        %v1600 = vpop.f32.mrb[0].mxu0
        %v1601 = vadd.f32 0.0, %v1600
        %v1602 = vpop.f32.mrb[0].mxu0
        %v1603 = vadd.f32 0.0, %v1602
        %v1604 = vpop.f32.mrb[0].mxu0
        %v1605 = vadd.f32 0.0, %v1604
        %v1606 = vpop.f32.mrb[0].mxu0
        %v1607 = vadd.f32 0.0, %v1606
        %1608 = vmatprep.mubr.bf16.mxu0 %v1259
        %1609 = vmatmul.mubr.bf16.gmra.mrb[0].mxu0 %v1258
        %v1610 = vpop.f32.mrb[0].mxu0
        %v1611 = vadd.f32 0.0, %v1610
        %v1612 = vpop.f32.mrb[0].mxu0
        %v1613 = vadd.f32 0.0, %v1612
        %v1614 = vpop.f32.mrb[0].mxu0
        %v1615 = vadd.f32 0.0, %v1614
        %v1616 = vpop.f32.mrb[0].mxu0
        %v1617 = vadd.f32 0.0, %v1616
        %1618 = vmatprep.mubr.bf16.mxu0 %v1263
        %1619 = vmatmul.mubr.bf16.gmra.mrb[0].mxu0 %v1262
        %v1620 = vpop.f32.mrb[0].mxu0
        %v1621 = vadd.f32 0.0, %v1620
        %v1622 = vpop.f32.mrb[0].mxu0
        %v1623 = vadd.f32 0.0, %v1622
        %v1624 = vpop.f32.mrb[0].mxu0
        %v1625 = vadd.f32 0.0, %v1624
        %v1626 = vpop.f32.mrb[0].mxu0
        %v1627 = vadd.f32 0.0, %v1626
        %1628 = vmatprep.mubr.bf16.mxu0 %v1267
        %1629 = vmatmul.mubr.bf16.gmra.mrb[0].mxu0 %v1266
        %v1630 = vpop.f32.mrb[0].mxu0
        %v1631 = vadd.f32 0.0, %v1630
        %v1632 = vpop.f32.mrb[0].mxu0
        %v1633 = vadd.f32 0.0, %v1632
        %v1634 = vpop.f32.mrb[0].mxu0
        %v1635 = vadd.f32 0.0, %v1634
        %v1636 = vpop.f32.mrb[0].mxu0
        %v1637 = vadd.f32 0.0, %v1636
        %1638 = vmatprep.mubr.bf16.mxu0 %v1271
        %1639 = vmatmul.mubr.bf16.gmra.mrb[0].mxu0 %v1270
        %v1640 = vpop.f32.mrb[0].mxu0
        %v1641 = vadd.f32 0.0, %v1640
        %v1642 = vpop.f32.mrb[0].mxu0
        %v1643 = vadd.f32 0.0, %v1642
        %v1644 = vpop.f32.mrb[0].mxu0
        %v1645 = vadd.f32 0.0, %v1644
        %v1646 = vpop.f32.mrb[0].mxu0
        %v1647 = vadd.f32 0.0, %v1646
        %1648 = vmatprep.mubr.bf16.mxu0 %v1275
        %1649 = vmatmul.mubr.bf16.gmra.mrb[0].mxu0 %v1274
        %v1650 = vpop.f32.mrb[0].mxu0
        %v1651 = vadd.f32 0.0, %v1650
        %v1652 = vpop.f32.mrb[0].mxu0
        %v1653 = vadd.f32 0.0, %v1652
        %v1654 = vpop.f32.mrb[0].mxu0
        %v1655 = vadd.f32 0.0, %v1654
        %v1656 = vpop.f32.mrb[0].mxu0
        %v1657 = vadd.f32 0.0, %v1656
        %1658 = vmatprep.mubr.bf16.mxu0 %v1279
        %1659 = vmatmul.mubr.bf16.gmra.mrb[0].mxu0 %v1278
        %v1660 = vpop.f32.mrb[0].mxu0
        %v1661 = vadd.f32 0.0, %v1660
        %v1662 = vpop.f32.mrb[0].mxu0
        %v1663 = vadd.f32 0.0, %v1662
        %v1664 = vpop.f32.mrb[0].mxu0
        %v1665 = vadd.f32 0.0, %v1664
        %v1666 = vpop.f32.mrb[0].mxu0
        %v1667 = vadd.f32 0.0, %v1666
        %1668 = vmatprep.mubr.bf16.mxu0 %v1283
        %1669 = vmatmul.mubr.bf16.gmra.mrb[0].mxu0 %v1282
        %v1670 = vpop.f32.mrb[0].mxu0
        %v1671 = vadd.f32 0.0, %v1670
        %v1672 = vpop.f32.mrb[0].mxu0
        %v1673 = vadd.f32 0.0, %v1672
        %v1674 = vpop.f32.mrb[0].mxu0
        %v1675 = vadd.f32 0.0, %v1674
        %v1676 = vpop.f32.mrb[0].mxu0
        %v1677 = vadd.f32 0.0, %v1676
        %1678 = vmatprep.mubr.bf16.mxu0 %v1287
        %1679 = vmatmul.mubr.bf16.gmra.mrb[0].mxu0 %v1286
        %v1680 = vpop.f32.mrb[0].mxu0
        %v1681 = vadd.f32 0.0, %v1680
        %v1682 = vpop.f32.mrb[0].mxu0
        %v1683 = vadd.f32 0.0, %v1682
        %v1684 = vpop.f32.mrb[0].mxu0
        %v1685 = vadd.f32 0.0, %v1684
        %v1686 = vpop.f32.mrb[0].mxu0
        %v1687 = vadd.f32 0.0, %v1686
        %1688 = vmatprep.mubr.bf16.mxu0 %v1291
        %1689 = vmatmul.mubr.bf16.gmra.mrb[0].mxu0 %v1290
        %v1690 = vpop.f32.mrb[0].mxu0
        %v1691 = vadd.f32 0.0, %v1690
        %v1692 = vpop.f32.mrb[0].mxu0
        %v1693 = vadd.f32 0.0, %v1692
        %v1694 = vpop.f32.mrb[0].mxu0
        %v1695 = vadd.f32 0.0, %v1694
        %v1696 = vpop.f32.mrb[0].mxu0
        %v1697 = vadd.f32 0.0, %v1696
        %1698 = vmatprep.mubr.bf16.mxu0 %v1295
        %1699 = vmatmul.mubr.bf16.gmra.mrb[0].mxu0 %v1294
        %v1700 = vpop.f32.mrb[0].mxu0
        %v1701 = vadd.f32 0.0, %v1700
        %v1702 = vpop.f32.mrb[0].mxu0
        %v1703 = vadd.f32 0.0, %v1702
        %v1704 = vpop.f32.mrb[0].mxu0
        %v1705 = vadd.f32 0.0, %v1704
        %v1706 = vpop.f32.mrb[0].mxu0
        %v1707 = vadd.f32 0.0, %v1706
        %1708 = vmatprep.mubr.bf16.mxu0 %v1299
        %1709 = vmatmul.mubr.bf16.gmra.mrb[0].mxu0 %v1298
        %v1710 = vpop.f32.mrb[0].mxu0
        %v1711 = vadd.f32 0.0, %v1710
        %v1712 = vpop.f32.mrb[0].mxu0
        %v1713 = vadd.f32 0.0, %v1712
        %v1714 = vpop.f32.mrb[0].mxu0
        %v1715 = vadd.f32 0.0, %v1714
        %v1716 = vpop.f32.mrb[0].mxu0
        %v1717 = vadd.f32 0.0, %v1716
        %1718 = vmatprep.mubr.bf16.mxu0 %v1303
        %1719 = vmatmul.mubr.bf16.gmra.mrb[0].mxu0 %v1302
        %v1720 = vpop.f32.mrb[0].mxu0
        %v1721 = vadd.f32 0.0, %v1720
        %v1722 = vpop.f32.mrb[0].mxu0
        %v1723 = vadd.f32 0.0, %v1722
        %v1724 = vpop.f32.mrb[0].mxu0
        %v1725 = vadd.f32 0.0, %v1724
        %v1726 = vpop.f32.mrb[0].mxu0
        %v1727 = vadd.f32 0.0, %v1726
        %1728 = vmatprep.mubr.bf16.mxu0 %v1307
        %1729 = vmatmul.mubr.bf16.gmra.mrb[0].mxu0 %v1306
        %v1730 = vpop.f32.mrb[0].mxu0
        %v1731 = vadd.f32 0.0, %v1730
        %v1732 = vpop.f32.mrb[0].mxu0
        %v1733 = vadd.f32 0.0, %v1732
        %v1734 = vpop.f32.mrb[0].mxu0
        %v1735 = vadd.f32 0.0, %v1734
        %v1736 = vpop.f32.mrb[0].mxu0
        %v1737 = vadd.f32 0.0, %v1736
        %1738 = vmatprep.mubr.bf16.mxu0 %v1311
        %1739 = vmatmul.mubr.bf16.gmra.mrb[0].mxu0 %v1310
        %v1740 = vpop.f32.mrb[0].mxu0
        %v1741 = vadd.f32 0.0, %v1740
        %v1742 = vpop.f32.mrb[0].mxu0
        %v1743 = vadd.f32 0.0, %v1742
        %v1744 = vpop.f32.mrb[0].mxu0
        %v1745 = vadd.f32 0.0, %v1744
        %v1746 = vpop.f32.mrb[0].mxu0
        %v1747 = vadd.f32 0.0, %v1746
        %1748 = vmatprep.mubr.bf16.mxu0 %v1315
        %1749 = vmatmul.mubr.bf16.gmra.mrb[0].mxu0 %v1314
        %v1750 = vpop.f32.mrb[0].mxu0
        %v1751 = vadd.f32 0.0, %v1750
        %v1752 = vpop.f32.mrb[0].mxu0
        %v1753 = vadd.f32 0.0, %v1752
        %v1754 = vpop.f32.mrb[0].mxu0
        %v1755 = vadd.f32 0.0, %v1754
        %v1756 = vpop.f32.mrb[0].mxu0
        %v1757 = vadd.f32 0.0, %v1756
        %1758 = vmatprep.mubr.bf16.mxu0 %v1319
        %1759 = vmatmul.mubr.bf16.gmra.mrb[0].mxu0 %v1318
        %v1760 = vpop.f32.mrb[0].mxu0
        %v1761 = vadd.f32 0.0, %v1760
        %v1762 = vpop.f32.mrb[0].mxu0
        %v1763 = vadd.f32 0.0, %v1762
        %v1764 = vpop.f32.mrb[0].mxu0
        %v1765 = vadd.f32 0.0, %v1764
        %v1766 = vpop.f32.mrb[0].mxu0
        %v1767 = vadd.f32 0.0, %v1766
        %1768 = vmatprep.mubr.bf16.mxu0 %v1323
        %1769 = vmatmul.mubr.bf16.gmra.mrb[0].mxu0 %v1322
        %v1770 = vpop.f32.mrb[0].mxu0
        %v1771 = vadd.f32 0.0, %v1770
        %v1772 = vpop.f32.mrb[0].mxu0
        %v1773 = vadd.f32 0.0, %v1772
        %v1774 = vpop.f32.mrb[0].mxu0
        %v1775 = vadd.f32 0.0, %v1774
        %v1776 = vpop.f32.mrb[0].mxu0
        %v1777 = vadd.f32 0.0, %v1776
        %1778 = vmatprep.mubr.bf16.mxu0 %v1327
        %1779 = vmatmul.mubr.bf16.gmra.mrb[0].mxu0 %v1326
        %v1780 = vpop.f32.mrb[0].mxu0
        %v1781 = vadd.f32 0.0, %v1780
        %v1782 = vpop.f32.mrb[0].mxu0
        %v1783 = vadd.f32 0.0, %v1782
        %v1784 = vpop.f32.mrb[0].mxu0
        %v1785 = vadd.f32 0.0, %v1784
        %v1786 = vpop.f32.mrb[0].mxu0
        %v1787 = vadd.f32 0.0, %v1786
        %1788 = vmatprep.mubr.bf16.mxu0 %v1331
        %1789 = vmatmul.mubr.bf16.gmra.mrb[0].mxu0 %v1330
        %v1790 = vpop.f32.mrb[0].mxu0
        %v1791 = vadd.f32 0.0, %v1790
        %v1792 = vpop.f32.mrb[0].mxu0
        %v1793 = vadd.f32 0.0, %v1792
        %v1794 = vpop.f32.mrb[0].mxu0
        %v1795 = vadd.f32 0.0, %v1794
        %v1796 = vpop.f32.mrb[0].mxu0
        %v1797 = vadd.f32 0.0, %v1796
        %1798 = vmatprep.mubr.bf16.mxu0 %v1335
        %1799 = vmatmul.mubr.bf16.gmra.mrb[0].mxu0 %v1334
        %v1800 = vpop.f32.mrb[0].mxu0
        %v1801 = vadd.f32 0.0, %v1800
        %v1802 = vpop.f32.mrb[0].mxu0
        %v1803 = vadd.f32 0.0, %v1802
        %v1804 = vpop.f32.mrb[0].mxu0
        %v1805 = vadd.f32 0.0, %v1804
        %v1806 = vpop.f32.mrb[0].mxu0
        %v1807 = vadd.f32 0.0, %v1806
        %1808 = vmatprep.mubr.bf16.mxu0 %v1339
        %1809 = vmatmul.mubr.bf16.gmra.mrb[0].mxu0 %v1338
        %v1810 = vpop.f32.mrb[0].mxu0
        %v1811 = vadd.f32 0.0, %v1810
        %v1812 = vpop.f32.mrb[0].mxu0
        %v1813 = vadd.f32 0.0, %v1812
        %v1814 = vpop.f32.mrb[0].mxu0
        %v1815 = vadd.f32 0.0, %v1814
        %v1816 = vpop.f32.mrb[0].mxu0
        %v1817 = vadd.f32 0.0, %v1816
        %1818 = vmatprep.mubr.bf16.mxu0 %v1343
        %1819 = vmatmul.mubr.bf16.gmra.mrb[0].mxu0 %v1342
        %v1820 = vpop.f32.mrb[0].mxu0
        %v1821 = vadd.f32 0.0, %v1820
        %v1822 = vpop.f32.mrb[0].mxu0
        %v1823 = vadd.f32 0.0, %v1822
        %v1824 = vpop.f32.mrb[0].mxu0
        %v1825 = vadd.f32 0.0, %v1824
        %v1826 = vpop.f32.mrb[0].mxu0
        %v1827 = vadd.f32 0.0, %v1826
        %1828 = vmatprep.mubr.bf16.mxu0 %v1347
        %1829 = vmatmul.mubr.bf16.gmra.mrb[0].mxu0 %v1346
        %v1830 = vpop.f32.mrb[0].mxu0
        %v1831 = vadd.f32 0.0, %v1830
        %v1832 = vpop.f32.mrb[0].mxu0
        %v1833 = vadd.f32 0.0, %v1832
        %v1834 = vpop.f32.mrb[0].mxu0
        %v1835 = vadd.f32 0.0, %v1834
        %v1836 = vpop.f32.mrb[0].mxu0
        %v1837 = vadd.f32 0.0, %v1836
        %1838 = vmatprep.mubr.bf16.mxu0 %v1351
        %1839 = vmatmul.mubr.bf16.gmra.mrb[0].mxu0 %v1350
        %v1840 = vpop.f32.mrb[0].mxu0
        %v1841 = vadd.f32 0.0, %v1840
        %v1842 = vpop.f32.mrb[0].mxu0
        %v1843 = vadd.f32 0.0, %v1842
        %v1844 = vpop.f32.mrb[0].mxu0
        %v1845 = vadd.f32 0.0, %v1844
        %v1846 = vpop.f32.mrb[0].mxu0
        %v1847 = vadd.f32 0.0, %v1846
        %1848 = vdwg.mxu0
        %1849 = vmatprep.subr.bf16.mxu0 %v744
        %1850 = vmatpush1.bf16.xpose.msra.mxu0 %v682
        %1851 = vmatprep.subr.bf16.mxu0 %v748
        %1852 = vmatpush1.bf16.xpose.msra.mxu0 %v684
        %1853 = vmatprep.subr.bf16.mxu0 %v752
        %1854 = vmatpush1.bf16.xpose.msra.mxu0 %v686
        %1855 = vmatprep.subr.bf16.mxu0 %v756
        %1856 = vmatpush1.bf16.xpose.msra.mxu0 %v688
        %1857 = vmatprep.subr.bf16.mxu0 %v760
        %1858 = vmatpush1.bf16.xpose.msra.mxu0 %v690
        %1859 = vmatprep.subr.bf16.mxu0 %v764
        %1860 = vmatpush1.bf16.xpose.msra.mxu0 %v692
        %1861 = vmatprep.subr.bf16.mxu0 %v768
        %1862 = vmatpush1.bf16.xpose.msra.mxu0 %v694
        %1863 = vmatprep.subr.bf16.mxu0 %v772
        %1864 = vmatpush1.bf16.xpose.msra.mxu0 %v696
        %1865 = vmatprep.subr.bf16.mxu0 %v776
        %1866 = vmatpush1.bf16.xpose.msra.mxu0 %v698
        %1867 = vmatprep.subr.bf16.mxu0 %v780
        %1868 = vmatpush1.bf16.xpose.msra.mxu0 %v700
        %1869 = vmatprep.subr.bf16.mxu0 %v784
        %1870 = vmatpush1.bf16.xpose.msra.mxu0 %v702
        %1871 = vmatprep.subr.bf16.mxu0 %v788
        %1872 = vmatpush1.bf16.xpose.msra.mxu0 %v704
        %1873 = vmatprep.subr.bf16.mxu0 %v792
        %1874 = vmatpush1.bf16.xpose.msra.mxu0 %v706
        %1875 = vmatprep.subr.bf16.mxu0 %v796
        %1876 = vmatpush1.bf16.xpose.msra.mxu0 %v708
        %1877 = vmatprep.subr.bf16.mxu0 %v800
        %1878 = vmatpush1.bf16.xpose.msra.mxu0 %v710
        %1879 = vmatprep.subr.bf16.mxu0 %v809
        %1880 = vmatpush1.bf16.xpose.msra.mxu0 %v712
        %1881 = vmatprep.mubr.bf16.mxu0 %v1225
        %1882 = vmatmul.mubr.bf16.gmra.mrb[0].mxu0 %v1224
        %v1883 = vpop.f32.mrb[0].mxu0
        %v1884 = vadd.f32 %v1521, %v1883
        %v1885 = vpop.f32.mrb[0].mxu0
        %v1886 = vadd.f32 %v1523, %v1885
        %v1887 = vpop.f32.mrb[0].mxu0
        %v1888 = vadd.f32 %v1525, %v1887
        %v1889 = vpop.f32.mrb[0].mxu0
        %v1890 = vadd.f32 %v1527, %v1889
        %1891 = vmatprep.mubr.bf16.mxu0 %v1229
        %1892 = vmatmul.mubr.bf16.gmra.mrb[0].mxu0 %v1228
        %v1893 = vpop.f32.mrb[0].mxu0
        %v1894 = vadd.f32 %v1531, %v1893
        %v1895 = vpop.f32.mrb[0].mxu0
        %v1896 = vadd.f32 %v1533, %v1895
        %v1897 = vpop.f32.mrb[0].mxu0
        %v1898 = vadd.f32 %v1535, %v1897
        %v1899 = vpop.f32.mrb[0].mxu0
        %v1900 = vadd.f32 %v1537, %v1899
        %1901 = vmatprep.mubr.bf16.mxu0 %v1233
        %1902 = vmatmul.mubr.bf16.gmra.mrb[0].mxu0 %v1232
        %v1903 = vpop.f32.mrb[0].mxu0
        %v1904 = vadd.f32 %v1541, %v1903
        %v1905 = vpop.f32.mrb[0].mxu0
        %v1906 = vadd.f32 %v1543, %v1905
        %v1907 = vpop.f32.mrb[0].mxu0
        %v1908 = vadd.f32 %v1545, %v1907
        %v1909 = vpop.f32.mrb[0].mxu0
        %v1910 = vadd.f32 %v1547, %v1909
        %1911 = vmatprep.mubr.bf16.mxu0 %v1237
        %1912 = vmatmul.mubr.bf16.gmra.mrb[0].mxu0 %v1236
        %v1913 = vpop.f32.mrb[0].mxu0
        %v1914 = vadd.f32 %v1551, %v1913
        %v1915 = vpop.f32.mrb[0].mxu0
        %v1916 = vadd.f32 %v1553, %v1915
        %v1917 = vpop.f32.mrb[0].mxu0
        %v1918 = vadd.f32 %v1555, %v1917
        %v1919 = vpop.f32.mrb[0].mxu0
        %v1920 = vadd.f32 %v1557, %v1919
        %1921 = vmatprep.mubr.bf16.mxu0 %v1241
        %1922 = vmatmul.mubr.bf16.gmra.mrb[0].mxu0 %v1240
        %v1923 = vpop.f32.mrb[0].mxu0
        %v1924 = vadd.f32 %v1561, %v1923
        %v1925 = vpop.f32.mrb[0].mxu0
        %v1926 = vadd.f32 %v1563, %v1925
        %v1927 = vpop.f32.mrb[0].mxu0
        %v1928 = vadd.f32 %v1565, %v1927
        %v1929 = vpop.f32.mrb[0].mxu0
        %v1930 = vadd.f32 %v1567, %v1929
        %1931 = vmatprep.mubr.bf16.mxu0 %v1245
        %1932 = vmatmul.mubr.bf16.gmra.mrb[0].mxu0 %v1244
        %v1933 = vpop.f32.mrb[0].mxu0
        %v1934 = vadd.f32 %v1571, %v1933
        %v1935 = vpop.f32.mrb[0].mxu0
        %v1936 = vadd.f32 %v1573, %v1935
        %v1937 = vpop.f32.mrb[0].mxu0
        %v1938 = vadd.f32 %v1575, %v1937
        %v1939 = vpop.f32.mrb[0].mxu0
        %v1940 = vadd.f32 %v1577, %v1939
        %1941 = vmatprep.mubr.bf16.mxu0 %v1249
        %1942 = vmatmul.mubr.bf16.gmra.mrb[0].mxu0 %v1248
        %v1943 = vpop.f32.mrb[0].mxu0
        %v1944 = vadd.f32 %v1581, %v1943
        %v1945 = vpop.f32.mrb[0].mxu0
        %v1946 = vadd.f32 %v1583, %v1945
        %v1947 = vpop.f32.mrb[0].mxu0
        %v1948 = vadd.f32 %v1585, %v1947
        %v1949 = vpop.f32.mrb[0].mxu0
        %v1950 = vadd.f32 %v1587, %v1949
        %1951 = vmatprep.mubr.bf16.mxu0 %v1253
        %1952 = vmatmul.mubr.bf16.gmra.mrb[0].mxu0 %v1252
        %v1953 = vpop.f32.mrb[0].mxu0
        %v1954 = vadd.f32 %v1591, %v1953
        %v1955 = vpop.f32.mrb[0].mxu0
        %v1956 = vadd.f32 %v1593, %v1955
        %v1957 = vpop.f32.mrb[0].mxu0
        %v1958 = vadd.f32 %v1595, %v1957
        %v1959 = vpop.f32.mrb[0].mxu0
        %v1960 = vadd.f32 %v1597, %v1959
        %1961 = vmatprep.mubr.bf16.mxu0 %v1257
        %1962 = vmatmul.mubr.bf16.gmra.mrb[0].mxu0 %v1256
        %v1963 = vpop.f32.mrb[0].mxu0
        %v1964 = vadd.f32 %v1601, %v1963
        %v1965 = vpop.f32.mrb[0].mxu0
        %v1966 = vadd.f32 %v1603, %v1965
        %v1967 = vpop.f32.mrb[0].mxu0
        %v1968 = vadd.f32 %v1605, %v1967
        %v1969 = vpop.f32.mrb[0].mxu0
        %v1970 = vadd.f32 %v1607, %v1969
        %1971 = vmatprep.mubr.bf16.mxu0 %v1261
        %1972 = vmatmul.mubr.bf16.gmra.mrb[0].mxu0 %v1260
        %v1973 = vpop.f32.mrb[0].mxu0
        %v1974 = vadd.f32 %v1611, %v1973
        %v1975 = vpop.f32.mrb[0].mxu0
        %v1976 = vadd.f32 %v1613, %v1975
        %v1977 = vpop.f32.mrb[0].mxu0
        %v1978 = vadd.f32 %v1615, %v1977
        %v1979 = vpop.f32.mrb[0].mxu0
        %v1980 = vadd.f32 %v1617, %v1979
        %1981 = vmatprep.mubr.bf16.mxu0 %v1265
        %1982 = vmatmul.mubr.bf16.gmra.mrb[0].mxu0 %v1264
        %v1983 = vpop.f32.mrb[0].mxu0
        %v1984 = vadd.f32 %v1621, %v1983
        %v1985 = vpop.f32.mrb[0].mxu0
        %v1986 = vadd.f32 %v1623, %v1985
        %v1987 = vpop.f32.mrb[0].mxu0
        %v1988 = vadd.f32 %v1625, %v1987
        %v1989 = vpop.f32.mrb[0].mxu0
        %v1990 = vadd.f32 %v1627, %v1989
        %1991 = vmatprep.mubr.bf16.mxu0 %v1269
        %1992 = vmatmul.mubr.bf16.gmra.mrb[0].mxu0 %v1268
        %v1993 = vpop.f32.mrb[0].mxu0
        %v1994 = vadd.f32 %v1631, %v1993
        %v1995 = vpop.f32.mrb[0].mxu0
        %v1996 = vadd.f32 %v1633, %v1995
        %v1997 = vpop.f32.mrb[0].mxu0
        %v1998 = vadd.f32 %v1635, %v1997
        %v1999 = vpop.f32.mrb[0].mxu0
        %v2000 = vadd.f32 %v1637, %v1999
        %2001 = vmatprep.mubr.bf16.mxu0 %v1273
        %2002 = vmatmul.mubr.bf16.gmra.mrb[0].mxu0 %v1272
        %v2003 = vpop.f32.mrb[0].mxu0
        %v2004 = vadd.f32 %v1641, %v2003
        %v2005 = vpop.f32.mrb[0].mxu0
        %v2006 = vadd.f32 %v1643, %v2005
        %v2007 = vpop.f32.mrb[0].mxu0
        %v2008 = vadd.f32 %v1645, %v2007
        %v2009 = vpop.f32.mrb[0].mxu0
        %v2010 = vadd.f32 %v1647, %v2009
        %2011 = vmatprep.mubr.bf16.mxu0 %v1277
        %2012 = vmatmul.mubr.bf16.gmra.mrb[0].mxu0 %v1276
        %v2013 = vpop.f32.mrb[0].mxu0
        %v2014 = vadd.f32 %v1651, %v2013
        %v2015 = vpop.f32.mrb[0].mxu0
        %v2016 = vadd.f32 %v1653, %v2015
        %v2017 = vpop.f32.mrb[0].mxu0
        %v2018 = vadd.f32 %v1655, %v2017
        %v2019 = vpop.f32.mrb[0].mxu0
        %v2020 = vadd.f32 %v1657, %v2019
        %2021 = vmatprep.mubr.bf16.mxu0 %v1281
        %2022 = vmatmul.mubr.bf16.gmra.mrb[0].mxu0 %v1280
        %v2023 = vpop.f32.mrb[0].mxu0
        %v2024 = vadd.f32 %v1661, %v2023
        %v2025 = vpop.f32.mrb[0].mxu0
        %v2026 = vadd.f32 %v1663, %v2025
        %v2027 = vpop.f32.mrb[0].mxu0
        %v2028 = vadd.f32 %v1665, %v2027
        %v2029 = vpop.f32.mrb[0].mxu0
        %v2030 = vadd.f32 %v1667, %v2029
        %2031 = vmatprep.mubr.bf16.mxu0 %v1285
        %2032 = vmatmul.mubr.bf16.gmra.mrb[0].mxu0 %v1284
        %v2033 = vpop.f32.mrb[0].mxu0
        %v2034 = vadd.f32 %v1671, %v2033
        %v2035 = vpop.f32.mrb[0].mxu0
        %v2036 = vadd.f32 %v1673, %v2035
        %v2037 = vpop.f32.mrb[0].mxu0
        %v2038 = vadd.f32 %v1675, %v2037
        %v2039 = vpop.f32.mrb[0].mxu0
        %v2040 = vadd.f32 %v1677, %v2039
        %2041 = vmatprep.mubr.bf16.mxu0 %v1289
        %2042 = vmatmul.mubr.bf16.gmra.mrb[0].mxu0 %v1288
        %v2043 = vpop.f32.mrb[0].mxu0
        %v2044 = vadd.f32 %v1681, %v2043
        %v2045 = vpop.f32.mrb[0].mxu0
        %v2046 = vadd.f32 %v1683, %v2045
        %v2047 = vpop.f32.mrb[0].mxu0
        %v2048 = vadd.f32 %v1685, %v2047
        %v2049 = vpop.f32.mrb[0].mxu0
        %v2050 = vadd.f32 %v1687, %v2049
        %2051 = vmatprep.mubr.bf16.mxu0 %v1293
        %2052 = vmatmul.mubr.bf16.gmra.mrb[0].mxu0 %v1292
        %v2053 = vpop.f32.mrb[0].mxu0
        %v2054 = vadd.f32 %v1691, %v2053
        %v2055 = vpop.f32.mrb[0].mxu0
        %v2056 = vadd.f32 %v1693, %v2055
        %v2057 = vpop.f32.mrb[0].mxu0
        %v2058 = vadd.f32 %v1695, %v2057
        %v2059 = vpop.f32.mrb[0].mxu0
        %v2060 = vadd.f32 %v1697, %v2059
        %2061 = vmatprep.mubr.bf16.mxu0 %v1297
        %2062 = vmatmul.mubr.bf16.gmra.mrb[0].mxu0 %v1296
        %v2063 = vpop.f32.mrb[0].mxu0
        %v2064 = vadd.f32 %v1701, %v2063
        %v2065 = vpop.f32.mrb[0].mxu0
        %v2066 = vadd.f32 %v1703, %v2065
        %v2067 = vpop.f32.mrb[0].mxu0
        %v2068 = vadd.f32 %v1705, %v2067
        %v2069 = vpop.f32.mrb[0].mxu0
        %v2070 = vadd.f32 %v1707, %v2069
        %2071 = vmatprep.mubr.bf16.mxu0 %v1301
        %2072 = vmatmul.mubr.bf16.gmra.mrb[0].mxu0 %v1300
        %v2073 = vpop.f32.mrb[0].mxu0
        %v2074 = vadd.f32 %v1711, %v2073
        %v2075 = vpop.f32.mrb[0].mxu0
        %v2076 = vadd.f32 %v1713, %v2075
        %v2077 = vpop.f32.mrb[0].mxu0
        %v2078 = vadd.f32 %v1715, %v2077
        %v2079 = vpop.f32.mrb[0].mxu0
        %v2080 = vadd.f32 %v1717, %v2079
        %2081 = vmatprep.mubr.bf16.mxu0 %v1305
        %2082 = vmatmul.mubr.bf16.gmra.mrb[0].mxu0 %v1304
        %v2083 = vpop.f32.mrb[0].mxu0
        %v2084 = vadd.f32 %v1721, %v2083
        %v2085 = vpop.f32.mrb[0].mxu0
        %v2086 = vadd.f32 %v1723, %v2085
        %v2087 = vpop.f32.mrb[0].mxu0
        %v2088 = vadd.f32 %v1725, %v2087
        %v2089 = vpop.f32.mrb[0].mxu0
        %v2090 = vadd.f32 %v1727, %v2089
        %2091 = vmatprep.mubr.bf16.mxu0 %v1309
        %2092 = vmatmul.mubr.bf16.gmra.mrb[0].mxu0 %v1308
        %v2093 = vpop.f32.mrb[0].mxu0
        %v2094 = vadd.f32 %v1731, %v2093
        %v2095 = vpop.f32.mrb[0].mxu0
        %v2096 = vadd.f32 %v1733, %v2095
        %v2097 = vpop.f32.mrb[0].mxu0
        %v2098 = vadd.f32 %v1735, %v2097
        %v2099 = vpop.f32.mrb[0].mxu0
        %v2100 = vadd.f32 %v1737, %v2099
        %2101 = vmatprep.mubr.bf16.mxu0 %v1313
        %2102 = vmatmul.mubr.bf16.gmra.mrb[0].mxu0 %v1312
        %v2103 = vpop.f32.mrb[0].mxu0
        %v2104 = vadd.f32 %v1741, %v2103
        %v2105 = vpop.f32.mrb[0].mxu0
        %v2106 = vadd.f32 %v1743, %v2105
        %v2107 = vpop.f32.mrb[0].mxu0
        %v2108 = vadd.f32 %v1745, %v2107
        %v2109 = vpop.f32.mrb[0].mxu0
        %v2110 = vadd.f32 %v1747, %v2109
        %2111 = vmatprep.mubr.bf16.mxu0 %v1317
        %2112 = vmatmul.mubr.bf16.gmra.mrb[0].mxu0 %v1316
        %v2113 = vpop.f32.mrb[0].mxu0
        %v2114 = vadd.f32 %v1751, %v2113
        %v2115 = vpop.f32.mrb[0].mxu0
        %v2116 = vadd.f32 %v1753, %v2115
        %v2117 = vpop.f32.mrb[0].mxu0
        %v2118 = vadd.f32 %v1755, %v2117
        %v2119 = vpop.f32.mrb[0].mxu0
        %v2120 = vadd.f32 %v1757, %v2119
        %2121 = vmatprep.mubr.bf16.mxu0 %v1321
        %2122 = vmatmul.mubr.bf16.gmra.mrb[0].mxu0 %v1320
        %v2123 = vpop.f32.mrb[0].mxu0
        %v2124 = vadd.f32 %v1761, %v2123
        %v2125 = vpop.f32.mrb[0].mxu0
        %v2126 = vadd.f32 %v1763, %v2125
        %v2127 = vpop.f32.mrb[0].mxu0
        %v2128 = vadd.f32 %v1765, %v2127
        %v2129 = vpop.f32.mrb[0].mxu0
        %v2130 = vadd.f32 %v1767, %v2129
        %2131 = vmatprep.mubr.bf16.mxu0 %v1325
        %2132 = vmatmul.mubr.bf16.gmra.mrb[0].mxu0 %v1324
        %v2133 = vpop.f32.mrb[0].mxu0
        %v2134 = vadd.f32 %v1771, %v2133
        %v2135 = vpop.f32.mrb[0].mxu0
        %v2136 = vadd.f32 %v1773, %v2135
        %v2137 = vpop.f32.mrb[0].mxu0
        %v2138 = vadd.f32 %v1775, %v2137
        %v2139 = vpop.f32.mrb[0].mxu0
        %v2140 = vadd.f32 %v1777, %v2139
        %2141 = vmatprep.mubr.bf16.mxu0 %v1329
        %2142 = vmatmul.mubr.bf16.gmra.mrb[0].mxu0 %v1328
        %v2143 = vpop.f32.mrb[0].mxu0
        %v2144 = vadd.f32 %v1781, %v2143
        %v2145 = vpop.f32.mrb[0].mxu0
        %v2146 = vadd.f32 %v1783, %v2145
        %v2147 = vpop.f32.mrb[0].mxu0
        %v2148 = vadd.f32 %v1785, %v2147
        %v2149 = vpop.f32.mrb[0].mxu0
        %v2150 = vadd.f32 %v1787, %v2149
        %2151 = vmatprep.mubr.bf16.mxu0 %v1333
        %2152 = vmatmul.mubr.bf16.gmra.mrb[0].mxu0 %v1332
        %v2153 = vpop.f32.mrb[0].mxu0
        %v2154 = vadd.f32 %v1791, %v2153
        %v2155 = vpop.f32.mrb[0].mxu0
        %v2156 = vadd.f32 %v1793, %v2155
        %v2157 = vpop.f32.mrb[0].mxu0
        %v2158 = vadd.f32 %v1795, %v2157
        %v2159 = vpop.f32.mrb[0].mxu0
        %v2160 = vadd.f32 %v1797, %v2159
        %2161 = vmatprep.mubr.bf16.mxu0 %v1337
        %2162 = vmatmul.mubr.bf16.gmra.mrb[0].mxu0 %v1336
        %v2163 = vpop.f32.mrb[0].mxu0
        %v2164 = vadd.f32 %v1801, %v2163
        %v2165 = vpop.f32.mrb[0].mxu0
        %v2166 = vadd.f32 %v1803, %v2165
        %v2167 = vpop.f32.mrb[0].mxu0
        %v2168 = vadd.f32 %v1805, %v2167
        %v2169 = vpop.f32.mrb[0].mxu0
        %v2170 = vadd.f32 %v1807, %v2169
        %2171 = vmatprep.mubr.bf16.mxu0 %v1341
        %2172 = vmatmul.mubr.bf16.gmra.mrb[0].mxu0 %v1340
        %v2173 = vpop.f32.mrb[0].mxu0
        %v2174 = vadd.f32 %v1811, %v2173
        %v2175 = vpop.f32.mrb[0].mxu0
        %v2176 = vadd.f32 %v1813, %v2175
        %v2177 = vpop.f32.mrb[0].mxu0
        %v2178 = vadd.f32 %v1815, %v2177
        %v2179 = vpop.f32.mrb[0].mxu0
        %v2180 = vadd.f32 %v1817, %v2179
        %2181 = vmatprep.mubr.bf16.mxu0 %v1345
        %2182 = vmatmul.mubr.bf16.gmra.mrb[0].mxu0 %v1344
        %v2183 = vpop.f32.mrb[0].mxu0
        %v2184 = vadd.f32 %v1821, %v2183
        %v2185 = vpop.f32.mrb[0].mxu0
        %v2186 = vadd.f32 %v1823, %v2185
        %v2187 = vpop.f32.mrb[0].mxu0
        %v2188 = vadd.f32 %v1825, %v2187
        %v2189 = vpop.f32.mrb[0].mxu0
        %v2190 = vadd.f32 %v1827, %v2189
        %2191 = vmatprep.mubr.bf16.mxu0 %v1349
        %2192 = vmatmul.mubr.bf16.gmra.mrb[0].mxu0 %v1348
        %v2193 = vpop.f32.mrb[0].mxu0
        %v2194 = vadd.f32 %v1831, %v2193
        %v2195 = vpop.f32.mrb[0].mxu0
        %v2196 = vadd.f32 %v1833, %v2195
        %v2197 = vpop.f32.mrb[0].mxu0
        %v2198 = vadd.f32 %v1835, %v2197
        %v2199 = vpop.f32.mrb[0].mxu0
        %v2200 = vadd.f32 %v1837, %v2199
        %2201 = vmatprep.mubr.bf16.mxu0 %v1353
        %2202 = vmatmul.mubr.bf16.gmra.mrb[0].mxu0 %v1352
        %v2203 = vpop.f32.mrb[0].mxu0
        %v2204 = vadd.f32 %v1841, %v2203
        %v2205 = vpop.f32.mrb[0].mxu0
        %v2206 = vadd.f32 %v1843, %v2205
        %v2207 = vpop.f32.mrb[0].mxu0
        %v2208 = vadd.f32 %v1845, %v2207
        %v2209 = vpop.f32.mrb[0].mxu0
        %v2210 = vadd.f32 %v1847, %v2209
        %2211 = vdwg.mxu0
        %v2212 = vmul.f32 %v1884, %v1884
        %v2213 = vmul.f32 %v1886, %v1886
        %v2214 = vmul.f32 %v1888, %v1888
        %v2215 = vmul.f32 %v1890, %v1890
        %v2216 = vmul.f32 %v1894, %v1894
        %v2217 = vmul.f32 %v1896, %v1896
        %v2218 = vmul.f32 %v1898, %v1898
        %v2219 = vmul.f32 %v1900, %v1900
        %v2220 = vmul.f32 %v1904, %v1904
        %v2221 = vmul.f32 %v1906, %v1906
        %v2222 = vmul.f32 %v1908, %v1908
        %v2223 = vmul.f32 %v1910, %v1910
        %v2224 = vmul.f32 %v1914, %v1914
        %v2225 = vmul.f32 %v1916, %v1916
        %v2226 = vmul.f32 %v1918, %v1918
        %v2227 = vmul.f32 %v1920, %v1920
        %v2228 = vmul.f32 %v1924, %v1924
        %v2229 = vmul.f32 %v1926, %v1926
        %v2230 = vmul.f32 %v1928, %v1928
        %v2231 = vmul.f32 %v1930, %v1930
        %v2232 = vmul.f32 %v1934, %v1934
        %v2233 = vmul.f32 %v1936, %v1936
        %v2234 = vmul.f32 %v1938, %v1938
        %v2235 = vmul.f32 %v1940, %v1940
        %v2236 = vmul.f32 %v1944, %v1944
        %v2237 = vmul.f32 %v1946, %v1946
        %v2238 = vmul.f32 %v1948, %v1948
        %v2239 = vmul.f32 %v1950, %v1950
        %v2240 = vmul.f32 %v1954, %v1954
        %v2241 = vmul.f32 %v1956, %v1956
        %v2242 = vmul.f32 %v1958, %v1958
        %v2243 = vmul.f32 %v1960, %v1960
        %v2244 = vmul.f32 %v1964, %v1964
        %v2245 = vmul.f32 %v1966, %v1966
        %v2246 = vmul.f32 %v1968, %v1968
        %v2247 = vmul.f32 %v1970, %v1970
        %v2248 = vmul.f32 %v1974, %v1974
        %v2249 = vmul.f32 %v1976, %v1976
        %v2250 = vmul.f32 %v1978, %v1978
        %v2251 = vmul.f32 %v1980, %v1980
        %v2252 = vmul.f32 %v1984, %v1984
        %v2253 = vmul.f32 %v1986, %v1986
        %v2254 = vmul.f32 %v1988, %v1988
        %v2255 = vmul.f32 %v1990, %v1990
        %v2256 = vmul.f32 %v1994, %v1994
        %v2257 = vmul.f32 %v1996, %v1996
        %v2258 = vmul.f32 %v1998, %v1998
        %v2259 = vmul.f32 %v2000, %v2000
        %v2260 = vmul.f32 %v2004, %v2004
        %v2261 = vmul.f32 %v2006, %v2006
        %v2262 = vmul.f32 %v2008, %v2008
        %v2263 = vmul.f32 %v2010, %v2010
        %v2264 = vmul.f32 %v2014, %v2014
        %v2265 = vmul.f32 %v2016, %v2016
        %v2266 = vmul.f32 %v2018, %v2018
        %v2267 = vmul.f32 %v2020, %v2020
        %v2268 = vmul.f32 %v2024, %v2024
        %v2269 = vmul.f32 %v2026, %v2026
        %v2270 = vmul.f32 %v2028, %v2028
        %v2271 = vmul.f32 %v2030, %v2030
        %v2272 = vmul.f32 %v2034, %v2034
        %v2273 = vmul.f32 %v2036, %v2036
        %v2274 = vmul.f32 %v2038, %v2038
        %v2275 = vmul.f32 %v2040, %v2040
        %v2276 = vmul.f32 %v2044, %v2044
        %v2277 = vmul.f32 %v2046, %v2046
        %v2278 = vmul.f32 %v2048, %v2048
        %v2279 = vmul.f32 %v2050, %v2050
        %v2280 = vmul.f32 %v2054, %v2054
        %v2281 = vmul.f32 %v2056, %v2056
        %v2282 = vmul.f32 %v2058, %v2058
        %v2283 = vmul.f32 %v2060, %v2060
        %v2284 = vmul.f32 %v2064, %v2064
        %v2285 = vmul.f32 %v2066, %v2066
        %v2286 = vmul.f32 %v2068, %v2068
        %v2287 = vmul.f32 %v2070, %v2070
        %v2288 = vmul.f32 %v2074, %v2074
        %v2289 = vmul.f32 %v2076, %v2076
        %v2290 = vmul.f32 %v2078, %v2078
        %v2291 = vmul.f32 %v2080, %v2080
        %v2292 = vmul.f32 %v2084, %v2084
        %v2293 = vmul.f32 %v2086, %v2086
        %v2294 = vmul.f32 %v2088, %v2088
        %v2295 = vmul.f32 %v2090, %v2090
        %v2296 = vmul.f32 %v2094, %v2094
        %v2297 = vmul.f32 %v2096, %v2096
        %v2298 = vmul.f32 %v2098, %v2098
        %v2299 = vmul.f32 %v2100, %v2100
        %v2300 = vmul.f32 %v2104, %v2104
        %v2301 = vmul.f32 %v2106, %v2106
        %v2302 = vmul.f32 %v2108, %v2108
        %v2303 = vmul.f32 %v2110, %v2110
        %v2304 = vmul.f32 %v2114, %v2114
        %v2305 = vmul.f32 %v2116, %v2116
        %v2306 = vmul.f32 %v2118, %v2118
        %v2307 = vmul.f32 %v2120, %v2120
        %v2308 = vmul.f32 %v2124, %v2124
        %v2309 = vmul.f32 %v2126, %v2126
        %v2310 = vmul.f32 %v2128, %v2128
        %v2311 = vmul.f32 %v2130, %v2130
        %v2312 = vmul.f32 %v2134, %v2134
        %v2313 = vmul.f32 %v2136, %v2136
        %v2314 = vmul.f32 %v2138, %v2138
        %v2315 = vmul.f32 %v2140, %v2140
        %v2316 = vmul.f32 %v2144, %v2144
        %v2317 = vmul.f32 %v2146, %v2146
        %v2318 = vmul.f32 %v2148, %v2148
        %v2319 = vmul.f32 %v2150, %v2150
        %v2320 = vmul.f32 %v2154, %v2154
        %v2321 = vmul.f32 %v2156, %v2156
        %v2322 = vmul.f32 %v2158, %v2158
        %v2323 = vmul.f32 %v2160, %v2160
        %v2324 = vmul.f32 %v2164, %v2164
        %v2325 = vmul.f32 %v2166, %v2166
        %v2326 = vmul.f32 %v2168, %v2168
        %v2327 = vmul.f32 %v2170, %v2170
        %v2328 = vmul.f32 %v2174, %v2174
        %v2329 = vmul.f32 %v2176, %v2176
        %v2330 = vmul.f32 %v2178, %v2178
        %v2331 = vmul.f32 %v2180, %v2180
        %v2332 = vmul.f32 %v2184, %v2184
        %v2333 = vmul.f32 %v2186, %v2186
        %v2334 = vmul.f32 %v2188, %v2188
        %v2335 = vmul.f32 %v2190, %v2190
        %v2336 = vmul.f32 %v2194, %v2194
        %v2337 = vmul.f32 %v2196, %v2196
        %v2338 = vmul.f32 %v2198, %v2198
        %v2339 = vmul.f32 %v2200, %v2200
        %v2340 = vmul.f32 %v2204, %v2204
        %v2341 = vmul.f32 %v2206, %v2206
        %v2342 = vmul.f32 %v2208, %v2208
        %v2343 = vmul.f32 %v2210, %v2210
        %v2344 = vadd.f32 %v2212, %v2278
        %v2345 = vadd.f32 %v2213, %v2279
        %v2346 = vadd.f32 %v2214, %v2280
        %v2347 = vadd.f32 %v2215, %v2281
        %v2348 = vadd.f32 %v2216, %v2282
        %v2349 = vadd.f32 %v2217, %v2283
        %v2350 = vadd.f32 %v2218, %v2284
        %v2351 = vadd.f32 %v2219, %v2285
        %v2352 = vadd.f32 %v2220, %v2286
        %v2353 = vadd.f32 %v2221, %v2287
        %v2354 = vadd.f32 %v2222, %v2288
        %v2355 = vadd.f32 %v2223, %v2289
        %v2356 = vadd.f32 %v2224, %v2290
        %v2357 = vadd.f32 %v2225, %v2291
        %v2358 = vadd.f32 %v2226, %v2292
        %v2359 = vadd.f32 %v2227, %v2293
        %v2360 = vadd.f32 %v2228, %v2294
        %v2361 = vadd.f32 %v2229, %v2295
        %v2362 = vadd.f32 %v2230, %v2296
        %v2363 = vadd.f32 %v2231, %v2297
        %v2364 = vadd.f32 %v2232, %v2298
        %v2365 = vadd.f32 %v2233, %v2299
        %v2366 = vadd.f32 %v2234, %v2300
        %v2367 = vadd.f32 %v2235, %v2301
        %v2368 = vadd.f32 %v2236, %v2302
        %v2369 = vadd.f32 %v2237, %v2303
        %v2370 = vadd.f32 %v2238, %v2304
        %v2371 = vadd.f32 %v2239, %v2305
        %v2372 = vadd.f32 %v2240, %v2306
        %v2373 = vadd.f32 %v2241, %v2307
        %v2374 = vadd.f32 %v2242, %v2308
        %v2375 = vadd.f32 %v2243, %v2309
        %v2376 = vadd.f32 %v2244, %v2310
        %v2377 = vadd.f32 %v2245, %v2311
        %v2378 = vadd.f32 %v2246, %v2312
        %v2379 = vadd.f32 %v2247, %v2313
        %v2380 = vadd.f32 %v2248, %v2314
        %v2381 = vadd.f32 %v2249, %v2315
        %v2382 = vadd.f32 %v2250, %v2316
        %v2383 = vadd.f32 %v2251, %v2317
        %v2384 = vadd.f32 %v2252, %v2318
        %v2385 = vadd.f32 %v2253, %v2319
        %v2386 = vadd.f32 %v2254, %v2320
        %v2387 = vadd.f32 %v2255, %v2321
        %v2388 = vadd.f32 %v2256, %v2322
        %v2389 = vadd.f32 %v2257, %v2323
        %v2390 = vadd.f32 %v2258, %v2324
        %v2391 = vadd.f32 %v2259, %v2325
        %v2392 = vadd.f32 %v2260, %v2326
        %v2393 = vadd.f32 %v2261, %v2327
        %v2394 = vadd.f32 %v2262, %v2328
        %v2395 = vadd.f32 %v2263, %v2329
        %v2396 = vadd.f32 %v2264, %v2330
        %v2397 = vadd.f32 %v2265, %v2331
        %v2398 = vadd.f32 %v2266, %v2332
        %v2399 = vadd.f32 %v2267, %v2333
        %v2400 = vadd.f32 %v2268, %v2334
        %v2401 = vadd.f32 %v2269, %v2335
        %v2402 = vadd.f32 %v2270, %v2336
        %v2403 = vadd.f32 %v2271, %v2337
        %v2404 = vadd.f32 %v2272, %v2338
        %v2405 = vadd.f32 %v2273, %v2339
        %v2406 = vadd.f32 %v2274, %v2340
        %v2407 = vadd.f32 %v2275, %v2341
        %v2408 = vadd.f32 %v2276, %v2342
        %v2409 = vadd.f32 %v2277, %v2343
        %v2410 = vadd.f32 %v2344, 1e-06
        %v2411 = vadd.f32 %v2345, 1e-06
        %v2412 = vadd.f32 %v2346, 1e-06
        %v2413 = vadd.f32 %v2347, 1e-06
        %v2414 = vadd.f32 %v2348, 1e-06
        %v2415 = vadd.f32 %v2349, 1e-06
        %v2416 = vadd.f32 %v2350, 1e-06
        %v2417 = vadd.f32 %v2351, 1e-06
        %v2418 = vadd.f32 %v2352, 1e-06
        %v2419 = vadd.f32 %v2353, 1e-06
        %v2420 = vadd.f32 %v2354, 1e-06
        %v2421 = vadd.f32 %v2355, 1e-06
        %v2422 = vadd.f32 %v2356, 1e-06
        %v2423 = vadd.f32 %v2357, 1e-06
        %v2424 = vadd.f32 %v2358, 1e-06
        %v2425 = vadd.f32 %v2359, 1e-06
        %v2426 = vadd.f32 %v2360, 1e-06
        %v2427 = vadd.f32 %v2361, 1e-06
        %v2428 = vadd.f32 %v2362, 1e-06
        %v2429 = vadd.f32 %v2363, 1e-06
        %v2430 = vadd.f32 %v2364, 1e-06
        %v2431 = vadd.f32 %v2365, 1e-06
        %v2432 = vadd.f32 %v2366, 1e-06
        %v2433 = vadd.f32 %v2367, 1e-06
        %v2434 = vadd.f32 %v2368, 1e-06
        %v2435 = vadd.f32 %v2369, 1e-06
        %v2436 = vadd.f32 %v2370, 1e-06
        %v2437 = vadd.f32 %v2371, 1e-06
        %v2438 = vadd.f32 %v2372, 1e-06
        %v2439 = vadd.f32 %v2373, 1e-06
        %v2440 = vadd.f32 %v2374, 1e-06
        %v2441 = vadd.f32 %v2375, 1e-06
        %v2442 = vadd.f32 %v2376, 1e-06
        %v2443 = vadd.f32 %v2377, 1e-06
        %v2444 = vadd.f32 %v2378, 1e-06
        %v2445 = vadd.f32 %v2379, 1e-06
        %v2446 = vadd.f32 %v2380, 1e-06
        %v2447 = vadd.f32 %v2381, 1e-06
        %v2448 = vadd.f32 %v2382, 1e-06
        %v2449 = vadd.f32 %v2383, 1e-06
        %v2450 = vadd.f32 %v2384, 1e-06
        %v2451 = vadd.f32 %v2385, 1e-06
        %v2452 = vadd.f32 %v2386, 1e-06
        %v2453 = vadd.f32 %v2387, 1e-06
        %v2454 = vadd.f32 %v2388, 1e-06
        %v2455 = vadd.f32 %v2389, 1e-06
        %v2456 = vadd.f32 %v2390, 1e-06
        %v2457 = vadd.f32 %v2391, 1e-06
        %v2458 = vadd.f32 %v2392, 1e-06
        %v2459 = vadd.f32 %v2393, 1e-06
        %v2460 = vadd.f32 %v2394, 1e-06
        %v2461 = vadd.f32 %v2395, 1e-06
        %v2462 = vadd.f32 %v2396, 1e-06
        %v2463 = vadd.f32 %v2397, 1e-06
        %v2464 = vadd.f32 %v2398, 1e-06
        %v2465 = vadd.f32 %v2399, 1e-06
        %v2466 = vadd.f32 %v2400, 1e-06
        %v2467 = vadd.f32 %v2401, 1e-06
        %v2468 = vadd.f32 %v2402, 1e-06
        %v2469 = vadd.f32 %v2403, 1e-06
        %v2470 = vadd.f32 %v2404, 1e-06
        %v2471 = vadd.f32 %v2405, 1e-06
        %v2472 = vadd.f32 %v2406, 1e-06
        %v2473 = vadd.f32 %v2407, 1e-06
        %v2474 = vadd.f32 %v2408, 1e-06
        %v2475 = vadd.f32 %v2409, 1e-06
        %v2476 = vrsqrt.pop %v2410
        %v2477 = vmul.f32 %v2410, %v2476
        %vm2478 = vcmp.eq.f32.partialorder %v2410, inf
        %v2479 = vsel %vm2478, %v2410, %v2477
        %vm2480 = vcmp.eq.f32.partialorder %v2410, 0.0
        %v2481 = vand.u32 %v2410, 2147483648
        %v2482 = vsel %vm2480, %v2481, %v2479
        %v2483 = vrsqrt.pop %v2411
        %v2484 = vmul.f32 %v2411, %v2483
        %vm2485 = vcmp.eq.f32.partialorder %v2411, inf
        %v2486 = vsel %vm2485, %v2411, %v2484
        %vm2487 = vcmp.eq.f32.partialorder %v2411, 0.0
        %v2488 = vand.u32 %v2411, 2147483648
        %v2489 = vsel %vm2487, %v2488, %v2486
        %v2490 = vrsqrt.pop %v2412
        %v2491 = vmul.f32 %v2412, %v2490
        %vm2492 = vcmp.eq.f32.partialorder %v2412, inf
        %v2493 = vsel %vm2492, %v2412, %v2491
        %vm2494 = vcmp.eq.f32.partialorder %v2412, 0.0
        %v2495 = vand.u32 %v2412, 2147483648
        %v2496 = vsel %vm2494, %v2495, %v2493
        %v2497 = vrsqrt.pop %v2413
        %v2498 = vmul.f32 %v2413, %v2497
        %vm2499 = vcmp.eq.f32.partialorder %v2413, inf
        %v2500 = vsel %vm2499, %v2413, %v2498
        %vm2501 = vcmp.eq.f32.partialorder %v2413, 0.0
        %v2502 = vand.u32 %v2413, 2147483648
        %v2503 = vsel %vm2501, %v2502, %v2500
        %v2504 = vrsqrt.pop %v2414
        %v2505 = vmul.f32 %v2414, %v2504
        %vm2506 = vcmp.eq.f32.partialorder %v2414, inf
        %v2507 = vsel %vm2506, %v2414, %v2505
        %vm2508 = vcmp.eq.f32.partialorder %v2414, 0.0
        %v2509 = vand.u32 %v2414, 2147483648
        %v2510 = vsel %vm2508, %v2509, %v2507
        %v2511 = vrsqrt.pop %v2415
        %v2512 = vmul.f32 %v2415, %v2511
        %vm2513 = vcmp.eq.f32.partialorder %v2415, inf
        %v2514 = vsel %vm2513, %v2415, %v2512
        %vm2515 = vcmp.eq.f32.partialorder %v2415, 0.0
        %v2516 = vand.u32 %v2415, 2147483648
        %v2517 = vsel %vm2515, %v2516, %v2514
        %v2518 = vrsqrt.pop %v2416
        %v2519 = vmul.f32 %v2416, %v2518
        %vm2520 = vcmp.eq.f32.partialorder %v2416, inf
        %v2521 = vsel %vm2520, %v2416, %v2519
        %vm2522 = vcmp.eq.f32.partialorder %v2416, 0.0
        %v2523 = vand.u32 %v2416, 2147483648
        %v2524 = vsel %vm2522, %v2523, %v2521
        %v2525 = vrsqrt.pop %v2417
        %v2526 = vmul.f32 %v2417, %v2525
        %vm2527 = vcmp.eq.f32.partialorder %v2417, inf
        %v2528 = vsel %vm2527, %v2417, %v2526
        %vm2529 = vcmp.eq.f32.partialorder %v2417, 0.0
        %v2530 = vand.u32 %v2417, 2147483648
        %v2531 = vsel %vm2529, %v2530, %v2528
        %v2532 = vrsqrt.pop %v2418
        %v2533 = vmul.f32 %v2418, %v2532
        %vm2534 = vcmp.eq.f32.partialorder %v2418, inf
        %v2535 = vsel %vm2534, %v2418, %v2533
        %vm2536 = vcmp.eq.f32.partialorder %v2418, 0.0
        %v2537 = vand.u32 %v2418, 2147483648
        %v2538 = vsel %vm2536, %v2537, %v2535
        %v2539 = vrsqrt.pop %v2419
        %v2540 = vmul.f32 %v2419, %v2539
        %vm2541 = vcmp.eq.f32.partialorder %v2419, inf
        %v2542 = vsel %vm2541, %v2419, %v2540
        %vm2543 = vcmp.eq.f32.partialorder %v2419, 0.0
        %v2544 = vand.u32 %v2419, 2147483648
        %v2545 = vsel %vm2543, %v2544, %v2542
        %v2546 = vrsqrt.pop %v2420
        %v2547 = vmul.f32 %v2420, %v2546
        %vm2548 = vcmp.eq.f32.partialorder %v2420, inf
        %v2549 = vsel %vm2548, %v2420, %v2547
        %vm2550 = vcmp.eq.f32.partialorder %v2420, 0.0
        %v2551 = vand.u32 %v2420, 2147483648
        %v2552 = vsel %vm2550, %v2551, %v2549
        %v2553 = vrsqrt.pop %v2421
        %v2554 = vmul.f32 %v2421, %v2553
        %vm2555 = vcmp.eq.f32.partialorder %v2421, inf
        %v2556 = vsel %vm2555, %v2421, %v2554
        %vm2557 = vcmp.eq.f32.partialorder %v2421, 0.0
        %v2558 = vand.u32 %v2421, 2147483648
        %v2559 = vsel %vm2557, %v2558, %v2556
        %v2560 = vrsqrt.pop %v2422
        %v2561 = vmul.f32 %v2422, %v2560
        %vm2562 = vcmp.eq.f32.partialorder %v2422, inf
        %v2563 = vsel %vm2562, %v2422, %v2561
        %vm2564 = vcmp.eq.f32.partialorder %v2422, 0.0
        %v2565 = vand.u32 %v2422, 2147483648
        %v2566 = vsel %vm2564, %v2565, %v2563
        %v2567 = vrsqrt.pop %v2423
        %v2568 = vmul.f32 %v2423, %v2567
        %vm2569 = vcmp.eq.f32.partialorder %v2423, inf
        %v2570 = vsel %vm2569, %v2423, %v2568
        %vm2571 = vcmp.eq.f32.partialorder %v2423, 0.0
        %v2572 = vand.u32 %v2423, 2147483648
        %v2573 = vsel %vm2571, %v2572, %v2570
        %v2574 = vrsqrt.pop %v2424
        %v2575 = vmul.f32 %v2424, %v2574
        %vm2576 = vcmp.eq.f32.partialorder %v2424, inf
        %v2577 = vsel %vm2576, %v2424, %v2575
        %vm2578 = vcmp.eq.f32.partialorder %v2424, 0.0
        %v2579 = vand.u32 %v2424, 2147483648
        %v2580 = vsel %vm2578, %v2579, %v2577
        %v2581 = vrsqrt.pop %v2425
        %v2582 = vmul.f32 %v2425, %v2581
        %vm2583 = vcmp.eq.f32.partialorder %v2425, inf
        %v2584 = vsel %vm2583, %v2425, %v2582
        %vm2585 = vcmp.eq.f32.partialorder %v2425, 0.0
        %v2586 = vand.u32 %v2425, 2147483648
        %v2587 = vsel %vm2585, %v2586, %v2584
        %v2588 = vrsqrt.pop %v2426
        %v2589 = vmul.f32 %v2426, %v2588
        %vm2590 = vcmp.eq.f32.partialorder %v2426, inf
        %v2591 = vsel %vm2590, %v2426, %v2589
        %vm2592 = vcmp.eq.f32.partialorder %v2426, 0.0
        %v2593 = vand.u32 %v2426, 2147483648
        %v2594 = vsel %vm2592, %v2593, %v2591
        %v2595 = vrsqrt.pop %v2427
        %v2596 = vmul.f32 %v2427, %v2595
        %vm2597 = vcmp.eq.f32.partialorder %v2427, inf
        %v2598 = vsel %vm2597, %v2427, %v2596
        %vm2599 = vcmp.eq.f32.partialorder %v2427, 0.0
        %v2600 = vand.u32 %v2427, 2147483648
        %v2601 = vsel %vm2599, %v2600, %v2598
        %v2602 = vrsqrt.pop %v2428
        %v2603 = vmul.f32 %v2428, %v2602
        %vm2604 = vcmp.eq.f32.partialorder %v2428, inf
        %v2605 = vsel %vm2604, %v2428, %v2603
        %vm2606 = vcmp.eq.f32.partialorder %v2428, 0.0
        %v2607 = vand.u32 %v2428, 2147483648
        %v2608 = vsel %vm2606, %v2607, %v2605
        %v2609 = vrsqrt.pop %v2429
        %v2610 = vmul.f32 %v2429, %v2609
        %vm2611 = vcmp.eq.f32.partialorder %v2429, inf
        %v2612 = vsel %vm2611, %v2429, %v2610
        %vm2613 = vcmp.eq.f32.partialorder %v2429, 0.0
        %v2614 = vand.u32 %v2429, 2147483648
        %v2615 = vsel %vm2613, %v2614, %v2612
        %v2616 = vrsqrt.pop %v2430
        %v2617 = vmul.f32 %v2430, %v2616
        %vm2618 = vcmp.eq.f32.partialorder %v2430, inf
        %v2619 = vsel %vm2618, %v2430, %v2617
        %vm2620 = vcmp.eq.f32.partialorder %v2430, 0.0
        %v2621 = vand.u32 %v2430, 2147483648
        %v2622 = vsel %vm2620, %v2621, %v2619
        %v2623 = vrsqrt.pop %v2431
        %v2624 = vmul.f32 %v2431, %v2623
        %vm2625 = vcmp.eq.f32.partialorder %v2431, inf
        %v2626 = vsel %vm2625, %v2431, %v2624
        %vm2627 = vcmp.eq.f32.partialorder %v2431, 0.0
        %v2628 = vand.u32 %v2431, 2147483648
        %v2629 = vsel %vm2627, %v2628, %v2626
        %v2630 = vrsqrt.pop %v2432
        %v2631 = vmul.f32 %v2432, %v2630
        %vm2632 = vcmp.eq.f32.partialorder %v2432, inf
        %v2633 = vsel %vm2632, %v2432, %v2631
        %vm2634 = vcmp.eq.f32.partialorder %v2432, 0.0
        %v2635 = vand.u32 %v2432, 2147483648
        %v2636 = vsel %vm2634, %v2635, %v2633
        %v2637 = vrsqrt.pop %v2433
        %v2638 = vmul.f32 %v2433, %v2637
        %vm2639 = vcmp.eq.f32.partialorder %v2433, inf
        %v2640 = vsel %vm2639, %v2433, %v2638
        %vm2641 = vcmp.eq.f32.partialorder %v2433, 0.0
        %v2642 = vand.u32 %v2433, 2147483648
        %v2643 = vsel %vm2641, %v2642, %v2640
        %v2644 = vrsqrt.pop %v2434
        %v2645 = vmul.f32 %v2434, %v2644
        %vm2646 = vcmp.eq.f32.partialorder %v2434, inf
        %v2647 = vsel %vm2646, %v2434, %v2645
        %vm2648 = vcmp.eq.f32.partialorder %v2434, 0.0
        %v2649 = vand.u32 %v2434, 2147483648
        %v2650 = vsel %vm2648, %v2649, %v2647
        %v2651 = vrsqrt.pop %v2435
        %v2652 = vmul.f32 %v2435, %v2651
        %vm2653 = vcmp.eq.f32.partialorder %v2435, inf
        %v2654 = vsel %vm2653, %v2435, %v2652
        %vm2655 = vcmp.eq.f32.partialorder %v2435, 0.0
        %v2656 = vand.u32 %v2435, 2147483648
        %v2657 = vsel %vm2655, %v2656, %v2654
        %v2658 = vrsqrt.pop %v2436
        %v2659 = vmul.f32 %v2436, %v2658
        %vm2660 = vcmp.eq.f32.partialorder %v2436, inf
        %v2661 = vsel %vm2660, %v2436, %v2659
        %vm2662 = vcmp.eq.f32.partialorder %v2436, 0.0
        %v2663 = vand.u32 %v2436, 2147483648
        %v2664 = vsel %vm2662, %v2663, %v2661
        %v2665 = vrsqrt.pop %v2437
        %v2666 = vmul.f32 %v2437, %v2665
        %vm2667 = vcmp.eq.f32.partialorder %v2437, inf
        %v2668 = vsel %vm2667, %v2437, %v2666
        %vm2669 = vcmp.eq.f32.partialorder %v2437, 0.0
        %v2670 = vand.u32 %v2437, 2147483648
        %v2671 = vsel %vm2669, %v2670, %v2668
        %v2672 = vrsqrt.pop %v2438
        %v2673 = vmul.f32 %v2438, %v2672
        %vm2674 = vcmp.eq.f32.partialorder %v2438, inf
        %v2675 = vsel %vm2674, %v2438, %v2673
        %vm2676 = vcmp.eq.f32.partialorder %v2438, 0.0
        %v2677 = vand.u32 %v2438, 2147483648
        %v2678 = vsel %vm2676, %v2677, %v2675
        %v2679 = vrsqrt.pop %v2439
        %v2680 = vmul.f32 %v2439, %v2679
        %vm2681 = vcmp.eq.f32.partialorder %v2439, inf
        %v2682 = vsel %vm2681, %v2439, %v2680
        %vm2683 = vcmp.eq.f32.partialorder %v2439, 0.0
        %v2684 = vand.u32 %v2439, 2147483648
        %v2685 = vsel %vm2683, %v2684, %v2682
        %v2686 = vrsqrt.pop %v2440
        %v2687 = vmul.f32 %v2440, %v2686
        %vm2688 = vcmp.eq.f32.partialorder %v2440, inf
        %v2689 = vsel %vm2688, %v2440, %v2687
        %vm2690 = vcmp.eq.f32.partialorder %v2440, 0.0
        %v2691 = vand.u32 %v2440, 2147483648
        %v2692 = vsel %vm2690, %v2691, %v2689
        %v2693 = vrsqrt.pop %v2441
        %v2694 = vmul.f32 %v2441, %v2693
        %vm2695 = vcmp.eq.f32.partialorder %v2441, inf
        %v2696 = vsel %vm2695, %v2441, %v2694
        %vm2697 = vcmp.eq.f32.partialorder %v2441, 0.0
        %v2698 = vand.u32 %v2441, 2147483648
        %v2699 = vsel %vm2697, %v2698, %v2696
        %v2700 = vrsqrt.pop %v2442
        %v2701 = vmul.f32 %v2442, %v2700
        %vm2702 = vcmp.eq.f32.partialorder %v2442, inf
        %v2703 = vsel %vm2702, %v2442, %v2701
        %vm2704 = vcmp.eq.f32.partialorder %v2442, 0.0
        %v2705 = vand.u32 %v2442, 2147483648
        %v2706 = vsel %vm2704, %v2705, %v2703
        %v2707 = vrsqrt.pop %v2443
        %v2708 = vmul.f32 %v2443, %v2707
        %vm2709 = vcmp.eq.f32.partialorder %v2443, inf
        %v2710 = vsel %vm2709, %v2443, %v2708
        %vm2711 = vcmp.eq.f32.partialorder %v2443, 0.0
        %v2712 = vand.u32 %v2443, 2147483648
        %v2713 = vsel %vm2711, %v2712, %v2710
        %v2714 = vrsqrt.pop %v2444
        %v2715 = vmul.f32 %v2444, %v2714
        %vm2716 = vcmp.eq.f32.partialorder %v2444, inf
        %v2717 = vsel %vm2716, %v2444, %v2715
        %vm2718 = vcmp.eq.f32.partialorder %v2444, 0.0
        %v2719 = vand.u32 %v2444, 2147483648
        %v2720 = vsel %vm2718, %v2719, %v2717
        %v2721 = vrsqrt.pop %v2445
        %v2722 = vmul.f32 %v2445, %v2721
        %vm2723 = vcmp.eq.f32.partialorder %v2445, inf
        %v2724 = vsel %vm2723, %v2445, %v2722
        %vm2725 = vcmp.eq.f32.partialorder %v2445, 0.0
        %v2726 = vand.u32 %v2445, 2147483648
        %v2727 = vsel %vm2725, %v2726, %v2724
        %v2728 = vrsqrt.pop %v2446
        %v2729 = vmul.f32 %v2446, %v2728
        %vm2730 = vcmp.eq.f32.partialorder %v2446, inf
        %v2731 = vsel %vm2730, %v2446, %v2729
        %vm2732 = vcmp.eq.f32.partialorder %v2446, 0.0
        %v2733 = vand.u32 %v2446, 2147483648
        %v2734 = vsel %vm2732, %v2733, %v2731
        %v2735 = vrsqrt.pop %v2447
        %v2736 = vmul.f32 %v2447, %v2735
        %vm2737 = vcmp.eq.f32.partialorder %v2447, inf
        %v2738 = vsel %vm2737, %v2447, %v2736
        %vm2739 = vcmp.eq.f32.partialorder %v2447, 0.0
        %v2740 = vand.u32 %v2447, 2147483648
        %v2741 = vsel %vm2739, %v2740, %v2738
        %v2742 = vrsqrt.pop %v2448
        %v2743 = vmul.f32 %v2448, %v2742
        %vm2744 = vcmp.eq.f32.partialorder %v2448, inf
        %v2745 = vsel %vm2744, %v2448, %v2743
        %vm2746 = vcmp.eq.f32.partialorder %v2448, 0.0
        %v2747 = vand.u32 %v2448, 2147483648
        %v2748 = vsel %vm2746, %v2747, %v2745
        %v2749 = vrsqrt.pop %v2449
        %v2750 = vmul.f32 %v2449, %v2749
        %vm2751 = vcmp.eq.f32.partialorder %v2449, inf
        %v2752 = vsel %vm2751, %v2449, %v2750
        %vm2753 = vcmp.eq.f32.partialorder %v2449, 0.0
        %v2754 = vand.u32 %v2449, 2147483648
        %v2755 = vsel %vm2753, %v2754, %v2752
        %v2756 = vrsqrt.pop %v2450
        %v2757 = vmul.f32 %v2450, %v2756
        %vm2758 = vcmp.eq.f32.partialorder %v2450, inf
        %v2759 = vsel %vm2758, %v2450, %v2757
        %vm2760 = vcmp.eq.f32.partialorder %v2450, 0.0
        %v2761 = vand.u32 %v2450, 2147483648
        %v2762 = vsel %vm2760, %v2761, %v2759
        %v2763 = vrsqrt.pop %v2451
        %v2764 = vmul.f32 %v2451, %v2763
        %vm2765 = vcmp.eq.f32.partialorder %v2451, inf
        %v2766 = vsel %vm2765, %v2451, %v2764
        %vm2767 = vcmp.eq.f32.partialorder %v2451, 0.0
        %v2768 = vand.u32 %v2451, 2147483648
        %v2769 = vsel %vm2767, %v2768, %v2766
        %v2770 = vrsqrt.pop %v2452
        %v2771 = vmul.f32 %v2452, %v2770
        %vm2772 = vcmp.eq.f32.partialorder %v2452, inf
        %v2773 = vsel %vm2772, %v2452, %v2771
        %vm2774 = vcmp.eq.f32.partialorder %v2452, 0.0
        %v2775 = vand.u32 %v2452, 2147483648
        %v2776 = vsel %vm2774, %v2775, %v2773
        %v2777 = vrsqrt.pop %v2453
        %v2778 = vmul.f32 %v2453, %v2777
        %vm2779 = vcmp.eq.f32.partialorder %v2453, inf
        %v2780 = vsel %vm2779, %v2453, %v2778
        %vm2781 = vcmp.eq.f32.partialorder %v2453, 0.0
        %v2782 = vand.u32 %v2453, 2147483648
        %v2783 = vsel %vm2781, %v2782, %v2780
        %v2784 = vrsqrt.pop %v2454
        %v2785 = vmul.f32 %v2454, %v2784
        %vm2786 = vcmp.eq.f32.partialorder %v2454, inf
        %v2787 = vsel %vm2786, %v2454, %v2785
        %vm2788 = vcmp.eq.f32.partialorder %v2454, 0.0
        %v2789 = vand.u32 %v2454, 2147483648
        %v2790 = vsel %vm2788, %v2789, %v2787
        %v2791 = vrsqrt.pop %v2455
        %v2792 = vmul.f32 %v2455, %v2791
        %vm2793 = vcmp.eq.f32.partialorder %v2455, inf
        %v2794 = vsel %vm2793, %v2455, %v2792
        %vm2795 = vcmp.eq.f32.partialorder %v2455, 0.0
        %v2796 = vand.u32 %v2455, 2147483648
        %v2797 = vsel %vm2795, %v2796, %v2794
        %v2798 = vrsqrt.pop %v2456
        %v2799 = vmul.f32 %v2456, %v2798
        %vm2800 = vcmp.eq.f32.partialorder %v2456, inf
        %v2801 = vsel %vm2800, %v2456, %v2799
        %vm2802 = vcmp.eq.f32.partialorder %v2456, 0.0
        %v2803 = vand.u32 %v2456, 2147483648
        %v2804 = vsel %vm2802, %v2803, %v2801
        %v2805 = vrsqrt.pop %v2457
        %v2806 = vmul.f32 %v2457, %v2805
        %vm2807 = vcmp.eq.f32.partialorder %v2457, inf
        %v2808 = vsel %vm2807, %v2457, %v2806
        %vm2809 = vcmp.eq.f32.partialorder %v2457, 0.0
        %v2810 = vand.u32 %v2457, 2147483648
        %v2811 = vsel %vm2809, %v2810, %v2808
        %v2812 = vrsqrt.pop %v2458
        %v2813 = vmul.f32 %v2458, %v2812
        %vm2814 = vcmp.eq.f32.partialorder %v2458, inf
        %v2815 = vsel %vm2814, %v2458, %v2813
        %vm2816 = vcmp.eq.f32.partialorder %v2458, 0.0
        %v2817 = vand.u32 %v2458, 2147483648
        %v2818 = vsel %vm2816, %v2817, %v2815
        %v2819 = vrsqrt.pop %v2459
        %v2820 = vmul.f32 %v2459, %v2819
        %vm2821 = vcmp.eq.f32.partialorder %v2459, inf
        %v2822 = vsel %vm2821, %v2459, %v2820
        %vm2823 = vcmp.eq.f32.partialorder %v2459, 0.0
        %v2824 = vand.u32 %v2459, 2147483648
        %v2825 = vsel %vm2823, %v2824, %v2822
        %v2826 = vrsqrt.pop %v2460
        %v2827 = vmul.f32 %v2460, %v2826
        %vm2828 = vcmp.eq.f32.partialorder %v2460, inf
        %v2829 = vsel %vm2828, %v2460, %v2827
        %vm2830 = vcmp.eq.f32.partialorder %v2460, 0.0
        %v2831 = vand.u32 %v2460, 2147483648
        %v2832 = vsel %vm2830, %v2831, %v2829
        %v2833 = vrsqrt.pop %v2461
        %v2834 = vmul.f32 %v2461, %v2833
        %vm2835 = vcmp.eq.f32.partialorder %v2461, inf
        %v2836 = vsel %vm2835, %v2461, %v2834
        %vm2837 = vcmp.eq.f32.partialorder %v2461, 0.0
        %v2838 = vand.u32 %v2461, 2147483648
        %v2839 = vsel %vm2837, %v2838, %v2836
        %v2840 = vrsqrt.pop %v2462
        %v2841 = vmul.f32 %v2462, %v2840
        %vm2842 = vcmp.eq.f32.partialorder %v2462, inf
        %v2843 = vsel %vm2842, %v2462, %v2841
        %vm2844 = vcmp.eq.f32.partialorder %v2462, 0.0
        %v2845 = vand.u32 %v2462, 2147483648
        %v2846 = vsel %vm2844, %v2845, %v2843
        %v2847 = vrsqrt.pop %v2463
        %v2848 = vmul.f32 %v2463, %v2847
        %vm2849 = vcmp.eq.f32.partialorder %v2463, inf
        %v2850 = vsel %vm2849, %v2463, %v2848
        %vm2851 = vcmp.eq.f32.partialorder %v2463, 0.0
        %v2852 = vand.u32 %v2463, 2147483648
        %v2853 = vsel %vm2851, %v2852, %v2850
        %v2854 = vrsqrt.pop %v2464
        %v2855 = vmul.f32 %v2464, %v2854
        %vm2856 = vcmp.eq.f32.partialorder %v2464, inf
        %v2857 = vsel %vm2856, %v2464, %v2855
        %vm2858 = vcmp.eq.f32.partialorder %v2464, 0.0
        %v2859 = vand.u32 %v2464, 2147483648
        %v2860 = vsel %vm2858, %v2859, %v2857
        %v2861 = vrsqrt.pop %v2465
        %v2862 = vmul.f32 %v2465, %v2861
        %vm2863 = vcmp.eq.f32.partialorder %v2465, inf
        %v2864 = vsel %vm2863, %v2465, %v2862
        %vm2865 = vcmp.eq.f32.partialorder %v2465, 0.0
        %v2866 = vand.u32 %v2465, 2147483648
        %v2867 = vsel %vm2865, %v2866, %v2864
        %v2868 = vrsqrt.pop %v2466
        %v2869 = vmul.f32 %v2466, %v2868
        %vm2870 = vcmp.eq.f32.partialorder %v2466, inf
        %v2871 = vsel %vm2870, %v2466, %v2869
        %vm2872 = vcmp.eq.f32.partialorder %v2466, 0.0
        %v2873 = vand.u32 %v2466, 2147483648
        %v2874 = vsel %vm2872, %v2873, %v2871
        %v2875 = vrsqrt.pop %v2467
        %v2876 = vmul.f32 %v2467, %v2875
        %vm2877 = vcmp.eq.f32.partialorder %v2467, inf
        %v2878 = vsel %vm2877, %v2467, %v2876
        %vm2879 = vcmp.eq.f32.partialorder %v2467, 0.0
        %v2880 = vand.u32 %v2467, 2147483648
        %v2881 = vsel %vm2879, %v2880, %v2878
        %v2882 = vrsqrt.pop %v2468
        %v2883 = vmul.f32 %v2468, %v2882
        %vm2884 = vcmp.eq.f32.partialorder %v2468, inf
        %v2885 = vsel %vm2884, %v2468, %v2883
        %vm2886 = vcmp.eq.f32.partialorder %v2468, 0.0
        %v2887 = vand.u32 %v2468, 2147483648
        %v2888 = vsel %vm2886, %v2887, %v2885
        %v2889 = vrsqrt.pop %v2469
        %v2890 = vmul.f32 %v2469, %v2889
        %vm2891 = vcmp.eq.f32.partialorder %v2469, inf
        %v2892 = vsel %vm2891, %v2469, %v2890
        %vm2893 = vcmp.eq.f32.partialorder %v2469, 0.0
        %v2894 = vand.u32 %v2469, 2147483648
        %v2895 = vsel %vm2893, %v2894, %v2892
        %v2896 = vrsqrt.pop %v2470
        %v2897 = vmul.f32 %v2470, %v2896
        %vm2898 = vcmp.eq.f32.partialorder %v2470, inf
        %v2899 = vsel %vm2898, %v2470, %v2897
        %vm2900 = vcmp.eq.f32.partialorder %v2470, 0.0
        %v2901 = vand.u32 %v2470, 2147483648
        %v2902 = vsel %vm2900, %v2901, %v2899
        %v2903 = vrsqrt.pop %v2471
        %v2904 = vmul.f32 %v2471, %v2903
        %vm2905 = vcmp.eq.f32.partialorder %v2471, inf
        %v2906 = vsel %vm2905, %v2471, %v2904
        %vm2907 = vcmp.eq.f32.partialorder %v2471, 0.0
        %v2908 = vand.u32 %v2471, 2147483648
        %v2909 = vsel %vm2907, %v2908, %v2906
        %v2910 = vrsqrt.pop %v2472
        %v2911 = vmul.f32 %v2472, %v2910
        %vm2912 = vcmp.eq.f32.partialorder %v2472, inf
        %v2913 = vsel %vm2912, %v2472, %v2911
        %vm2914 = vcmp.eq.f32.partialorder %v2472, 0.0
        %v2915 = vand.u32 %v2472, 2147483648
        %v2916 = vsel %vm2914, %v2915, %v2913
        %v2917 = vrsqrt.pop %v2473
        %v2918 = vmul.f32 %v2473, %v2917
        %vm2919 = vcmp.eq.f32.partialorder %v2473, inf
        %v2920 = vsel %vm2919, %v2473, %v2918
        %vm2921 = vcmp.eq.f32.partialorder %v2473, 0.0
        %v2922 = vand.u32 %v2473, 2147483648
        %v2923 = vsel %vm2921, %v2922, %v2920
        %v2924 = vrsqrt.pop %v2474
        %v2925 = vmul.f32 %v2474, %v2924
        %vm2926 = vcmp.eq.f32.partialorder %v2474, inf
        %v2927 = vsel %vm2926, %v2474, %v2925
        %vm2928 = vcmp.eq.f32.partialorder %v2474, 0.0
        %v2929 = vand.u32 %v2474, 2147483648
        %v2930 = vsel %vm2928, %v2929, %v2927
        %v2931 = vrsqrt.pop %v2475
        %v2932 = vmul.f32 %v2475, %v2931
        %vm2933 = vcmp.eq.f32.partialorder %v2475, inf
        %v2934 = vsel %vm2933, %v2475, %v2932
        %vm2935 = vcmp.eq.f32.partialorder %v2475, 0.0
        %v2936 = vand.u32 %v2475, 2147483648
        %v2937 = vsel %vm2935, %v2936, %v2934
        %2938 = vst [vmem:[%s229] sm:$0xff] %v2482
        %2939 = vst [vmem:[%s229 + $0x8] sm:$0xff] %v2489
        %2940 = vst [vmem:[%s229 + $0x20] sm:$0xff] %v2496
        %2941 = vst [vmem:[%s229 + $0x28] sm:$0xff] %v2503
        %2942 = vst [vmem:[%s229 + $0x40] sm:$0xff] %v2510
        %2943 = vst [vmem:[%s229 + $0x48] sm:$0xff] %v2517
        %2944 = vst [vmem:[%s229 + $0x60] sm:$0xff] %v2524
        %2945 = vst [vmem:[%s229 + $0x68] sm:$0xff] %v2531
        %2946 = vst [vmem:[%s229 + $0x80] sm:$0xff] %v2538
        %2947 = vst [vmem:[%s229 + $0x88] sm:$0xff] %v2545
        %2948 = vst [vmem:[%s229 + $0xa0] sm:$0xff] %v2552
        %2949 = vst [vmem:[%s229 + $0xa8] sm:$0xff] %v2559
        %2950 = vst [vmem:[%s229 + $0xc0] sm:$0xff] %v2566
        %2951 = vst [vmem:[%s229 + $0xc8] sm:$0xff] %v2573
        %2952 = vst [vmem:[%s229 + $0xe0] sm:$0xff] %v2580
        %2953 = vst [vmem:[%s229 + $0xe8] sm:$0xff] %v2587
        %2954 = vst [vmem:[%s229 + $0x100] sm:$0xff] %v2594
        %2955 = vst [vmem:[%s229 + $0x108] sm:$0xff] %v2601
        %2956 = vst [vmem:[%s229 + $0x120] sm:$0xff] %v2608
        %2957 = vst [vmem:[%s229 + $0x128] sm:$0xff] %v2615
        %2958 = vst [vmem:[%s229 + $0x140] sm:$0xff] %v2622
        %2959 = vst [vmem:[%s229 + $0x148] sm:$0xff] %v2629
        %2960 = vst [vmem:[%s229 + $0x160] sm:$0xff] %v2636
        %2961 = vst [vmem:[%s229 + $0x168] sm:$0xff] %v2643
        %2962 = vst [vmem:[%s229 + $0x180] sm:$0xff] %v2650
        %2963 = vst [vmem:[%s229 + $0x188] sm:$0xff] %v2657
        %2964 = vst [vmem:[%s229 + $0x1a0] sm:$0xff] %v2664
        %2965 = vst [vmem:[%s229 + $0x1a8] sm:$0xff] %v2671
        %2966 = vst [vmem:[%s229 + $0x1c0] sm:$0xff] %v2678
        %2967 = vst [vmem:[%s229 + $0x1c8] sm:$0xff] %v2685
        %2968 = vst [vmem:[%s229 + $0x1e0] sm:$0xff] %v2692
        %2969 = vst [vmem:[%s229 + $0x1e8] sm:$0xff] %v2699
        %2970 = vst [vmem:[%s229 + $0x200] sm:$0xff] %v2706
        %2971 = vst [vmem:[%s229 + $0x208] sm:$0xff] %v2713
        %2972 = vst [vmem:[%s229 + $0x220] sm:$0xff] %v2720
        %2973 = vst [vmem:[%s229 + $0x228] sm:$0xff] %v2727
        %2974 = vst [vmem:[%s229 + $0x240] sm:$0xff] %v2734
        %2975 = vst [vmem:[%s229 + $0x248] sm:$0xff] %v2741
        %2976 = vst [vmem:[%s229 + $0x260] sm:$0xff] %v2748
        %2977 = vst [vmem:[%s229 + $0x268] sm:$0xff] %v2755
        %2978 = vst [vmem:[%s229 + $0x280] sm:$0xff] %v2762
        %2979 = vst [vmem:[%s229 + $0x288] sm:$0xff] %v2769
        %2980 = vst [vmem:[%s229 + $0x2a0] sm:$0xff] %v2776
        %2981 = vst [vmem:[%s229 + $0x2a8] sm:$0xff] %v2783
        %2982 = vst [vmem:[%s229 + $0x2c0] sm:$0xff] %v2790
        %2983 = vst [vmem:[%s229 + $0x2c8] sm:$0xff] %v2797
        %2984 = vst [vmem:[%s229 + $0x2e0] sm:$0xff] %v2804
        %2985 = vst [vmem:[%s229 + $0x2e8] sm:$0xff] %v2811
        %2986 = vst [vmem:[%s229 + $0x300] sm:$0xff] %v2818
        %2987 = vst [vmem:[%s229 + $0x308] sm:$0xff] %v2825
        %2988 = vst [vmem:[%s229 + $0x320] sm:$0xff] %v2832
        %2989 = vst [vmem:[%s229 + $0x328] sm:$0xff] %v2839
        %2990 = vst [vmem:[%s229 + $0x340] sm:$0xff] %v2846
        %2991 = vst [vmem:[%s229 + $0x348] sm:$0xff] %v2853
        %2992 = vst [vmem:[%s229 + $0x360] sm:$0xff] %v2860
        %2993 = vst [vmem:[%s229 + $0x368] sm:$0xff] %v2867
        %2994 = vst [vmem:[%s229 + $0x380] sm:$0xff] %v2874
        %2995 = vst [vmem:[%s229 + $0x388] sm:$0xff] %v2881
        %2996 = vst [vmem:[%s229 + $0x3a0] sm:$0xff] %v2888
        %2997 = vst [vmem:[%s229 + $0x3a8] sm:$0xff] %v2895
        %2998 = vst [vmem:[%s229 + $0x3c0] sm:$0xff] %v2902
        %2999 = vst [vmem:[%s229 + $0x3c8] sm:$0xff] %v2909
        %3000 = vst [vmem:[%s229 + $0x3e0] sm:$0xff] %v2916
        %3001 = vst [vmem:[%s229 + $0x3e8] sm:$0xff] %v2923
        %3002 = vst [vmem:[%s229 + $0x400] sm:$0x1] %v2930
        %3003 = vst [vmem:[%s229 + $0x408] sm:$0x1] %v2937
        %v3004 = vld [vmem:[%s242 + $0x80] sm:$0xf]
        %v3005 = vld [vmem:[%s242 + $0x84] sm:$0xf]
        %v3006 = vld [vmem:[%s242 + $0x88] sm:$0xf]
        %v3007 = vld [vmem:[%s242 + $0x8c] sm:$0xf]
        %v3008 = vld [vmem:[%s242 + $0x90] sm:$0xf]
        %v3009 = vld [vmem:[%s242 + $0x94] sm:$0xf]
        %v3010 = vld [vmem:[%s242 + $0x98] sm:$0xf]
        %v3011 = vld [vmem:[%s242 + $0x9c] sm:$0xf]
        %v3012 = vld [vmem:[%s242 + $0xa0] sm:$0xf]
        %v3013 = vld [vmem:[%s242 + $0xa4] sm:$0xf]
        %v3014 = vld [vmem:[%s242 + $0xa8] sm:$0xf]
        %v3015 = vld [vmem:[%s242 + $0xac] sm:$0xf]
        %v3016 = vld [vmem:[%s242 + $0xb0] sm:$0xf]
        %v3017 = vld [vmem:[%s242 + $0xb4] sm:$0xf]
        %v3018 = vld [vmem:[%s242 + $0xb8] sm:$0xf]
        %v3019 = vld [vmem:[%s242 + $0xbc] sm:$0xf]
        %v3020 = vld [vmem:[%s242 + $0xc0] sm:$0xf]
        %v3021 = vld [vmem:[%s242 + $0xc4] sm:$0xf]
        %v3022 = vld [vmem:[%s242 + $0xc8] sm:$0xf]
        %v3023 = vld [vmem:[%s242 + $0xcc] sm:$0xf]
        %v3024 = vld [vmem:[%s242 + $0xd0] sm:$0xf]
        %v3025 = vld [vmem:[%s242 + $0xd4] sm:$0xf]
        %v3026 = vld [vmem:[%s242 + $0xd8] sm:$0xf]
        %v3027 = vld [vmem:[%s242 + $0xdc] sm:$0xf]
        %v3028 = vld [vmem:[%s242 + $0xe0] sm:$0xf]
        %v3029 = vld [vmem:[%s242 + $0xe4] sm:$0xf]
        %v3030 = vld [vmem:[%s242 + $0xe8] sm:$0xf]
        %v3031 = vld [vmem:[%s242 + $0xec] sm:$0xf]
        %v3032 = vld [vmem:[%s242 + $0xf0] sm:$0xf]
        %v3033 = vld [vmem:[%s242 + $0xf4] sm:$0xf]
        %v3034 = vld [vmem:[%s242 + $0xf8] sm:$0xf]
        %v3035 = vld [vmem:[%s242 + $0xfc] sm:$0xf]
        %v3036 = vld [vmem:[%s257] sm:$0x1]
        %v3069 = vunpack.c.l.b16 %v3004
        %v3070 = vunpack.c.l.b16 %v3005
        %v3071 = vunpack.c.l.b16 %v3006
        %v3072 = vunpack.c.l.b16 %v3007
        %v3073 = vunpack.c.l.b16 %v3008
        %v3074 = vunpack.c.l.b16 %v3009
        %v3075 = vunpack.c.l.b16 %v3010
        %v3076 = vunpack.c.l.b16 %v3011
        %v3077 = vunpack.c.l.b16 %v3012
        %v3078 = vunpack.c.l.b16 %v3013
        %v3079 = vunpack.c.l.b16 %v3014
        %v3080 = vunpack.c.l.b16 %v3015
        %v3081 = vunpack.c.l.b16 %v3016
        %v3082 = vunpack.c.l.b16 %v3017
        %v3083 = vunpack.c.l.b16 %v3018
        %v3084 = vunpack.c.l.b16 %v3019
        %v3085 = vunpack.c.l.b16 %v3020
        %v3086 = vunpack.c.l.b16 %v3021
        %v3087 = vunpack.c.l.b16 %v3022
        %v3088 = vunpack.c.l.b16 %v3023
        %v3089 = vunpack.c.l.b16 %v3024
        %v3090 = vunpack.c.l.b16 %v3025
        %v3091 = vunpack.c.l.b16 %v3026
        %v3092 = vunpack.c.l.b16 %v3027
        %v3093 = vunpack.c.l.b16 %v3028
        %v3094 = vunpack.c.l.b16 %v3029
        %v3095 = vunpack.c.l.b16 %v3030
        %v3096 = vunpack.c.l.b16 %v3031
        %v3097 = vunpack.c.l.b16 %v3032
        %v3098 = vunpack.c.l.b16 %v3033
        %v3099 = vunpack.c.l.b16 %v3034
        %v3100 = vunpack.c.l.b16 %v3035
        %v3101 = vpack.c.b16 %v3070, %v3069
        %v3102 = vpack.c.b16 %v3072, %v3071
        %v3103 = vpack.c.b16 %v3074, %v3073
        %v3104 = vpack.c.b16 %v3076, %v3075
        %v3105 = vpack.c.b16 %v3078, %v3077
        %v3106 = vpack.c.b16 %v3080, %v3079
        %v3107 = vpack.c.b16 %v3082, %v3081
        %v3108 = vpack.c.b16 %v3084, %v3083
        %v3109 = vpack.c.b16 %v3086, %v3085
        %v3110 = vpack.c.b16 %v3088, %v3087
        %v3111 = vpack.c.b16 %v3090, %v3089
        %v3112 = vpack.c.b16 %v3092, %v3091
        %v3113 = vpack.c.b16 %v3094, %v3093
        %v3114 = vpack.c.b16 %v3096, %v3095
        %v3115 = vpack.c.b16 %v3098, %v3097
        %v3116 = vpack.c.b16 %v3100, %v3099
        %v3118 = vshrl.u32 %v3101, 16
        %v3120 = vshll.u32 %v3101, 16
        %v3122 = vrot.slane %v3120, 1
        %v3123 = vor.u32 %v3118, %v3122
        %v3125 = vshll.u32 %v3102, 16
        %v3127 = vrot.slane %v3125, 1
        %v3128 = vsel %vm527, %v3123, %v3127
        %v3129 = vshrl.u32 %v3102, 16
        %v3131 = vor.u32 %v3129, %v3127
        %v3133 = vshll.u32 %v3103, 16
        %v3135 = vrot.slane %v3133, 1
        %v3136 = vsel %vm527, %v3131, %v3135
        %v3137 = vshrl.u32 %v3103, 16
        %v3139 = vor.u32 %v3137, %v3135
        %v3141 = vshll.u32 %v3104, 16
        %v3143 = vrot.slane %v3141, 1
        %v3144 = vsel %vm527, %v3139, %v3143
        %v3145 = vshrl.u32 %v3104, 16
        %v3147 = vor.u32 %v3145, %v3143
        %v3149 = vshll.u32 %v3105, 16
        %v3151 = vrot.slane %v3149, 1
        %v3152 = vsel %vm527, %v3147, %v3151
        %v3153 = vshrl.u32 %v3105, 16
        %v3155 = vor.u32 %v3153, %v3151
        %v3157 = vshll.u32 %v3106, 16
        %v3159 = vrot.slane %v3157, 1
        %v3160 = vsel %vm527, %v3155, %v3159
        %v3161 = vshrl.u32 %v3106, 16
        %v3163 = vor.u32 %v3161, %v3159
        %v3165 = vshll.u32 %v3107, 16
        %v3167 = vrot.slane %v3165, 1
        %v3168 = vsel %vm527, %v3163, %v3167
        %v3169 = vshrl.u32 %v3107, 16
        %v3171 = vor.u32 %v3169, %v3167
        %v3173 = vshll.u32 %v3108, 16
        %v3175 = vrot.slane %v3173, 1
        %v3176 = vsel %vm527, %v3171, %v3175
        %v3177 = vshrl.u32 %v3108, 16
        %v3179 = vor.u32 %v3177, %v3175
        %v3181 = vshll.u32 %v3109, 16
        %v3183 = vrot.slane %v3181, 1
        %v3184 = vsel %vm527, %v3179, %v3183
        %v3185 = vshrl.u32 %v3109, 16
        %v3187 = vor.u32 %v3185, %v3183
        %v3189 = vshll.u32 %v3110, 16
        %v3191 = vrot.slane %v3189, 1
        %v3192 = vsel %vm527, %v3187, %v3191
        %v3193 = vshrl.u32 %v3110, 16
        %v3195 = vor.u32 %v3193, %v3191
        %v3197 = vshll.u32 %v3111, 16
        %v3199 = vrot.slane %v3197, 1
        %v3200 = vsel %vm527, %v3195, %v3199
        %v3201 = vshrl.u32 %v3111, 16
        %v3203 = vor.u32 %v3201, %v3199
        %v3205 = vshll.u32 %v3112, 16
        %v3207 = vrot.slane %v3205, 1
        %v3208 = vsel %vm527, %v3203, %v3207
        %v3209 = vshrl.u32 %v3112, 16
        %v3211 = vor.u32 %v3209, %v3207
        %v3213 = vshll.u32 %v3113, 16
        %v3215 = vrot.slane %v3213, 1
        %v3216 = vsel %vm527, %v3211, %v3215
        %v3217 = vshrl.u32 %v3113, 16
        %v3219 = vor.u32 %v3217, %v3215
        %v3221 = vshll.u32 %v3114, 16
        %v3223 = vrot.slane %v3221, 1
        %v3224 = vsel %vm527, %v3219, %v3223
        %v3225 = vshrl.u32 %v3114, 16
        %v3227 = vor.u32 %v3225, %v3223
        %v3229 = vshll.u32 %v3115, 16
        %v3231 = vrot.slane %v3229, 1
        %v3232 = vsel %vm527, %v3227, %v3231
        %v3233 = vshrl.u32 %v3115, 16
        %v3235 = vor.u32 %v3233, %v3231
        %v3237 = vshll.u32 %v3116, 16
        %v3239 = vrot.slane %v3237, 1
        %v3240 = vsel %vm527, %v3235, %v3239
        %v3241 = vshrl.u32 %v3116, 16
        %v3243 = vor.u32 %v3241, %v3239
        %v3261 = vunpack.c.l.b16 %v3036
        %v3262 = vpack.c.b16 %v3261, %v3261
        %v3264 = vshll.u32 %v3262, 16
        %v3266 = vrot.slane %v3264, 1
        %vm3268 = vcmask 1047552
        %vm3269 = vmand %vm3268, %vm527
        %v3270 = vsel %vm3269, %v3243, %v3266
        %v3271 = vld [vmem:[%s242 + $0x80] sm:$0xe]
        %v3273 = vunpack.c.l.b16 %v3271
        %v3274 = vpack.c.b16 %v3070, %v3273
        %v3275 = vrot.slane %v3274, 1
        %v3276 = vrot.slane %v3102, 1
        %v3277 = vsel %vm679, %v3275, %v3276
        %v3278 = vrot.slane %v3103, 1
        %v3279 = vsel %vm679, %v3276, %v3278
        %v3280 = vrot.slane %v3104, 1
        %v3281 = vsel %vm679, %v3278, %v3280
        %v3282 = vrot.slane %v3105, 1
        %v3283 = vsel %vm679, %v3280, %v3282
        %v3284 = vrot.slane %v3106, 1
        %v3285 = vsel %vm679, %v3282, %v3284
        %v3286 = vrot.slane %v3107, 1
        %v3287 = vsel %vm679, %v3284, %v3286
        %v3288 = vrot.slane %v3108, 1
        %v3289 = vsel %vm679, %v3286, %v3288
        %v3290 = vrot.slane %v3109, 1
        %v3291 = vsel %vm679, %v3288, %v3290
        %v3292 = vrot.slane %v3110, 1
        %v3293 = vsel %vm679, %v3290, %v3292
        %v3294 = vrot.slane %v3111, 1
        %v3295 = vsel %vm679, %v3292, %v3294
        %v3296 = vrot.slane %v3112, 1
        %v3297 = vsel %vm679, %v3294, %v3296
        %v3298 = vrot.slane %v3113, 1
        %v3299 = vsel %vm679, %v3296, %v3298
        %v3300 = vrot.slane %v3114, 1
        %v3301 = vsel %vm679, %v3298, %v3300
        %v3302 = vrot.slane %v3115, 1
        %v3303 = vsel %vm679, %v3300, %v3302
        %v3304 = vrot.slane %v3116, 1
        %v3305 = vsel %vm679, %v3302, %v3304
        %v3321 = vrot.slane %v3262, 1
        %vm3322 = vcmask 1046528
        %v3325 = vsel %vm3322, %v3304, %v3321
        %v3327 = vld [vmem:[%s257] sm:$0x3]
        %v3329 = vshrl.u32 %v3274, 16
        %v3331 = vrot.slane %v3329, 1
        %v3332 = vshll.u32 %v3274, 16
        %v3334 = vrot.slane %v3332, 2
        %v3335 = vor.u32 %v3331, %v3334
        %v3336 = vrot.slane %v3129, 1
        %v3337 = vrot.slane %v3125, 2
        %v3338 = vor.u32 %v3336, %v3337
        %v3339 = vsel %vm732, %v3335, %v3338
        %v3340 = vrot.slane %v3137, 1
        %v3341 = vrot.slane %v3133, 2
        %v3342 = vor.u32 %v3340, %v3341
        %v3343 = vsel %vm732, %v3338, %v3342
        %v3344 = vrot.slane %v3145, 1
        %v3345 = vrot.slane %v3141, 2
        %v3346 = vor.u32 %v3344, %v3345
        %v3347 = vsel %vm732, %v3342, %v3346
        %v3348 = vrot.slane %v3153, 1
        %v3349 = vrot.slane %v3149, 2
        %v3350 = vor.u32 %v3348, %v3349
        %v3351 = vsel %vm732, %v3346, %v3350
        %v3352 = vrot.slane %v3161, 1
        %v3353 = vrot.slane %v3157, 2
        %v3354 = vor.u32 %v3352, %v3353
        %v3355 = vsel %vm732, %v3350, %v3354
        %v3356 = vrot.slane %v3169, 1
        %v3357 = vrot.slane %v3165, 2
        %v3358 = vor.u32 %v3356, %v3357
        %v3359 = vsel %vm732, %v3354, %v3358
        %v3360 = vrot.slane %v3177, 1
        %v3361 = vrot.slane %v3173, 2
        %v3362 = vor.u32 %v3360, %v3361
        %v3363 = vsel %vm732, %v3358, %v3362
        %v3364 = vrot.slane %v3185, 1
        %v3365 = vrot.slane %v3181, 2
        %v3366 = vor.u32 %v3364, %v3365
        %v3367 = vsel %vm732, %v3362, %v3366
        %v3368 = vrot.slane %v3193, 1
        %v3369 = vrot.slane %v3189, 2
        %v3370 = vor.u32 %v3368, %v3369
        %v3371 = vsel %vm732, %v3366, %v3370
        %v3372 = vrot.slane %v3201, 1
        %v3373 = vrot.slane %v3197, 2
        %v3374 = vor.u32 %v3372, %v3373
        %v3375 = vsel %vm732, %v3370, %v3374
        %v3376 = vrot.slane %v3209, 1
        %v3377 = vrot.slane %v3205, 2
        %v3378 = vor.u32 %v3376, %v3377
        %v3379 = vsel %vm732, %v3374, %v3378
        %v3380 = vrot.slane %v3217, 1
        %v3381 = vrot.slane %v3213, 2
        %v3382 = vor.u32 %v3380, %v3381
        %v3383 = vsel %vm732, %v3378, %v3382
        %v3384 = vrot.slane %v3225, 1
        %v3385 = vrot.slane %v3221, 2
        %v3386 = vor.u32 %v3384, %v3385
        %v3387 = vsel %vm732, %v3382, %v3386
        %v3388 = vrot.slane %v3233, 1
        %v3389 = vrot.slane %v3229, 2
        %v3390 = vor.u32 %v3388, %v3389
        %v3391 = vsel %vm732, %v3386, %v3390
        %v3392 = vrot.slane %v3241, 1
        %v3393 = vrot.slane %v3237, 2
        %v3394 = vor.u32 %v3392, %v3393
        %v3395 = vsel %vm732, %v3390, %v3394
        %v3413 = vunpack.c.l.b16 %v3327
        %v3414 = vpack.c.b16 %v3413, %v3413
        %v3416 = vshrl.u32 %v3414, 16
        %v3418 = vrot.slane %v3416, 1
        %v3419 = vshll.u32 %v3414, 16
        %v3421 = vrot.slane %v3419, 2
        %v3422 = vor.u32 %v3418, %v3421
        %vm3424 = vmand %vm679, %vm732
        %v3425 = vsel %vm3424, %v3394, %v3422
        %3442 = vmatprep.subr.bf16.mxu0 %v3128
        %3443 = vmatpush1.bf16.xpose.msra.mxu0 %v3101
        %3444 = vmatprep.subr.bf16.mxu0 %v3136
        %3445 = vmatpush1.bf16.xpose.msra.mxu0 %v3102
        %3446 = vmatprep.subr.bf16.mxu0 %v3144
        %3447 = vmatpush1.bf16.xpose.msra.mxu0 %v3103
        %3448 = vmatprep.subr.bf16.mxu0 %v3152
        %3449 = vmatpush1.bf16.xpose.msra.mxu0 %v3104
        %3450 = vmatprep.subr.bf16.mxu0 %v3160
        %3451 = vmatpush1.bf16.xpose.msra.mxu0 %v3105
        %3452 = vmatprep.subr.bf16.mxu0 %v3168
        %3453 = vmatpush1.bf16.xpose.msra.mxu0 %v3106
        %3454 = vmatprep.subr.bf16.mxu0 %v3176
        %3455 = vmatpush1.bf16.xpose.msra.mxu0 %v3107
        %3456 = vmatprep.subr.bf16.mxu0 %v3184
        %3457 = vmatpush1.bf16.xpose.msra.mxu0 %v3108
        %3458 = vmatprep.subr.bf16.mxu0 %v3192
        %3459 = vmatpush1.bf16.xpose.msra.mxu0 %v3109
        %3460 = vmatprep.subr.bf16.mxu0 %v3200
        %3461 = vmatpush1.bf16.xpose.msra.mxu0 %v3110
        %3462 = vmatprep.subr.bf16.mxu0 %v3208
        %3463 = vmatpush1.bf16.xpose.msra.mxu0 %v3111
        %3464 = vmatprep.subr.bf16.mxu0 %v3216
        %3465 = vmatpush1.bf16.xpose.msra.mxu0 %v3112
        %3466 = vmatprep.subr.bf16.mxu0 %v3224
        %3467 = vmatpush1.bf16.xpose.msra.mxu0 %v3113
        %3468 = vmatprep.subr.bf16.mxu0 %v3232
        %3469 = vmatpush1.bf16.xpose.msra.mxu0 %v3114
        %3470 = vmatprep.subr.bf16.mxu0 %v3240
        %3471 = vmatpush1.bf16.xpose.msra.mxu0 %v3115
        %3472 = vmatprep.subr.bf16.mxu0 %v3270
        %3473 = vmatpush1.bf16.xpose.msra.mxu0 %v3116
        %3474 = vmatprep.mubr.bf16.mxu0 %v1223
        %3475 = vmatmul.mubr.bf16.gmra.mrb[0].mxu0 %v1222
        %v3476 = vpop.f32.mrb[0].mxu0
        %v3477 = vadd.f32 0.0, %v3476
        %v3478 = vpop.f32.mrb[0].mxu0
        %v3479 = vadd.f32 0.0, %v3478
        %v3480 = vpop.f32.mrb[0].mxu0
        %v3481 = vadd.f32 0.0, %v3480
        %v3482 = vpop.f32.mrb[0].mxu0
        %v3483 = vadd.f32 0.0, %v3482
        %3484 = vmatprep.mubr.bf16.mxu0 %v1227
        %3485 = vmatmul.mubr.bf16.gmra.mrb[0].mxu0 %v1226
        %v3486 = vpop.f32.mrb[0].mxu0
        %v3487 = vadd.f32 0.0, %v3486
        %v3488 = vpop.f32.mrb[0].mxu0
        %v3489 = vadd.f32 0.0, %v3488
        %v3490 = vpop.f32.mrb[0].mxu0
        %v3491 = vadd.f32 0.0, %v3490
        %v3492 = vpop.f32.mrb[0].mxu0
        %v3493 = vadd.f32 0.0, %v3492
        %3494 = vmatprep.mubr.bf16.mxu0 %v1231
        %3495 = vmatmul.mubr.bf16.gmra.mrb[0].mxu0 %v1230
        %v3496 = vpop.f32.mrb[0].mxu0
        %v3497 = vadd.f32 0.0, %v3496
        %v3498 = vpop.f32.mrb[0].mxu0
        %v3499 = vadd.f32 0.0, %v3498
        %v3500 = vpop.f32.mrb[0].mxu0
        %v3501 = vadd.f32 0.0, %v3500
        %v3502 = vpop.f32.mrb[0].mxu0
        %v3503 = vadd.f32 0.0, %v3502
        %3504 = vmatprep.mubr.bf16.mxu0 %v1235
        %3505 = vmatmul.mubr.bf16.gmra.mrb[0].mxu0 %v1234
        %v3506 = vpop.f32.mrb[0].mxu0
        %v3507 = vadd.f32 0.0, %v3506
        %v3508 = vpop.f32.mrb[0].mxu0
        %v3509 = vadd.f32 0.0, %v3508
        %v3510 = vpop.f32.mrb[0].mxu0
        %v3511 = vadd.f32 0.0, %v3510
        %v3512 = vpop.f32.mrb[0].mxu0
        %v3513 = vadd.f32 0.0, %v3512
        %3514 = vmatprep.mubr.bf16.mxu0 %v1239
        %3515 = vmatmul.mubr.bf16.gmra.mrb[0].mxu0 %v1238
        %v3516 = vpop.f32.mrb[0].mxu0
        %v3517 = vadd.f32 0.0, %v3516
        %v3518 = vpop.f32.mrb[0].mxu0
        %v3519 = vadd.f32 0.0, %v3518
        %v3520 = vpop.f32.mrb[0].mxu0
        %v3521 = vadd.f32 0.0, %v3520
        %v3522 = vpop.f32.mrb[0].mxu0
        %v3523 = vadd.f32 0.0, %v3522
        %3524 = vmatprep.mubr.bf16.mxu0 %v1243
        %3525 = vmatmul.mubr.bf16.gmra.mrb[0].mxu0 %v1242
        %v3526 = vpop.f32.mrb[0].mxu0
        %v3527 = vadd.f32 0.0, %v3526
        %v3528 = vpop.f32.mrb[0].mxu0
        %v3529 = vadd.f32 0.0, %v3528
        %v3530 = vpop.f32.mrb[0].mxu0
        %v3531 = vadd.f32 0.0, %v3530
        %v3532 = vpop.f32.mrb[0].mxu0
        %v3533 = vadd.f32 0.0, %v3532
        %3534 = vmatprep.mubr.bf16.mxu0 %v1247
        %3535 = vmatmul.mubr.bf16.gmra.mrb[0].mxu0 %v1246
        %v3536 = vpop.f32.mrb[0].mxu0
        %v3537 = vadd.f32 0.0, %v3536
        %v3538 = vpop.f32.mrb[0].mxu0
        %v3539 = vadd.f32 0.0, %v3538
        %v3540 = vpop.f32.mrb[0].mxu0
        %v3541 = vadd.f32 0.0, %v3540
        %v3542 = vpop.f32.mrb[0].mxu0
        %v3543 = vadd.f32 0.0, %v3542
        %3544 = vmatprep.mubr.bf16.mxu0 %v1251
        %3545 = vmatmul.mubr.bf16.gmra.mrb[0].mxu0 %v1250
        %v3546 = vpop.f32.mrb[0].mxu0
        %v3547 = vadd.f32 0.0, %v3546
        %v3548 = vpop.f32.mrb[0].mxu0
        %v3549 = vadd.f32 0.0, %v3548
        %v3550 = vpop.f32.mrb[0].mxu0
        %v3551 = vadd.f32 0.0, %v3550
        %v3552 = vpop.f32.mrb[0].mxu0
        %v3553 = vadd.f32 0.0, %v3552
        %3554 = vmatprep.mubr.bf16.mxu0 %v1255
        %3555 = vmatmul.mubr.bf16.gmra.mrb[0].mxu0 %v1254
        %v3556 = vpop.f32.mrb[0].mxu0
        %v3557 = vadd.f32 0.0, %v3556
        %v3558 = vpop.f32.mrb[0].mxu0
        %v3559 = vadd.f32 0.0, %v3558
        %v3560 = vpop.f32.mrb[0].mxu0
        %v3561 = vadd.f32 0.0, %v3560
        %v3562 = vpop.f32.mrb[0].mxu0
        %v3563 = vadd.f32 0.0, %v3562
        %3564 = vmatprep.mubr.bf16.mxu0 %v1259
        %3565 = vmatmul.mubr.bf16.gmra.mrb[0].mxu0 %v1258
        %v3566 = vpop.f32.mrb[0].mxu0
        %v3567 = vadd.f32 0.0, %v3566
        %v3568 = vpop.f32.mrb[0].mxu0
        %v3569 = vadd.f32 0.0, %v3568
        %v3570 = vpop.f32.mrb[0].mxu0
        %v3571 = vadd.f32 0.0, %v3570
        %v3572 = vpop.f32.mrb[0].mxu0
        %v3573 = vadd.f32 0.0, %v3572
        %3574 = vmatprep.mubr.bf16.mxu0 %v1263
        %3575 = vmatmul.mubr.bf16.gmra.mrb[0].mxu0 %v1262
        %v3576 = vpop.f32.mrb[0].mxu0
        %v3577 = vadd.f32 0.0, %v3576
        %v3578 = vpop.f32.mrb[0].mxu0
        %v3579 = vadd.f32 0.0, %v3578
        %v3580 = vpop.f32.mrb[0].mxu0
        %v3581 = vadd.f32 0.0, %v3580
        %v3582 = vpop.f32.mrb[0].mxu0
        %v3583 = vadd.f32 0.0, %v3582
        %3584 = vmatprep.mubr.bf16.mxu0 %v1267
        %3585 = vmatmul.mubr.bf16.gmra.mrb[0].mxu0 %v1266
        %v3586 = vpop.f32.mrb[0].mxu0
        %v3587 = vadd.f32 0.0, %v3586
        %v3588 = vpop.f32.mrb[0].mxu0
        %v3589 = vadd.f32 0.0, %v3588
        %v3590 = vpop.f32.mrb[0].mxu0
        %v3591 = vadd.f32 0.0, %v3590
        %v3592 = vpop.f32.mrb[0].mxu0
        %v3593 = vadd.f32 0.0, %v3592
        %3594 = vmatprep.mubr.bf16.mxu0 %v1271
        %3595 = vmatmul.mubr.bf16.gmra.mrb[0].mxu0 %v1270
        %v3596 = vpop.f32.mrb[0].mxu0
        %v3597 = vadd.f32 0.0, %v3596
        %v3598 = vpop.f32.mrb[0].mxu0
        %v3599 = vadd.f32 0.0, %v3598
        %v3600 = vpop.f32.mrb[0].mxu0
        %v3601 = vadd.f32 0.0, %v3600
        %v3602 = vpop.f32.mrb[0].mxu0
        %v3603 = vadd.f32 0.0, %v3602
        %3604 = vmatprep.mubr.bf16.mxu0 %v1275
        %3605 = vmatmul.mubr.bf16.gmra.mrb[0].mxu0 %v1274
        %v3606 = vpop.f32.mrb[0].mxu0
        %v3607 = vadd.f32 0.0, %v3606
        %v3608 = vpop.f32.mrb[0].mxu0
        %v3609 = vadd.f32 0.0, %v3608
        %v3610 = vpop.f32.mrb[0].mxu0
        %v3611 = vadd.f32 0.0, %v3610
        %v3612 = vpop.f32.mrb[0].mxu0
        %v3613 = vadd.f32 0.0, %v3612
        %3614 = vmatprep.mubr.bf16.mxu0 %v1279
        %3615 = vmatmul.mubr.bf16.gmra.mrb[0].mxu0 %v1278
        %v3616 = vpop.f32.mrb[0].mxu0
        %v3617 = vadd.f32 0.0, %v3616
        %v3618 = vpop.f32.mrb[0].mxu0
        %v3619 = vadd.f32 0.0, %v3618
        %v3620 = vpop.f32.mrb[0].mxu0
        %v3621 = vadd.f32 0.0, %v3620
        %v3622 = vpop.f32.mrb[0].mxu0
        %v3623 = vadd.f32 0.0, %v3622
        %3624 = vmatprep.mubr.bf16.mxu0 %v1283
        %3625 = vmatmul.mubr.bf16.gmra.mrb[0].mxu0 %v1282
        %v3626 = vpop.f32.mrb[0].mxu0
        %v3627 = vadd.f32 0.0, %v3626
        %v3628 = vpop.f32.mrb[0].mxu0
        %v3629 = vadd.f32 0.0, %v3628
        %v3630 = vpop.f32.mrb[0].mxu0
        %v3631 = vadd.f32 0.0, %v3630
        %v3632 = vpop.f32.mrb[0].mxu0
        %v3633 = vadd.f32 0.0, %v3632
        %3634 = vmatprep.mubr.bf16.mxu0 %v1287
        %3635 = vmatmul.mubr.bf16.gmra.mrb[0].mxu0 %v1286
        %v3636 = vpop.f32.mrb[0].mxu0
        %v3637 = vadd.f32 0.0, %v3636
        %v3638 = vpop.f32.mrb[0].mxu0
        %v3639 = vadd.f32 0.0, %v3638
        %v3640 = vpop.f32.mrb[0].mxu0
        %v3641 = vadd.f32 0.0, %v3640
        %v3642 = vpop.f32.mrb[0].mxu0
        %v3643 = vadd.f32 0.0, %v3642
        %3644 = vmatprep.mubr.bf16.mxu0 %v1291
        %3645 = vmatmul.mubr.bf16.gmra.mrb[0].mxu0 %v1290
        %v3646 = vpop.f32.mrb[0].mxu0
        %v3647 = vadd.f32 0.0, %v3646
        %v3648 = vpop.f32.mrb[0].mxu0
        %v3649 = vadd.f32 0.0, %v3648
        %v3650 = vpop.f32.mrb[0].mxu0
        %v3651 = vadd.f32 0.0, %v3650
        %v3652 = vpop.f32.mrb[0].mxu0
        %v3653 = vadd.f32 0.0, %v3652
        %3654 = vmatprep.mubr.bf16.mxu0 %v1295
        %3655 = vmatmul.mubr.bf16.gmra.mrb[0].mxu0 %v1294
        %v3656 = vpop.f32.mrb[0].mxu0
        %v3657 = vadd.f32 0.0, %v3656
        %v3658 = vpop.f32.mrb[0].mxu0
        %v3659 = vadd.f32 0.0, %v3658
        %v3660 = vpop.f32.mrb[0].mxu0
        %v3661 = vadd.f32 0.0, %v3660
        %v3662 = vpop.f32.mrb[0].mxu0
        %v3663 = vadd.f32 0.0, %v3662
        %3664 = vmatprep.mubr.bf16.mxu0 %v1299
        %3665 = vmatmul.mubr.bf16.gmra.mrb[0].mxu0 %v1298
        %v3666 = vpop.f32.mrb[0].mxu0
        %v3667 = vadd.f32 0.0, %v3666
        %v3668 = vpop.f32.mrb[0].mxu0
        %v3669 = vadd.f32 0.0, %v3668
        %v3670 = vpop.f32.mrb[0].mxu0
        %v3671 = vadd.f32 0.0, %v3670
        %v3672 = vpop.f32.mrb[0].mxu0
        %v3673 = vadd.f32 0.0, %v3672
        %3674 = vmatprep.mubr.bf16.mxu0 %v1303
        %3675 = vmatmul.mubr.bf16.gmra.mrb[0].mxu0 %v1302
        %v3676 = vpop.f32.mrb[0].mxu0
        %v3677 = vadd.f32 0.0, %v3676
        %v3678 = vpop.f32.mrb[0].mxu0
        %v3679 = vadd.f32 0.0, %v3678
        %v3680 = vpop.f32.mrb[0].mxu0
        %v3681 = vadd.f32 0.0, %v3680
        %v3682 = vpop.f32.mrb[0].mxu0
        %v3683 = vadd.f32 0.0, %v3682
        %3684 = vmatprep.mubr.bf16.mxu0 %v1307
        %3685 = vmatmul.mubr.bf16.gmra.mrb[0].mxu0 %v1306
        %v3686 = vpop.f32.mrb[0].mxu0
        %v3687 = vadd.f32 0.0, %v3686
        %v3688 = vpop.f32.mrb[0].mxu0
        %v3689 = vadd.f32 0.0, %v3688
        %v3690 = vpop.f32.mrb[0].mxu0
        %v3691 = vadd.f32 0.0, %v3690
        %v3692 = vpop.f32.mrb[0].mxu0
        %v3693 = vadd.f32 0.0, %v3692
        %3694 = vmatprep.mubr.bf16.mxu0 %v1311
        %3695 = vmatmul.mubr.bf16.gmra.mrb[0].mxu0 %v1310
        %v3696 = vpop.f32.mrb[0].mxu0
        %v3697 = vadd.f32 0.0, %v3696
        %v3698 = vpop.f32.mrb[0].mxu0
        %v3699 = vadd.f32 0.0, %v3698
        %v3700 = vpop.f32.mrb[0].mxu0
        %v3701 = vadd.f32 0.0, %v3700
        %v3702 = vpop.f32.mrb[0].mxu0
        %v3703 = vadd.f32 0.0, %v3702
        %3704 = vmatprep.mubr.bf16.mxu0 %v1315
        %3705 = vmatmul.mubr.bf16.gmra.mrb[0].mxu0 %v1314
        %v3706 = vpop.f32.mrb[0].mxu0
        %v3707 = vadd.f32 0.0, %v3706
        %v3708 = vpop.f32.mrb[0].mxu0
        %v3709 = vadd.f32 0.0, %v3708
        %v3710 = vpop.f32.mrb[0].mxu0
        %v3711 = vadd.f32 0.0, %v3710
        %v3712 = vpop.f32.mrb[0].mxu0
        %v3713 = vadd.f32 0.0, %v3712
        %3714 = vmatprep.mubr.bf16.mxu0 %v1319
        %3715 = vmatmul.mubr.bf16.gmra.mrb[0].mxu0 %v1318
        %v3716 = vpop.f32.mrb[0].mxu0
        %v3717 = vadd.f32 0.0, %v3716
        %v3718 = vpop.f32.mrb[0].mxu0
        %v3719 = vadd.f32 0.0, %v3718
        %v3720 = vpop.f32.mrb[0].mxu0
        %v3721 = vadd.f32 0.0, %v3720
        %v3722 = vpop.f32.mrb[0].mxu0
        %v3723 = vadd.f32 0.0, %v3722
        %3724 = vmatprep.mubr.bf16.mxu0 %v1323
        %3725 = vmatmul.mubr.bf16.gmra.mrb[0].mxu0 %v1322
        %v3726 = vpop.f32.mrb[0].mxu0
        %v3727 = vadd.f32 0.0, %v3726
        %v3728 = vpop.f32.mrb[0].mxu0
        %v3729 = vadd.f32 0.0, %v3728
        %v3730 = vpop.f32.mrb[0].mxu0
        %v3731 = vadd.f32 0.0, %v3730
        %v3732 = vpop.f32.mrb[0].mxu0
        %v3733 = vadd.f32 0.0, %v3732
        %3734 = vmatprep.mubr.bf16.mxu0 %v1327
        %3735 = vmatmul.mubr.bf16.gmra.mrb[0].mxu0 %v1326
        %v3736 = vpop.f32.mrb[0].mxu0
        %v3737 = vadd.f32 0.0, %v3736
        %v3738 = vpop.f32.mrb[0].mxu0
        %v3739 = vadd.f32 0.0, %v3738
        %v3740 = vpop.f32.mrb[0].mxu0
        %v3741 = vadd.f32 0.0, %v3740
        %v3742 = vpop.f32.mrb[0].mxu0
        %v3743 = vadd.f32 0.0, %v3742
        %3744 = vmatprep.mubr.bf16.mxu0 %v1331
        %3745 = vmatmul.mubr.bf16.gmra.mrb[0].mxu0 %v1330
        %v3746 = vpop.f32.mrb[0].mxu0
        %v3747 = vadd.f32 0.0, %v3746
        %v3748 = vpop.f32.mrb[0].mxu0
        %v3749 = vadd.f32 0.0, %v3748
        %v3750 = vpop.f32.mrb[0].mxu0
        %v3751 = vadd.f32 0.0, %v3750
        %v3752 = vpop.f32.mrb[0].mxu0
        %v3753 = vadd.f32 0.0, %v3752
        %3754 = vmatprep.mubr.bf16.mxu0 %v1335
        %3755 = vmatmul.mubr.bf16.gmra.mrb[0].mxu0 %v1334
        %v3756 = vpop.f32.mrb[0].mxu0
        %v3757 = vadd.f32 0.0, %v3756
        %v3758 = vpop.f32.mrb[0].mxu0
        %v3759 = vadd.f32 0.0, %v3758
        %v3760 = vpop.f32.mrb[0].mxu0
        %v3761 = vadd.f32 0.0, %v3760
        %v3762 = vpop.f32.mrb[0].mxu0
        %v3763 = vadd.f32 0.0, %v3762
        %3764 = vmatprep.mubr.bf16.mxu0 %v1339
        %3765 = vmatmul.mubr.bf16.gmra.mrb[0].mxu0 %v1338
        %v3766 = vpop.f32.mrb[0].mxu0
        %v3767 = vadd.f32 0.0, %v3766
        %v3768 = vpop.f32.mrb[0].mxu0
        %v3769 = vadd.f32 0.0, %v3768
        %v3770 = vpop.f32.mrb[0].mxu0
        %v3771 = vadd.f32 0.0, %v3770
        %v3772 = vpop.f32.mrb[0].mxu0
        %v3773 = vadd.f32 0.0, %v3772
        %3774 = vmatprep.mubr.bf16.mxu0 %v1343
        %3775 = vmatmul.mubr.bf16.gmra.mrb[0].mxu0 %v1342
        %v3776 = vpop.f32.mrb[0].mxu0
        %v3777 = vadd.f32 0.0, %v3776
        %v3778 = vpop.f32.mrb[0].mxu0
        %v3779 = vadd.f32 0.0, %v3778
        %v3780 = vpop.f32.mrb[0].mxu0
        %v3781 = vadd.f32 0.0, %v3780
        %v3782 = vpop.f32.mrb[0].mxu0
        %v3783 = vadd.f32 0.0, %v3782
        %3784 = vmatprep.mubr.bf16.mxu0 %v1347
        %3785 = vmatmul.mubr.bf16.gmra.mrb[0].mxu0 %v1346
        %v3786 = vpop.f32.mrb[0].mxu0
        %v3787 = vadd.f32 0.0, %v3786
        %v3788 = vpop.f32.mrb[0].mxu0
        %v3789 = vadd.f32 0.0, %v3788
        %v3790 = vpop.f32.mrb[0].mxu0
        %v3791 = vadd.f32 0.0, %v3790
        %v3792 = vpop.f32.mrb[0].mxu0
        %v3793 = vadd.f32 0.0, %v3792
        %3794 = vmatprep.mubr.bf16.mxu0 %v1351
        %3795 = vmatmul.mubr.bf16.gmra.mrb[0].mxu0 %v1350
        %v3796 = vpop.f32.mrb[0].mxu0
        %v3797 = vadd.f32 0.0, %v3796
        %v3798 = vpop.f32.mrb[0].mxu0
        %v3799 = vadd.f32 0.0, %v3798
        %v3800 = vpop.f32.mrb[0].mxu0
        %v3801 = vadd.f32 0.0, %v3800
        %v3802 = vpop.f32.mrb[0].mxu0
        %v3803 = vadd.f32 0.0, %v3802
        %3804 = vdwg.mxu0
        %3805 = vmatprep.subr.bf16.mxu0 %v3339
        %3806 = vmatpush1.bf16.xpose.msra.mxu0 %v3277
        %3807 = vmatprep.subr.bf16.mxu0 %v3343
        %3808 = vmatpush1.bf16.xpose.msra.mxu0 %v3279
        %3809 = vmatprep.subr.bf16.mxu0 %v3347
        %3810 = vmatpush1.bf16.xpose.msra.mxu0 %v3281
        %3811 = vmatprep.subr.bf16.mxu0 %v3351
        %3812 = vmatpush1.bf16.xpose.msra.mxu0 %v3283
        %3813 = vmatprep.subr.bf16.mxu0 %v3355
        %3814 = vmatpush1.bf16.xpose.msra.mxu0 %v3285
        %3815 = vmatprep.subr.bf16.mxu0 %v3359
        %3816 = vmatpush1.bf16.xpose.msra.mxu0 %v3287
        %3817 = vmatprep.subr.bf16.mxu0 %v3363
        %3818 = vmatpush1.bf16.xpose.msra.mxu0 %v3289
        %3819 = vmatprep.subr.bf16.mxu0 %v3367
        %3820 = vmatpush1.bf16.xpose.msra.mxu0 %v3291
        %3821 = vmatprep.subr.bf16.mxu0 %v3371
        %3822 = vmatpush1.bf16.xpose.msra.mxu0 %v3293
        %3823 = vmatprep.subr.bf16.mxu0 %v3375
        %3824 = vmatpush1.bf16.xpose.msra.mxu0 %v3295
        %3825 = vmatprep.subr.bf16.mxu0 %v3379
        %3826 = vmatpush1.bf16.xpose.msra.mxu0 %v3297
        %3827 = vmatprep.subr.bf16.mxu0 %v3383
        %3828 = vmatpush1.bf16.xpose.msra.mxu0 %v3299
        %3829 = vmatprep.subr.bf16.mxu0 %v3387
        %3830 = vmatpush1.bf16.xpose.msra.mxu0 %v3301
        %3831 = vmatprep.subr.bf16.mxu0 %v3391
        %3832 = vmatpush1.bf16.xpose.msra.mxu0 %v3303
        %3833 = vmatprep.subr.bf16.mxu0 %v3395
        %3834 = vmatpush1.bf16.xpose.msra.mxu0 %v3305
        %3835 = vmatprep.subr.bf16.mxu0 %v3425
        %3836 = vmatpush1.bf16.xpose.msra.mxu0 %v3325
        %3837 = vmatprep.mubr.bf16.mxu0 %v1225
        %3838 = vmatmul.mubr.bf16.gmra.mrb[0].mxu0 %v1224
        %v3839 = vpop.f32.mrb[0].mxu0
        %v3840 = vadd.f32 %v3477, %v3839
        %v3841 = vpop.f32.mrb[0].mxu0
        %v3842 = vadd.f32 %v3479, %v3841
        %v3843 = vpop.f32.mrb[0].mxu0
        %v3844 = vadd.f32 %v3481, %v3843
        %v3845 = vpop.f32.mrb[0].mxu0
        %v3846 = vadd.f32 %v3483, %v3845
        %3847 = vmatprep.mubr.bf16.mxu0 %v1229
        %3848 = vmatmul.mubr.bf16.gmra.mrb[0].mxu0 %v1228
        %v3849 = vpop.f32.mrb[0].mxu0
        %v3850 = vadd.f32 %v3487, %v3849
        %v3851 = vpop.f32.mrb[0].mxu0
        %v3852 = vadd.f32 %v3489, %v3851
        %v3853 = vpop.f32.mrb[0].mxu0
        %v3854 = vadd.f32 %v3491, %v3853
        %v3855 = vpop.f32.mrb[0].mxu0
        %v3856 = vadd.f32 %v3493, %v3855
        %3857 = vmatprep.mubr.bf16.mxu0 %v1233
        %3858 = vmatmul.mubr.bf16.gmra.mrb[0].mxu0 %v1232
        %v3859 = vpop.f32.mrb[0].mxu0
        %v3860 = vadd.f32 %v3497, %v3859
        %v3861 = vpop.f32.mrb[0].mxu0
        %v3862 = vadd.f32 %v3499, %v3861
        %v3863 = vpop.f32.mrb[0].mxu0
        %v3864 = vadd.f32 %v3501, %v3863
        %v3865 = vpop.f32.mrb[0].mxu0
        %v3866 = vadd.f32 %v3503, %v3865
        %3867 = vmatprep.mubr.bf16.mxu0 %v1237
        %3868 = vmatmul.mubr.bf16.gmra.mrb[0].mxu0 %v1236
        %v3869 = vpop.f32.mrb[0].mxu0
        %v3870 = vadd.f32 %v3507, %v3869
        %v3871 = vpop.f32.mrb[0].mxu0
        %v3872 = vadd.f32 %v3509, %v3871
        %v3873 = vpop.f32.mrb[0].mxu0
        %v3874 = vadd.f32 %v3511, %v3873
        %v3875 = vpop.f32.mrb[0].mxu0
        %v3876 = vadd.f32 %v3513, %v3875
        %3877 = vmatprep.mubr.bf16.mxu0 %v1241
        %3878 = vmatmul.mubr.bf16.gmra.mrb[0].mxu0 %v1240
        %v3879 = vpop.f32.mrb[0].mxu0
        %v3880 = vadd.f32 %v3517, %v3879
        %v3881 = vpop.f32.mrb[0].mxu0
        %v3882 = vadd.f32 %v3519, %v3881
        %v3883 = vpop.f32.mrb[0].mxu0
        %v3884 = vadd.f32 %v3521, %v3883
        %v3885 = vpop.f32.mrb[0].mxu0
        %v3886 = vadd.f32 %v3523, %v3885
        %3887 = vmatprep.mubr.bf16.mxu0 %v1245
        %3888 = vmatmul.mubr.bf16.gmra.mrb[0].mxu0 %v1244
        %v3889 = vpop.f32.mrb[0].mxu0
        %v3890 = vadd.f32 %v3527, %v3889
        %v3891 = vpop.f32.mrb[0].mxu0
        %v3892 = vadd.f32 %v3529, %v3891
        %v3893 = vpop.f32.mrb[0].mxu0
        %v3894 = vadd.f32 %v3531, %v3893
        %v3895 = vpop.f32.mrb[0].mxu0
        %v3896 = vadd.f32 %v3533, %v3895
        %3897 = vmatprep.mubr.bf16.mxu0 %v1249
        %3898 = vmatmul.mubr.bf16.gmra.mrb[0].mxu0 %v1248
        %v3899 = vpop.f32.mrb[0].mxu0
        %v3900 = vadd.f32 %v3537, %v3899
        %v3901 = vpop.f32.mrb[0].mxu0
        %v3902 = vadd.f32 %v3539, %v3901
        %v3903 = vpop.f32.mrb[0].mxu0
        %v3904 = vadd.f32 %v3541, %v3903
        %v3905 = vpop.f32.mrb[0].mxu0
        %v3906 = vadd.f32 %v3543, %v3905
        %3907 = vmatprep.mubr.bf16.mxu0 %v1253
        %3908 = vmatmul.mubr.bf16.gmra.mrb[0].mxu0 %v1252
        %v3909 = vpop.f32.mrb[0].mxu0
        %v3910 = vadd.f32 %v3547, %v3909
        %v3911 = vpop.f32.mrb[0].mxu0
        %v3912 = vadd.f32 %v3549, %v3911
        %v3913 = vpop.f32.mrb[0].mxu0
        %v3914 = vadd.f32 %v3551, %v3913
        %v3915 = vpop.f32.mrb[0].mxu0
        %v3916 = vadd.f32 %v3553, %v3915
        %3917 = vmatprep.mubr.bf16.mxu0 %v1257
        %3918 = vmatmul.mubr.bf16.gmra.mrb[0].mxu0 %v1256
        %v3919 = vpop.f32.mrb[0].mxu0
        %v3920 = vadd.f32 %v3557, %v3919
        %v3921 = vpop.f32.mrb[0].mxu0
        %v3922 = vadd.f32 %v3559, %v3921
        %v3923 = vpop.f32.mrb[0].mxu0
        %v3924 = vadd.f32 %v3561, %v3923
        %v3925 = vpop.f32.mrb[0].mxu0
        %v3926 = vadd.f32 %v3563, %v3925
        %3927 = vmatprep.mubr.bf16.mxu0 %v1261
        %3928 = vmatmul.mubr.bf16.gmra.mrb[0].mxu0 %v1260
        %v3929 = vpop.f32.mrb[0].mxu0
        %v3930 = vadd.f32 %v3567, %v3929
        %v3931 = vpop.f32.mrb[0].mxu0
        %v3932 = vadd.f32 %v3569, %v3931
        %v3933 = vpop.f32.mrb[0].mxu0
        %v3934 = vadd.f32 %v3571, %v3933
        %v3935 = vpop.f32.mrb[0].mxu0
        %v3936 = vadd.f32 %v3573, %v3935
        %3937 = vmatprep.mubr.bf16.mxu0 %v1265
        %3938 = vmatmul.mubr.bf16.gmra.mrb[0].mxu0 %v1264
        %v3939 = vpop.f32.mrb[0].mxu0
        %v3940 = vadd.f32 %v3577, %v3939
        %v3941 = vpop.f32.mrb[0].mxu0
        %v3942 = vadd.f32 %v3579, %v3941
        %v3943 = vpop.f32.mrb[0].mxu0
        %v3944 = vadd.f32 %v3581, %v3943
        %v3945 = vpop.f32.mrb[0].mxu0
        %v3946 = vadd.f32 %v3583, %v3945
        %3947 = vmatprep.mubr.bf16.mxu0 %v1269
        %3948 = vmatmul.mubr.bf16.gmra.mrb[0].mxu0 %v1268
        %v3949 = vpop.f32.mrb[0].mxu0
        %v3950 = vadd.f32 %v3587, %v3949
        %v3951 = vpop.f32.mrb[0].mxu0
        %v3952 = vadd.f32 %v3589, %v3951
        %v3953 = vpop.f32.mrb[0].mxu0
        %v3954 = vadd.f32 %v3591, %v3953
        %v3955 = vpop.f32.mrb[0].mxu0
        %v3956 = vadd.f32 %v3593, %v3955
        %3957 = vmatprep.mubr.bf16.mxu0 %v1273
        %3958 = vmatmul.mubr.bf16.gmra.mrb[0].mxu0 %v1272
        %v3959 = vpop.f32.mrb[0].mxu0
        %v3960 = vadd.f32 %v3597, %v3959
        %v3961 = vpop.f32.mrb[0].mxu0
        %v3962 = vadd.f32 %v3599, %v3961
        %v3963 = vpop.f32.mrb[0].mxu0
        %v3964 = vadd.f32 %v3601, %v3963
        %v3965 = vpop.f32.mrb[0].mxu0
        %v3966 = vadd.f32 %v3603, %v3965
        %3967 = vmatprep.mubr.bf16.mxu0 %v1277
        %3968 = vmatmul.mubr.bf16.gmra.mrb[0].mxu0 %v1276
        %v3969 = vpop.f32.mrb[0].mxu0
        %v3970 = vadd.f32 %v3607, %v3969
        %v3971 = vpop.f32.mrb[0].mxu0
        %v3972 = vadd.f32 %v3609, %v3971
        %v3973 = vpop.f32.mrb[0].mxu0
        %v3974 = vadd.f32 %v3611, %v3973
        %v3975 = vpop.f32.mrb[0].mxu0
        %v3976 = vadd.f32 %v3613, %v3975
        %3977 = vmatprep.mubr.bf16.mxu0 %v1281
        %3978 = vmatmul.mubr.bf16.gmra.mrb[0].mxu0 %v1280
        %v3979 = vpop.f32.mrb[0].mxu0
        %v3980 = vadd.f32 %v3617, %v3979
        %v3981 = vpop.f32.mrb[0].mxu0
        %v3982 = vadd.f32 %v3619, %v3981
        %v3983 = vpop.f32.mrb[0].mxu0
        %v3984 = vadd.f32 %v3621, %v3983
        %v3985 = vpop.f32.mrb[0].mxu0
        %v3986 = vadd.f32 %v3623, %v3985
        %3987 = vmatprep.mubr.bf16.mxu0 %v1285
        %3988 = vmatmul.mubr.bf16.gmra.mrb[0].mxu0 %v1284
        %v3989 = vpop.f32.mrb[0].mxu0
        %v3990 = vadd.f32 %v3627, %v3989
        %v3991 = vpop.f32.mrb[0].mxu0
        %v3992 = vadd.f32 %v3629, %v3991
        %v3993 = vpop.f32.mrb[0].mxu0
        %v3994 = vadd.f32 %v3631, %v3993
        %v3995 = vpop.f32.mrb[0].mxu0
        %v3996 = vadd.f32 %v3633, %v3995
        %3997 = vmatprep.mubr.bf16.mxu0 %v1289
        %3998 = vmatmul.mubr.bf16.gmra.mrb[0].mxu0 %v1288
        %v3999 = vpop.f32.mrb[0].mxu0
        %v4000 = vadd.f32 %v3637, %v3999
        %v4001 = vpop.f32.mrb[0].mxu0
        %v4002 = vadd.f32 %v3639, %v4001
        %v4003 = vpop.f32.mrb[0].mxu0
        %v4004 = vadd.f32 %v3641, %v4003
        %v4005 = vpop.f32.mrb[0].mxu0
        %v4006 = vadd.f32 %v3643, %v4005
        %4007 = vmatprep.mubr.bf16.mxu0 %v1293
        %4008 = vmatmul.mubr.bf16.gmra.mrb[0].mxu0 %v1292
        %v4009 = vpop.f32.mrb[0].mxu0
        %v4010 = vadd.f32 %v3647, %v4009
        %v4011 = vpop.f32.mrb[0].mxu0
        %v4012 = vadd.f32 %v3649, %v4011
        %v4013 = vpop.f32.mrb[0].mxu0
        %v4014 = vadd.f32 %v3651, %v4013
        %v4015 = vpop.f32.mrb[0].mxu0
        %v4016 = vadd.f32 %v3653, %v4015
        %4017 = vmatprep.mubr.bf16.mxu0 %v1297
        %4018 = vmatmul.mubr.bf16.gmra.mrb[0].mxu0 %v1296
        %v4019 = vpop.f32.mrb[0].mxu0
        %v4020 = vadd.f32 %v3657, %v4019
        %v4021 = vpop.f32.mrb[0].mxu0
        %v4022 = vadd.f32 %v3659, %v4021
        %v4023 = vpop.f32.mrb[0].mxu0
        %v4024 = vadd.f32 %v3661, %v4023
        %v4025 = vpop.f32.mrb[0].mxu0
        %v4026 = vadd.f32 %v3663, %v4025
        %4027 = vmatprep.mubr.bf16.mxu0 %v1301
        %4028 = vmatmul.mubr.bf16.gmra.mrb[0].mxu0 %v1300
        %v4029 = vpop.f32.mrb[0].mxu0
        %v4030 = vadd.f32 %v3667, %v4029
        %v4031 = vpop.f32.mrb[0].mxu0
        %v4032 = vadd.f32 %v3669, %v4031
        %v4033 = vpop.f32.mrb[0].mxu0
        %v4034 = vadd.f32 %v3671, %v4033
        %v4035 = vpop.f32.mrb[0].mxu0
        %v4036 = vadd.f32 %v3673, %v4035
        %4037 = vmatprep.mubr.bf16.mxu0 %v1305
        %4038 = vmatmul.mubr.bf16.gmra.mrb[0].mxu0 %v1304
        %v4039 = vpop.f32.mrb[0].mxu0
        %v4040 = vadd.f32 %v3677, %v4039
        %v4041 = vpop.f32.mrb[0].mxu0
        %v4042 = vadd.f32 %v3679, %v4041
        %v4043 = vpop.f32.mrb[0].mxu0
        %v4044 = vadd.f32 %v3681, %v4043
        %v4045 = vpop.f32.mrb[0].mxu0
        %v4046 = vadd.f32 %v3683, %v4045
        %4047 = vmatprep.mubr.bf16.mxu0 %v1309
        %4048 = vmatmul.mubr.bf16.gmra.mrb[0].mxu0 %v1308
        %v4049 = vpop.f32.mrb[0].mxu0
        %v4050 = vadd.f32 %v3687, %v4049
        %v4051 = vpop.f32.mrb[0].mxu0
        %v4052 = vadd.f32 %v3689, %v4051
        %v4053 = vpop.f32.mrb[0].mxu0
        %v4054 = vadd.f32 %v3691, %v4053
        %v4055 = vpop.f32.mrb[0].mxu0
        %v4056 = vadd.f32 %v3693, %v4055
        %4057 = vmatprep.mubr.bf16.mxu0 %v1313
        %4058 = vmatmul.mubr.bf16.gmra.mrb[0].mxu0 %v1312
        %v4059 = vpop.f32.mrb[0].mxu0
        %v4060 = vadd.f32 %v3697, %v4059
        %v4061 = vpop.f32.mrb[0].mxu0
        %v4062 = vadd.f32 %v3699, %v4061
        %v4063 = vpop.f32.mrb[0].mxu0
        %v4064 = vadd.f32 %v3701, %v4063
        %v4065 = vpop.f32.mrb[0].mxu0
        %v4066 = vadd.f32 %v3703, %v4065
        %4067 = vmatprep.mubr.bf16.mxu0 %v1317
        %4068 = vmatmul.mubr.bf16.gmra.mrb[0].mxu0 %v1316
        %v4069 = vpop.f32.mrb[0].mxu0
        %v4070 = vadd.f32 %v3707, %v4069
        %v4071 = vpop.f32.mrb[0].mxu0
        %v4072 = vadd.f32 %v3709, %v4071
        %v4073 = vpop.f32.mrb[0].mxu0
        %v4074 = vadd.f32 %v3711, %v4073
        %v4075 = vpop.f32.mrb[0].mxu0
        %v4076 = vadd.f32 %v3713, %v4075
        %4077 = vmatprep.mubr.bf16.mxu0 %v1321
        %4078 = vmatmul.mubr.bf16.gmra.mrb[0].mxu0 %v1320
        %v4079 = vpop.f32.mrb[0].mxu0
        %v4080 = vadd.f32 %v3717, %v4079
        %v4081 = vpop.f32.mrb[0].mxu0
        %v4082 = vadd.f32 %v3719, %v4081
        %v4083 = vpop.f32.mrb[0].mxu0
        %v4084 = vadd.f32 %v3721, %v4083
        %v4085 = vpop.f32.mrb[0].mxu0
        %v4086 = vadd.f32 %v3723, %v4085
        %4087 = vmatprep.mubr.bf16.mxu0 %v1325
        %4088 = vmatmul.mubr.bf16.gmra.mrb[0].mxu0 %v1324
        %v4089 = vpop.f32.mrb[0].mxu0
        %v4090 = vadd.f32 %v3727, %v4089
        %v4091 = vpop.f32.mrb[0].mxu0
        %v4092 = vadd.f32 %v3729, %v4091
        %v4093 = vpop.f32.mrb[0].mxu0
        %v4094 = vadd.f32 %v3731, %v4093
        %v4095 = vpop.f32.mrb[0].mxu0
        %v4096 = vadd.f32 %v3733, %v4095
        %4097 = vmatprep.mubr.bf16.mxu0 %v1329
        %4098 = vmatmul.mubr.bf16.gmra.mrb[0].mxu0 %v1328
        %v4099 = vpop.f32.mrb[0].mxu0
        %v4100 = vadd.f32 %v3737, %v4099
        %v4101 = vpop.f32.mrb[0].mxu0
        %v4102 = vadd.f32 %v3739, %v4101
        %v4103 = vpop.f32.mrb[0].mxu0
        %v4104 = vadd.f32 %v3741, %v4103
        %v4105 = vpop.f32.mrb[0].mxu0
        %v4106 = vadd.f32 %v3743, %v4105
        %4107 = vmatprep.mubr.bf16.mxu0 %v1333
        %4108 = vmatmul.mubr.bf16.gmra.mrb[0].mxu0 %v1332
        %v4109 = vpop.f32.mrb[0].mxu0
        %v4110 = vadd.f32 %v3747, %v4109
        %v4111 = vpop.f32.mrb[0].mxu0
        %v4112 = vadd.f32 %v3749, %v4111
        %v4113 = vpop.f32.mrb[0].mxu0
        %v4114 = vadd.f32 %v3751, %v4113
        %v4115 = vpop.f32.mrb[0].mxu0
        %v4116 = vadd.f32 %v3753, %v4115
        %4117 = vmatprep.mubr.bf16.mxu0 %v1337
        %4118 = vmatmul.mubr.bf16.gmra.mrb[0].mxu0 %v1336
        %v4119 = vpop.f32.mrb[0].mxu0
        %v4120 = vadd.f32 %v3757, %v4119
        %v4121 = vpop.f32.mrb[0].mxu0
        %v4122 = vadd.f32 %v3759, %v4121
        %v4123 = vpop.f32.mrb[0].mxu0
        %v4124 = vadd.f32 %v3761, %v4123
        %v4125 = vpop.f32.mrb[0].mxu0
        %v4126 = vadd.f32 %v3763, %v4125
        %4127 = vmatprep.mubr.bf16.mxu0 %v1341
        %4128 = vmatmul.mubr.bf16.gmra.mrb[0].mxu0 %v1340
        %v4129 = vpop.f32.mrb[0].mxu0
        %v4130 = vadd.f32 %v3767, %v4129
        %v4131 = vpop.f32.mrb[0].mxu0
        %v4132 = vadd.f32 %v3769, %v4131
        %v4133 = vpop.f32.mrb[0].mxu0
        %v4134 = vadd.f32 %v3771, %v4133
        %v4135 = vpop.f32.mrb[0].mxu0
        %v4136 = vadd.f32 %v3773, %v4135
        %4137 = vmatprep.mubr.bf16.mxu0 %v1345
        %4138 = vmatmul.mubr.bf16.gmra.mrb[0].mxu0 %v1344
        %v4139 = vpop.f32.mrb[0].mxu0
        %v4140 = vadd.f32 %v3777, %v4139
        %v4141 = vpop.f32.mrb[0].mxu0
        %v4142 = vadd.f32 %v3779, %v4141
        %v4143 = vpop.f32.mrb[0].mxu0
        %v4144 = vadd.f32 %v3781, %v4143
        %v4145 = vpop.f32.mrb[0].mxu0
        %v4146 = vadd.f32 %v3783, %v4145
        %4147 = vmatprep.mubr.bf16.mxu0 %v1349
        %4148 = vmatmul.mubr.bf16.gmra.mrb[0].mxu0 %v1348
        %v4149 = vpop.f32.mrb[0].mxu0
        %v4150 = vadd.f32 %v3787, %v4149
        %v4151 = vpop.f32.mrb[0].mxu0
        %v4152 = vadd.f32 %v3789, %v4151
        %v4153 = vpop.f32.mrb[0].mxu0
        %v4154 = vadd.f32 %v3791, %v4153
        %v4155 = vpop.f32.mrb[0].mxu0
        %v4156 = vadd.f32 %v3793, %v4155
        %4157 = vmatprep.mubr.bf16.mxu0 %v1353
        %4158 = vmatmul.mubr.bf16.gmra.mrb[0].mxu0 %v1352
        %v4159 = vpop.f32.mrb[0].mxu0
        %v4160 = vadd.f32 %v3797, %v4159
        %v4161 = vpop.f32.mrb[0].mxu0
        %v4162 = vadd.f32 %v3799, %v4161
        %v4163 = vpop.f32.mrb[0].mxu0
        %v4164 = vadd.f32 %v3801, %v4163
        %v4165 = vpop.f32.mrb[0].mxu0
        %v4166 = vadd.f32 %v3803, %v4165
        %4167 = vdwg.mxu0
        %v4168 = vmul.f32 %v3840, %v3840
        %v4169 = vmul.f32 %v3842, %v3842
        %v4170 = vmul.f32 %v3844, %v3844
        %v4171 = vmul.f32 %v3846, %v3846
        %v4172 = vmul.f32 %v3850, %v3850
        %v4173 = vmul.f32 %v3852, %v3852
        %v4174 = vmul.f32 %v3854, %v3854
        %v4175 = vmul.f32 %v3856, %v3856
        %v4176 = vmul.f32 %v3860, %v3860
        %v4177 = vmul.f32 %v3862, %v3862
        %v4178 = vmul.f32 %v3864, %v3864
        %v4179 = vmul.f32 %v3866, %v3866
        %v4180 = vmul.f32 %v3870, %v3870
        %v4181 = vmul.f32 %v3872, %v3872
        %v4182 = vmul.f32 %v3874, %v3874
        %v4183 = vmul.f32 %v3876, %v3876
        %v4184 = vmul.f32 %v3880, %v3880
        %v4185 = vmul.f32 %v3882, %v3882
        %v4186 = vmul.f32 %v3884, %v3884
        %v4187 = vmul.f32 %v3886, %v3886
        %v4188 = vmul.f32 %v3890, %v3890
        %v4189 = vmul.f32 %v3892, %v3892
        %v4190 = vmul.f32 %v3894, %v3894
        %v4191 = vmul.f32 %v3896, %v3896
        %v4192 = vmul.f32 %v3900, %v3900
        %v4193 = vmul.f32 %v3902, %v3902
        %v4194 = vmul.f32 %v3904, %v3904
        %v4195 = vmul.f32 %v3906, %v3906
        %v4196 = vmul.f32 %v3910, %v3910
        %v4197 = vmul.f32 %v3912, %v3912
        %v4198 = vmul.f32 %v3914, %v3914
        %v4199 = vmul.f32 %v3916, %v3916
        %v4200 = vmul.f32 %v3920, %v3920
        %v4201 = vmul.f32 %v3922, %v3922
        %v4202 = vmul.f32 %v3924, %v3924
        %v4203 = vmul.f32 %v3926, %v3926
        %v4204 = vmul.f32 %v3930, %v3930
        %v4205 = vmul.f32 %v3932, %v3932
        %v4206 = vmul.f32 %v3934, %v3934
        %v4207 = vmul.f32 %v3936, %v3936
        %v4208 = vmul.f32 %v3940, %v3940
        %v4209 = vmul.f32 %v3942, %v3942
        %v4210 = vmul.f32 %v3944, %v3944
        %v4211 = vmul.f32 %v3946, %v3946
        %v4212 = vmul.f32 %v3950, %v3950
        %v4213 = vmul.f32 %v3952, %v3952
        %v4214 = vmul.f32 %v3954, %v3954
        %v4215 = vmul.f32 %v3956, %v3956
        %v4216 = vmul.f32 %v3960, %v3960
        %v4217 = vmul.f32 %v3962, %v3962
        %v4218 = vmul.f32 %v3964, %v3964
        %v4219 = vmul.f32 %v3966, %v3966
        %v4220 = vmul.f32 %v3970, %v3970
        %v4221 = vmul.f32 %v3972, %v3972
        %v4222 = vmul.f32 %v3974, %v3974
        %v4223 = vmul.f32 %v3976, %v3976
        %v4224 = vmul.f32 %v3980, %v3980
        %v4225 = vmul.f32 %v3982, %v3982
        %v4226 = vmul.f32 %v3984, %v3984
        %v4227 = vmul.f32 %v3986, %v3986
        %v4228 = vmul.f32 %v3990, %v3990
        %v4229 = vmul.f32 %v3992, %v3992
        %v4230 = vmul.f32 %v3994, %v3994
        %v4231 = vmul.f32 %v3996, %v3996
        %v4232 = vmul.f32 %v4000, %v4000
        %v4233 = vmul.f32 %v4002, %v4002
        %v4234 = vmul.f32 %v4004, %v4004
        %v4235 = vmul.f32 %v4006, %v4006
        %v4236 = vmul.f32 %v4010, %v4010
        %v4237 = vmul.f32 %v4012, %v4012
        %v4238 = vmul.f32 %v4014, %v4014
        %v4239 = vmul.f32 %v4016, %v4016
        %v4240 = vmul.f32 %v4020, %v4020
        %v4241 = vmul.f32 %v4022, %v4022
        %v4242 = vmul.f32 %v4024, %v4024
        %v4243 = vmul.f32 %v4026, %v4026
        %v4244 = vmul.f32 %v4030, %v4030
        %v4245 = vmul.f32 %v4032, %v4032
        %v4246 = vmul.f32 %v4034, %v4034
        %v4247 = vmul.f32 %v4036, %v4036
        %v4248 = vmul.f32 %v4040, %v4040
        %v4249 = vmul.f32 %v4042, %v4042
        %v4250 = vmul.f32 %v4044, %v4044
        %v4251 = vmul.f32 %v4046, %v4046
        %v4252 = vmul.f32 %v4050, %v4050
        %v4253 = vmul.f32 %v4052, %v4052
        %v4254 = vmul.f32 %v4054, %v4054
        %v4255 = vmul.f32 %v4056, %v4056
        %v4256 = vmul.f32 %v4060, %v4060
        %v4257 = vmul.f32 %v4062, %v4062
        %v4258 = vmul.f32 %v4064, %v4064
        %v4259 = vmul.f32 %v4066, %v4066
        %v4260 = vmul.f32 %v4070, %v4070
        %v4261 = vmul.f32 %v4072, %v4072
        %v4262 = vmul.f32 %v4074, %v4074
        %v4263 = vmul.f32 %v4076, %v4076
        %v4264 = vmul.f32 %v4080, %v4080
        %v4265 = vmul.f32 %v4082, %v4082
        %v4266 = vmul.f32 %v4084, %v4084
        %v4267 = vmul.f32 %v4086, %v4086
        %v4268 = vmul.f32 %v4090, %v4090
        %v4269 = vmul.f32 %v4092, %v4092
        %v4270 = vmul.f32 %v4094, %v4094
        %v4271 = vmul.f32 %v4096, %v4096
        %v4272 = vmul.f32 %v4100, %v4100
        %v4273 = vmul.f32 %v4102, %v4102
        %v4274 = vmul.f32 %v4104, %v4104
        %v4275 = vmul.f32 %v4106, %v4106
        %v4276 = vmul.f32 %v4110, %v4110
        %v4277 = vmul.f32 %v4112, %v4112
        %v4278 = vmul.f32 %v4114, %v4114
        %v4279 = vmul.f32 %v4116, %v4116
        %v4280 = vmul.f32 %v4120, %v4120
        %v4281 = vmul.f32 %v4122, %v4122
        %v4282 = vmul.f32 %v4124, %v4124
        %v4283 = vmul.f32 %v4126, %v4126
        %v4284 = vmul.f32 %v4130, %v4130
        %v4285 = vmul.f32 %v4132, %v4132
        %v4286 = vmul.f32 %v4134, %v4134
        %v4287 = vmul.f32 %v4136, %v4136
        %v4288 = vmul.f32 %v4140, %v4140
        %v4289 = vmul.f32 %v4142, %v4142
        %v4290 = vmul.f32 %v4144, %v4144
        %v4291 = vmul.f32 %v4146, %v4146
        %v4292 = vmul.f32 %v4150, %v4150
        %v4293 = vmul.f32 %v4152, %v4152
        %v4294 = vmul.f32 %v4154, %v4154
        %v4295 = vmul.f32 %v4156, %v4156
        %v4296 = vmul.f32 %v4160, %v4160
        %v4297 = vmul.f32 %v4162, %v4162
        %v4298 = vmul.f32 %v4164, %v4164
        %v4299 = vmul.f32 %v4166, %v4166
        %v4300 = vadd.f32 %v4168, %v4234
        %v4301 = vadd.f32 %v4169, %v4235
        %v4302 = vadd.f32 %v4170, %v4236
        %v4303 = vadd.f32 %v4171, %v4237
        %v4304 = vadd.f32 %v4172, %v4238
        %v4305 = vadd.f32 %v4173, %v4239
        %v4306 = vadd.f32 %v4174, %v4240
        %v4307 = vadd.f32 %v4175, %v4241
        %v4308 = vadd.f32 %v4176, %v4242
        %v4309 = vadd.f32 %v4177, %v4243
        %v4310 = vadd.f32 %v4178, %v4244
        %v4311 = vadd.f32 %v4179, %v4245
        %v4312 = vadd.f32 %v4180, %v4246
        %v4313 = vadd.f32 %v4181, %v4247
        %v4314 = vadd.f32 %v4182, %v4248
        %v4315 = vadd.f32 %v4183, %v4249
        %v4316 = vadd.f32 %v4184, %v4250
        %v4317 = vadd.f32 %v4185, %v4251
        %v4318 = vadd.f32 %v4186, %v4252
        %v4319 = vadd.f32 %v4187, %v4253
        %v4320 = vadd.f32 %v4188, %v4254
        %v4321 = vadd.f32 %v4189, %v4255
        %v4322 = vadd.f32 %v4190, %v4256
        %v4323 = vadd.f32 %v4191, %v4257
        %v4324 = vadd.f32 %v4192, %v4258
        %v4325 = vadd.f32 %v4193, %v4259
        %v4326 = vadd.f32 %v4194, %v4260
        %v4327 = vadd.f32 %v4195, %v4261
        %v4328 = vadd.f32 %v4196, %v4262
        %v4329 = vadd.f32 %v4197, %v4263
        %v4330 = vadd.f32 %v4198, %v4264
        %v4331 = vadd.f32 %v4199, %v4265
        %v4332 = vadd.f32 %v4200, %v4266
        %v4333 = vadd.f32 %v4201, %v4267
        %v4334 = vadd.f32 %v4202, %v4268
        %v4335 = vadd.f32 %v4203, %v4269
        %v4336 = vadd.f32 %v4204, %v4270
        %v4337 = vadd.f32 %v4205, %v4271
        %v4338 = vadd.f32 %v4206, %v4272
        %v4339 = vadd.f32 %v4207, %v4273
        %v4340 = vadd.f32 %v4208, %v4274
        %v4341 = vadd.f32 %v4209, %v4275
        %v4342 = vadd.f32 %v4210, %v4276
        %v4343 = vadd.f32 %v4211, %v4277
        %v4344 = vadd.f32 %v4212, %v4278
        %v4345 = vadd.f32 %v4213, %v4279
        %v4346 = vadd.f32 %v4214, %v4280
        %v4347 = vadd.f32 %v4215, %v4281
        %v4348 = vadd.f32 %v4216, %v4282
        %v4349 = vadd.f32 %v4217, %v4283
        %v4350 = vadd.f32 %v4218, %v4284
        %v4351 = vadd.f32 %v4219, %v4285
        %v4352 = vadd.f32 %v4220, %v4286
        %v4353 = vadd.f32 %v4221, %v4287
        %v4354 = vadd.f32 %v4222, %v4288
        %v4355 = vadd.f32 %v4223, %v4289
        %v4356 = vadd.f32 %v4224, %v4290
        %v4357 = vadd.f32 %v4225, %v4291
        %v4358 = vadd.f32 %v4226, %v4292
        %v4359 = vadd.f32 %v4227, %v4293
        %v4360 = vadd.f32 %v4228, %v4294
        %v4361 = vadd.f32 %v4229, %v4295
        %v4362 = vadd.f32 %v4230, %v4296
        %v4363 = vadd.f32 %v4231, %v4297
        %v4364 = vadd.f32 %v4232, %v4298
        %v4365 = vadd.f32 %v4233, %v4299
        %v4366 = vadd.f32 %v4300, 1e-06
        %v4367 = vadd.f32 %v4301, 1e-06
        %v4368 = vadd.f32 %v4302, 1e-06
        %v4369 = vadd.f32 %v4303, 1e-06
        %v4370 = vadd.f32 %v4304, 1e-06
        %v4371 = vadd.f32 %v4305, 1e-06
        %v4372 = vadd.f32 %v4306, 1e-06
        %v4373 = vadd.f32 %v4307, 1e-06
        %v4374 = vadd.f32 %v4308, 1e-06
        %v4375 = vadd.f32 %v4309, 1e-06
        %v4376 = vadd.f32 %v4310, 1e-06
        %v4377 = vadd.f32 %v4311, 1e-06
        %v4378 = vadd.f32 %v4312, 1e-06
        %v4379 = vadd.f32 %v4313, 1e-06
        %v4380 = vadd.f32 %v4314, 1e-06
        %v4381 = vadd.f32 %v4315, 1e-06
        %v4382 = vadd.f32 %v4316, 1e-06
        %v4383 = vadd.f32 %v4317, 1e-06
        %v4384 = vadd.f32 %v4318, 1e-06
        %v4385 = vadd.f32 %v4319, 1e-06
        %v4386 = vadd.f32 %v4320, 1e-06
        %v4387 = vadd.f32 %v4321, 1e-06
        %v4388 = vadd.f32 %v4322, 1e-06
        %v4389 = vadd.f32 %v4323, 1e-06
        %v4390 = vadd.f32 %v4324, 1e-06
        %v4391 = vadd.f32 %v4325, 1e-06
        %v4392 = vadd.f32 %v4326, 1e-06
        %v4393 = vadd.f32 %v4327, 1e-06
        %v4394 = vadd.f32 %v4328, 1e-06
        %v4395 = vadd.f32 %v4329, 1e-06
        %v4396 = vadd.f32 %v4330, 1e-06
        %v4397 = vadd.f32 %v4331, 1e-06
        %v4398 = vadd.f32 %v4332, 1e-06
        %v4399 = vadd.f32 %v4333, 1e-06
        %v4400 = vadd.f32 %v4334, 1e-06
        %v4401 = vadd.f32 %v4335, 1e-06
        %v4402 = vadd.f32 %v4336, 1e-06
        %v4403 = vadd.f32 %v4337, 1e-06
        %v4404 = vadd.f32 %v4338, 1e-06
        %v4405 = vadd.f32 %v4339, 1e-06
        %v4406 = vadd.f32 %v4340, 1e-06
        %v4407 = vadd.f32 %v4341, 1e-06
        %v4408 = vadd.f32 %v4342, 1e-06
        %v4409 = vadd.f32 %v4343, 1e-06
        %v4410 = vadd.f32 %v4344, 1e-06
        %v4411 = vadd.f32 %v4345, 1e-06
        %v4412 = vadd.f32 %v4346, 1e-06
        %v4413 = vadd.f32 %v4347, 1e-06
        %v4414 = vadd.f32 %v4348, 1e-06
        %v4415 = vadd.f32 %v4349, 1e-06
        %v4416 = vadd.f32 %v4350, 1e-06
        %v4417 = vadd.f32 %v4351, 1e-06
        %v4418 = vadd.f32 %v4352, 1e-06
        %v4419 = vadd.f32 %v4353, 1e-06
        %v4420 = vadd.f32 %v4354, 1e-06
        %v4421 = vadd.f32 %v4355, 1e-06
        %v4422 = vadd.f32 %v4356, 1e-06
        %v4423 = vadd.f32 %v4357, 1e-06
        %v4424 = vadd.f32 %v4358, 1e-06
        %v4425 = vadd.f32 %v4359, 1e-06
        %v4426 = vadd.f32 %v4360, 1e-06
        %v4427 = vadd.f32 %v4361, 1e-06
        %v4428 = vadd.f32 %v4362, 1e-06
        %v4429 = vadd.f32 %v4363, 1e-06
        %v4430 = vadd.f32 %v4364, 1e-06
        %v4431 = vadd.f32 %v4365, 1e-06
        %v4432 = vrsqrt.pop %v4366
        %v4433 = vmul.f32 %v4366, %v4432
        %vm4434 = vcmp.eq.f32.partialorder %v4366, inf
        %v4435 = vsel %vm4434, %v4366, %v4433
        %vm4436 = vcmp.eq.f32.partialorder %v4366, 0.0
        %v4437 = vand.u32 %v4366, 2147483648
        %v4438 = vsel %vm4436, %v4437, %v4435
        %v4439 = vrsqrt.pop %v4367
        %v4440 = vmul.f32 %v4367, %v4439
        %vm4441 = vcmp.eq.f32.partialorder %v4367, inf
        %v4442 = vsel %vm4441, %v4367, %v4440
        %vm4443 = vcmp.eq.f32.partialorder %v4367, 0.0
        %v4444 = vand.u32 %v4367, 2147483648
        %v4445 = vsel %vm4443, %v4444, %v4442
        %v4446 = vrsqrt.pop %v4368
        %v4447 = vmul.f32 %v4368, %v4446
        %vm4448 = vcmp.eq.f32.partialorder %v4368, inf
        %v4449 = vsel %vm4448, %v4368, %v4447
        %vm4450 = vcmp.eq.f32.partialorder %v4368, 0.0
        %v4451 = vand.u32 %v4368, 2147483648
        %v4452 = vsel %vm4450, %v4451, %v4449
        %v4453 = vrsqrt.pop %v4369
        %v4454 = vmul.f32 %v4369, %v4453
        %vm4455 = vcmp.eq.f32.partialorder %v4369, inf
        %v4456 = vsel %vm4455, %v4369, %v4454
        %vm4457 = vcmp.eq.f32.partialorder %v4369, 0.0
        %v4458 = vand.u32 %v4369, 2147483648
        %v4459 = vsel %vm4457, %v4458, %v4456
        %v4460 = vrsqrt.pop %v4370
        %v4461 = vmul.f32 %v4370, %v4460
        %vm4462 = vcmp.eq.f32.partialorder %v4370, inf
        %v4463 = vsel %vm4462, %v4370, %v4461
        %vm4464 = vcmp.eq.f32.partialorder %v4370, 0.0
        %v4465 = vand.u32 %v4370, 2147483648
        %v4466 = vsel %vm4464, %v4465, %v4463
        %v4467 = vrsqrt.pop %v4371
        %v4468 = vmul.f32 %v4371, %v4467
        %vm4469 = vcmp.eq.f32.partialorder %v4371, inf
        %v4470 = vsel %vm4469, %v4371, %v4468
        %vm4471 = vcmp.eq.f32.partialorder %v4371, 0.0
        %v4472 = vand.u32 %v4371, 2147483648
        %v4473 = vsel %vm4471, %v4472, %v4470
        %v4474 = vrsqrt.pop %v4372
        %v4475 = vmul.f32 %v4372, %v4474
        %vm4476 = vcmp.eq.f32.partialorder %v4372, inf
        %v4477 = vsel %vm4476, %v4372, %v4475
        %vm4478 = vcmp.eq.f32.partialorder %v4372, 0.0
        %v4479 = vand.u32 %v4372, 2147483648
        %v4480 = vsel %vm4478, %v4479, %v4477
        %v4481 = vrsqrt.pop %v4373
        %v4482 = vmul.f32 %v4373, %v4481
        %vm4483 = vcmp.eq.f32.partialorder %v4373, inf
        %v4484 = vsel %vm4483, %v4373, %v4482
        %vm4485 = vcmp.eq.f32.partialorder %v4373, 0.0
        %v4486 = vand.u32 %v4373, 2147483648
        %v4487 = vsel %vm4485, %v4486, %v4484
        %v4488 = vrsqrt.pop %v4374
        %v4489 = vmul.f32 %v4374, %v4488
        %vm4490 = vcmp.eq.f32.partialorder %v4374, inf
        %v4491 = vsel %vm4490, %v4374, %v4489
        %vm4492 = vcmp.eq.f32.partialorder %v4374, 0.0
        %v4493 = vand.u32 %v4374, 2147483648
        %v4494 = vsel %vm4492, %v4493, %v4491
        %v4495 = vrsqrt.pop %v4375
        %v4496 = vmul.f32 %v4375, %v4495
        %vm4497 = vcmp.eq.f32.partialorder %v4375, inf
        %v4498 = vsel %vm4497, %v4375, %v4496
        %vm4499 = vcmp.eq.f32.partialorder %v4375, 0.0
        %v4500 = vand.u32 %v4375, 2147483648
        %v4501 = vsel %vm4499, %v4500, %v4498
        %v4502 = vrsqrt.pop %v4376
        %v4503 = vmul.f32 %v4376, %v4502
        %vm4504 = vcmp.eq.f32.partialorder %v4376, inf
        %v4505 = vsel %vm4504, %v4376, %v4503
        %vm4506 = vcmp.eq.f32.partialorder %v4376, 0.0
        %v4507 = vand.u32 %v4376, 2147483648
        %v4508 = vsel %vm4506, %v4507, %v4505
        %v4509 = vrsqrt.pop %v4377
        %v4510 = vmul.f32 %v4377, %v4509
        %vm4511 = vcmp.eq.f32.partialorder %v4377, inf
        %v4512 = vsel %vm4511, %v4377, %v4510
        %vm4513 = vcmp.eq.f32.partialorder %v4377, 0.0
        %v4514 = vand.u32 %v4377, 2147483648
        %v4515 = vsel %vm4513, %v4514, %v4512
        %v4516 = vrsqrt.pop %v4378
        %v4517 = vmul.f32 %v4378, %v4516
        %vm4518 = vcmp.eq.f32.partialorder %v4378, inf
        %v4519 = vsel %vm4518, %v4378, %v4517
        %vm4520 = vcmp.eq.f32.partialorder %v4378, 0.0
        %v4521 = vand.u32 %v4378, 2147483648
        %v4522 = vsel %vm4520, %v4521, %v4519
        %v4523 = vrsqrt.pop %v4379
        %v4524 = vmul.f32 %v4379, %v4523
        %vm4525 = vcmp.eq.f32.partialorder %v4379, inf
        %v4526 = vsel %vm4525, %v4379, %v4524
        %vm4527 = vcmp.eq.f32.partialorder %v4379, 0.0
        %v4528 = vand.u32 %v4379, 2147483648
        %v4529 = vsel %vm4527, %v4528, %v4526
        %v4530 = vrsqrt.pop %v4380
        %v4531 = vmul.f32 %v4380, %v4530
        %vm4532 = vcmp.eq.f32.partialorder %v4380, inf
        %v4533 = vsel %vm4532, %v4380, %v4531
        %vm4534 = vcmp.eq.f32.partialorder %v4380, 0.0
        %v4535 = vand.u32 %v4380, 2147483648
        %v4536 = vsel %vm4534, %v4535, %v4533
        %v4537 = vrsqrt.pop %v4381
        %v4538 = vmul.f32 %v4381, %v4537
        %vm4539 = vcmp.eq.f32.partialorder %v4381, inf
        %v4540 = vsel %vm4539, %v4381, %v4538
        %vm4541 = vcmp.eq.f32.partialorder %v4381, 0.0
        %v4542 = vand.u32 %v4381, 2147483648
        %v4543 = vsel %vm4541, %v4542, %v4540
        %v4544 = vrsqrt.pop %v4382
        %v4545 = vmul.f32 %v4382, %v4544
        %vm4546 = vcmp.eq.f32.partialorder %v4382, inf
        %v4547 = vsel %vm4546, %v4382, %v4545
        %vm4548 = vcmp.eq.f32.partialorder %v4382, 0.0
        %v4549 = vand.u32 %v4382, 2147483648
        %v4550 = vsel %vm4548, %v4549, %v4547
        %v4551 = vrsqrt.pop %v4383
        %v4552 = vmul.f32 %v4383, %v4551
        %vm4553 = vcmp.eq.f32.partialorder %v4383, inf
        %v4554 = vsel %vm4553, %v4383, %v4552
        %vm4555 = vcmp.eq.f32.partialorder %v4383, 0.0
        %v4556 = vand.u32 %v4383, 2147483648
        %v4557 = vsel %vm4555, %v4556, %v4554
        %v4558 = vrsqrt.pop %v4384
        %v4559 = vmul.f32 %v4384, %v4558
        %vm4560 = vcmp.eq.f32.partialorder %v4384, inf
        %v4561 = vsel %vm4560, %v4384, %v4559
        %vm4562 = vcmp.eq.f32.partialorder %v4384, 0.0
        %v4563 = vand.u32 %v4384, 2147483648
        %v4564 = vsel %vm4562, %v4563, %v4561
        %v4565 = vrsqrt.pop %v4385
        %v4566 = vmul.f32 %v4385, %v4565
        %vm4567 = vcmp.eq.f32.partialorder %v4385, inf
        %v4568 = vsel %vm4567, %v4385, %v4566
        %vm4569 = vcmp.eq.f32.partialorder %v4385, 0.0
        %v4570 = vand.u32 %v4385, 2147483648
        %v4571 = vsel %vm4569, %v4570, %v4568
        %v4572 = vrsqrt.pop %v4386
        %v4573 = vmul.f32 %v4386, %v4572
        %vm4574 = vcmp.eq.f32.partialorder %v4386, inf
        %v4575 = vsel %vm4574, %v4386, %v4573
        %vm4576 = vcmp.eq.f32.partialorder %v4386, 0.0
        %v4577 = vand.u32 %v4386, 2147483648
        %v4578 = vsel %vm4576, %v4577, %v4575
        %v4579 = vrsqrt.pop %v4387
        %v4580 = vmul.f32 %v4387, %v4579
        %vm4581 = vcmp.eq.f32.partialorder %v4387, inf
        %v4582 = vsel %vm4581, %v4387, %v4580
        %vm4583 = vcmp.eq.f32.partialorder %v4387, 0.0
        %v4584 = vand.u32 %v4387, 2147483648
        %v4585 = vsel %vm4583, %v4584, %v4582
        %v4586 = vrsqrt.pop %v4388
        %v4587 = vmul.f32 %v4388, %v4586
        %vm4588 = vcmp.eq.f32.partialorder %v4388, inf
        %v4589 = vsel %vm4588, %v4388, %v4587
        %vm4590 = vcmp.eq.f32.partialorder %v4388, 0.0
        %v4591 = vand.u32 %v4388, 2147483648
        %v4592 = vsel %vm4590, %v4591, %v4589
        %v4593 = vrsqrt.pop %v4389
        %v4594 = vmul.f32 %v4389, %v4593
        %vm4595 = vcmp.eq.f32.partialorder %v4389, inf
        %v4596 = vsel %vm4595, %v4389, %v4594
        %vm4597 = vcmp.eq.f32.partialorder %v4389, 0.0
        %v4598 = vand.u32 %v4389, 2147483648
        %v4599 = vsel %vm4597, %v4598, %v4596
        %v4600 = vrsqrt.pop %v4390
        %v4601 = vmul.f32 %v4390, %v4600
        %vm4602 = vcmp.eq.f32.partialorder %v4390, inf
        %v4603 = vsel %vm4602, %v4390, %v4601
        %vm4604 = vcmp.eq.f32.partialorder %v4390, 0.0
        %v4605 = vand.u32 %v4390, 2147483648
        %v4606 = vsel %vm4604, %v4605, %v4603
        %v4607 = vrsqrt.pop %v4391
        %v4608 = vmul.f32 %v4391, %v4607
        %vm4609 = vcmp.eq.f32.partialorder %v4391, inf
        %v4610 = vsel %vm4609, %v4391, %v4608
        %vm4611 = vcmp.eq.f32.partialorder %v4391, 0.0
        %v4612 = vand.u32 %v4391, 2147483648
        %v4613 = vsel %vm4611, %v4612, %v4610
        %v4614 = vrsqrt.pop %v4392
        %v4615 = vmul.f32 %v4392, %v4614
        %vm4616 = vcmp.eq.f32.partialorder %v4392, inf
        %v4617 = vsel %vm4616, %v4392, %v4615
        %vm4618 = vcmp.eq.f32.partialorder %v4392, 0.0
        %v4619 = vand.u32 %v4392, 2147483648
        %v4620 = vsel %vm4618, %v4619, %v4617
        %v4621 = vrsqrt.pop %v4393
        %v4622 = vmul.f32 %v4393, %v4621
        %vm4623 = vcmp.eq.f32.partialorder %v4393, inf
        %v4624 = vsel %vm4623, %v4393, %v4622
        %vm4625 = vcmp.eq.f32.partialorder %v4393, 0.0
        %v4626 = vand.u32 %v4393, 2147483648
        %v4627 = vsel %vm4625, %v4626, %v4624
        %v4628 = vrsqrt.pop %v4394
        %v4629 = vmul.f32 %v4394, %v4628
        %vm4630 = vcmp.eq.f32.partialorder %v4394, inf
        %v4631 = vsel %vm4630, %v4394, %v4629
        %vm4632 = vcmp.eq.f32.partialorder %v4394, 0.0
        %v4633 = vand.u32 %v4394, 2147483648
        %v4634 = vsel %vm4632, %v4633, %v4631
        %v4635 = vrsqrt.pop %v4395
        %v4636 = vmul.f32 %v4395, %v4635
        %vm4637 = vcmp.eq.f32.partialorder %v4395, inf
        %v4638 = vsel %vm4637, %v4395, %v4636
        %vm4639 = vcmp.eq.f32.partialorder %v4395, 0.0
        %v4640 = vand.u32 %v4395, 2147483648
        %v4641 = vsel %vm4639, %v4640, %v4638
        %v4642 = vrsqrt.pop %v4396
        %v4643 = vmul.f32 %v4396, %v4642
        %vm4644 = vcmp.eq.f32.partialorder %v4396, inf
        %v4645 = vsel %vm4644, %v4396, %v4643
        %vm4646 = vcmp.eq.f32.partialorder %v4396, 0.0
        %v4647 = vand.u32 %v4396, 2147483648
        %v4648 = vsel %vm4646, %v4647, %v4645
        %v4649 = vrsqrt.pop %v4397
        %v4650 = vmul.f32 %v4397, %v4649
        %vm4651 = vcmp.eq.f32.partialorder %v4397, inf
        %v4652 = vsel %vm4651, %v4397, %v4650
        %vm4653 = vcmp.eq.f32.partialorder %v4397, 0.0
        %v4654 = vand.u32 %v4397, 2147483648
        %v4655 = vsel %vm4653, %v4654, %v4652
        %v4656 = vrsqrt.pop %v4398
        %v4657 = vmul.f32 %v4398, %v4656
        %vm4658 = vcmp.eq.f32.partialorder %v4398, inf
        %v4659 = vsel %vm4658, %v4398, %v4657
        %vm4660 = vcmp.eq.f32.partialorder %v4398, 0.0
        %v4661 = vand.u32 %v4398, 2147483648
        %v4662 = vsel %vm4660, %v4661, %v4659
        %v4663 = vrsqrt.pop %v4399
        %v4664 = vmul.f32 %v4399, %v4663
        %vm4665 = vcmp.eq.f32.partialorder %v4399, inf
        %v4666 = vsel %vm4665, %v4399, %v4664
        %vm4667 = vcmp.eq.f32.partialorder %v4399, 0.0
        %v4668 = vand.u32 %v4399, 2147483648
        %v4669 = vsel %vm4667, %v4668, %v4666
        %v4670 = vrsqrt.pop %v4400
        %v4671 = vmul.f32 %v4400, %v4670
        %vm4672 = vcmp.eq.f32.partialorder %v4400, inf
        %v4673 = vsel %vm4672, %v4400, %v4671
        %vm4674 = vcmp.eq.f32.partialorder %v4400, 0.0
        %v4675 = vand.u32 %v4400, 2147483648
        %v4676 = vsel %vm4674, %v4675, %v4673
        %v4677 = vrsqrt.pop %v4401
        %v4678 = vmul.f32 %v4401, %v4677
        %vm4679 = vcmp.eq.f32.partialorder %v4401, inf
        %v4680 = vsel %vm4679, %v4401, %v4678
        %vm4681 = vcmp.eq.f32.partialorder %v4401, 0.0
        %v4682 = vand.u32 %v4401, 2147483648
        %v4683 = vsel %vm4681, %v4682, %v4680
        %v4684 = vrsqrt.pop %v4402
        %v4685 = vmul.f32 %v4402, %v4684
        %vm4686 = vcmp.eq.f32.partialorder %v4402, inf
        %v4687 = vsel %vm4686, %v4402, %v4685
        %vm4688 = vcmp.eq.f32.partialorder %v4402, 0.0
        %v4689 = vand.u32 %v4402, 2147483648
        %v4690 = vsel %vm4688, %v4689, %v4687
        %v4691 = vrsqrt.pop %v4403
        %v4692 = vmul.f32 %v4403, %v4691
        %vm4693 = vcmp.eq.f32.partialorder %v4403, inf
        %v4694 = vsel %vm4693, %v4403, %v4692
        %vm4695 = vcmp.eq.f32.partialorder %v4403, 0.0
        %v4696 = vand.u32 %v4403, 2147483648
        %v4697 = vsel %vm4695, %v4696, %v4694
        %v4698 = vrsqrt.pop %v4404
        %v4699 = vmul.f32 %v4404, %v4698
        %vm4700 = vcmp.eq.f32.partialorder %v4404, inf
        %v4701 = vsel %vm4700, %v4404, %v4699
        %vm4702 = vcmp.eq.f32.partialorder %v4404, 0.0
        %v4703 = vand.u32 %v4404, 2147483648
        %v4704 = vsel %vm4702, %v4703, %v4701
        %v4705 = vrsqrt.pop %v4405
        %v4706 = vmul.f32 %v4405, %v4705
        %vm4707 = vcmp.eq.f32.partialorder %v4405, inf
        %v4708 = vsel %vm4707, %v4405, %v4706
        %vm4709 = vcmp.eq.f32.partialorder %v4405, 0.0
        %v4710 = vand.u32 %v4405, 2147483648
        %v4711 = vsel %vm4709, %v4710, %v4708
        %v4712 = vrsqrt.pop %v4406
        %v4713 = vmul.f32 %v4406, %v4712
        %vm4714 = vcmp.eq.f32.partialorder %v4406, inf
        %v4715 = vsel %vm4714, %v4406, %v4713
        %vm4716 = vcmp.eq.f32.partialorder %v4406, 0.0
        %v4717 = vand.u32 %v4406, 2147483648
        %v4718 = vsel %vm4716, %v4717, %v4715
        %v4719 = vrsqrt.pop %v4407
        %v4720 = vmul.f32 %v4407, %v4719
        %vm4721 = vcmp.eq.f32.partialorder %v4407, inf
        %v4722 = vsel %vm4721, %v4407, %v4720
        %vm4723 = vcmp.eq.f32.partialorder %v4407, 0.0
        %v4724 = vand.u32 %v4407, 2147483648
        %v4725 = vsel %vm4723, %v4724, %v4722
        %v4726 = vrsqrt.pop %v4408
        %v4727 = vmul.f32 %v4408, %v4726
        %vm4728 = vcmp.eq.f32.partialorder %v4408, inf
        %v4729 = vsel %vm4728, %v4408, %v4727
        %vm4730 = vcmp.eq.f32.partialorder %v4408, 0.0
        %v4731 = vand.u32 %v4408, 2147483648
        %v4732 = vsel %vm4730, %v4731, %v4729
        %v4733 = vrsqrt.pop %v4409
        %v4734 = vmul.f32 %v4409, %v4733
        %vm4735 = vcmp.eq.f32.partialorder %v4409, inf
        %v4736 = vsel %vm4735, %v4409, %v4734
        %vm4737 = vcmp.eq.f32.partialorder %v4409, 0.0
        %v4738 = vand.u32 %v4409, 2147483648
        %v4739 = vsel %vm4737, %v4738, %v4736
        %v4740 = vrsqrt.pop %v4410
        %v4741 = vmul.f32 %v4410, %v4740
        %vm4742 = vcmp.eq.f32.partialorder %v4410, inf
        %v4743 = vsel %vm4742, %v4410, %v4741
        %vm4744 = vcmp.eq.f32.partialorder %v4410, 0.0
        %v4745 = vand.u32 %v4410, 2147483648
        %v4746 = vsel %vm4744, %v4745, %v4743
        %v4747 = vrsqrt.pop %v4411
        %v4748 = vmul.f32 %v4411, %v4747
        %vm4749 = vcmp.eq.f32.partialorder %v4411, inf
        %v4750 = vsel %vm4749, %v4411, %v4748
        %vm4751 = vcmp.eq.f32.partialorder %v4411, 0.0
        %v4752 = vand.u32 %v4411, 2147483648
        %v4753 = vsel %vm4751, %v4752, %v4750
        %v4754 = vrsqrt.pop %v4412
        %v4755 = vmul.f32 %v4412, %v4754
        %vm4756 = vcmp.eq.f32.partialorder %v4412, inf
        %v4757 = vsel %vm4756, %v4412, %v4755
        %vm4758 = vcmp.eq.f32.partialorder %v4412, 0.0
        %v4759 = vand.u32 %v4412, 2147483648
        %v4760 = vsel %vm4758, %v4759, %v4757
        %v4761 = vrsqrt.pop %v4413
        %v4762 = vmul.f32 %v4413, %v4761
        %vm4763 = vcmp.eq.f32.partialorder %v4413, inf
        %v4764 = vsel %vm4763, %v4413, %v4762
        %vm4765 = vcmp.eq.f32.partialorder %v4413, 0.0
        %v4766 = vand.u32 %v4413, 2147483648
        %v4767 = vsel %vm4765, %v4766, %v4764
        %v4768 = vrsqrt.pop %v4414
        %v4769 = vmul.f32 %v4414, %v4768
        %vm4770 = vcmp.eq.f32.partialorder %v4414, inf
        %v4771 = vsel %vm4770, %v4414, %v4769
        %vm4772 = vcmp.eq.f32.partialorder %v4414, 0.0
        %v4773 = vand.u32 %v4414, 2147483648
        %v4774 = vsel %vm4772, %v4773, %v4771
        %v4775 = vrsqrt.pop %v4415
        %v4776 = vmul.f32 %v4415, %v4775
        %vm4777 = vcmp.eq.f32.partialorder %v4415, inf
        %v4778 = vsel %vm4777, %v4415, %v4776
        %vm4779 = vcmp.eq.f32.partialorder %v4415, 0.0
        %v4780 = vand.u32 %v4415, 2147483648
        %v4781 = vsel %vm4779, %v4780, %v4778
        %v4782 = vrsqrt.pop %v4416
        %v4783 = vmul.f32 %v4416, %v4782
        %vm4784 = vcmp.eq.f32.partialorder %v4416, inf
        %v4785 = vsel %vm4784, %v4416, %v4783
        %vm4786 = vcmp.eq.f32.partialorder %v4416, 0.0
        %v4787 = vand.u32 %v4416, 2147483648
        %v4788 = vsel %vm4786, %v4787, %v4785
        %v4789 = vrsqrt.pop %v4417
        %v4790 = vmul.f32 %v4417, %v4789
        %vm4791 = vcmp.eq.f32.partialorder %v4417, inf
        %v4792 = vsel %vm4791, %v4417, %v4790
        %vm4793 = vcmp.eq.f32.partialorder %v4417, 0.0
        %v4794 = vand.u32 %v4417, 2147483648
        %v4795 = vsel %vm4793, %v4794, %v4792
        %v4796 = vrsqrt.pop %v4418
        %v4797 = vmul.f32 %v4418, %v4796
        %vm4798 = vcmp.eq.f32.partialorder %v4418, inf
        %v4799 = vsel %vm4798, %v4418, %v4797
        %vm4800 = vcmp.eq.f32.partialorder %v4418, 0.0
        %v4801 = vand.u32 %v4418, 2147483648
        %v4802 = vsel %vm4800, %v4801, %v4799
        %v4803 = vrsqrt.pop %v4419
        %v4804 = vmul.f32 %v4419, %v4803
        %vm4805 = vcmp.eq.f32.partialorder %v4419, inf
        %v4806 = vsel %vm4805, %v4419, %v4804
        %vm4807 = vcmp.eq.f32.partialorder %v4419, 0.0
        %v4808 = vand.u32 %v4419, 2147483648
        %v4809 = vsel %vm4807, %v4808, %v4806
        %v4810 = vrsqrt.pop %v4420
        %v4811 = vmul.f32 %v4420, %v4810
        %vm4812 = vcmp.eq.f32.partialorder %v4420, inf
        %v4813 = vsel %vm4812, %v4420, %v4811
        %vm4814 = vcmp.eq.f32.partialorder %v4420, 0.0
        %v4815 = vand.u32 %v4420, 2147483648
        %v4816 = vsel %vm4814, %v4815, %v4813
        %v4817 = vrsqrt.pop %v4421
        %v4818 = vmul.f32 %v4421, %v4817
        %vm4819 = vcmp.eq.f32.partialorder %v4421, inf
        %v4820 = vsel %vm4819, %v4421, %v4818
        %vm4821 = vcmp.eq.f32.partialorder %v4421, 0.0
        %v4822 = vand.u32 %v4421, 2147483648
        %v4823 = vsel %vm4821, %v4822, %v4820
        %v4824 = vrsqrt.pop %v4422
        %v4825 = vmul.f32 %v4422, %v4824
        %vm4826 = vcmp.eq.f32.partialorder %v4422, inf
        %v4827 = vsel %vm4826, %v4422, %v4825
        %vm4828 = vcmp.eq.f32.partialorder %v4422, 0.0
        %v4829 = vand.u32 %v4422, 2147483648
        %v4830 = vsel %vm4828, %v4829, %v4827
        %v4831 = vrsqrt.pop %v4423
        %v4832 = vmul.f32 %v4423, %v4831
        %vm4833 = vcmp.eq.f32.partialorder %v4423, inf
        %v4834 = vsel %vm4833, %v4423, %v4832
        %vm4835 = vcmp.eq.f32.partialorder %v4423, 0.0
        %v4836 = vand.u32 %v4423, 2147483648
        %v4837 = vsel %vm4835, %v4836, %v4834
        %v4838 = vrsqrt.pop %v4424
        %v4839 = vmul.f32 %v4424, %v4838
        %vm4840 = vcmp.eq.f32.partialorder %v4424, inf
        %v4841 = vsel %vm4840, %v4424, %v4839
        %vm4842 = vcmp.eq.f32.partialorder %v4424, 0.0
        %v4843 = vand.u32 %v4424, 2147483648
        %v4844 = vsel %vm4842, %v4843, %v4841
        %v4845 = vrsqrt.pop %v4425
        %v4846 = vmul.f32 %v4425, %v4845
        %vm4847 = vcmp.eq.f32.partialorder %v4425, inf
        %v4848 = vsel %vm4847, %v4425, %v4846
        %vm4849 = vcmp.eq.f32.partialorder %v4425, 0.0
        %v4850 = vand.u32 %v4425, 2147483648
        %v4851 = vsel %vm4849, %v4850, %v4848
        %v4852 = vrsqrt.pop %v4426
        %v4853 = vmul.f32 %v4426, %v4852
        %vm4854 = vcmp.eq.f32.partialorder %v4426, inf
        %v4855 = vsel %vm4854, %v4426, %v4853
        %vm4856 = vcmp.eq.f32.partialorder %v4426, 0.0
        %v4857 = vand.u32 %v4426, 2147483648
        %v4858 = vsel %vm4856, %v4857, %v4855
        %v4859 = vrsqrt.pop %v4427
        %v4860 = vmul.f32 %v4427, %v4859
        %vm4861 = vcmp.eq.f32.partialorder %v4427, inf
        %v4862 = vsel %vm4861, %v4427, %v4860
        %vm4863 = vcmp.eq.f32.partialorder %v4427, 0.0
        %v4864 = vand.u32 %v4427, 2147483648
        %v4865 = vsel %vm4863, %v4864, %v4862
        %v4866 = vrsqrt.pop %v4428
        %v4867 = vmul.f32 %v4428, %v4866
        %vm4868 = vcmp.eq.f32.partialorder %v4428, inf
        %v4869 = vsel %vm4868, %v4428, %v4867
        %vm4870 = vcmp.eq.f32.partialorder %v4428, 0.0
        %v4871 = vand.u32 %v4428, 2147483648
        %v4872 = vsel %vm4870, %v4871, %v4869
        %v4873 = vrsqrt.pop %v4429
        %v4874 = vmul.f32 %v4429, %v4873
        %vm4875 = vcmp.eq.f32.partialorder %v4429, inf
        %v4876 = vsel %vm4875, %v4429, %v4874
        %vm4877 = vcmp.eq.f32.partialorder %v4429, 0.0
        %v4878 = vand.u32 %v4429, 2147483648
        %v4879 = vsel %vm4877, %v4878, %v4876
        %v4880 = vrsqrt.pop %v4430
        %v4881 = vmul.f32 %v4430, %v4880
        %vm4882 = vcmp.eq.f32.partialorder %v4430, inf
        %v4883 = vsel %vm4882, %v4430, %v4881
        %vm4884 = vcmp.eq.f32.partialorder %v4430, 0.0
        %v4885 = vand.u32 %v4430, 2147483648
        %v4886 = vsel %vm4884, %v4885, %v4883
        %v4887 = vrsqrt.pop %v4431
        %v4888 = vmul.f32 %v4431, %v4887
        %vm4889 = vcmp.eq.f32.partialorder %v4431, inf
        %v4890 = vsel %vm4889, %v4431, %v4888
        %vm4891 = vcmp.eq.f32.partialorder %v4431, 0.0
        %v4892 = vand.u32 %v4431, 2147483648
        %v4893 = vsel %vm4891, %v4892, %v4890
        %4894 = vst [vmem:[%s229 + $0x10] sm:$0xff] %v4438
        %4895 = vst [vmem:[%s229 + $0x18] sm:$0xff] %v4445
        %4896 = vst [vmem:[%s229 + $0x30] sm:$0xff] %v4452
        %4897 = vst [vmem:[%s229 + $0x38] sm:$0xff] %v4459
        %4898 = vst [vmem:[%s229 + $0x50] sm:$0xff] %v4466
        %4899 = vst [vmem:[%s229 + $0x58] sm:$0xff] %v4473
        %4900 = vst [vmem:[%s229 + $0x70] sm:$0xff] %v4480
        %4901 = vst [vmem:[%s229 + $0x78] sm:$0xff] %v4487
        %4902 = vst [vmem:[%s229 + $0x90] sm:$0xff] %v4494
        %4903 = vst [vmem:[%s229 + $0x98] sm:$0xff] %v4501
        %4904 = vst [vmem:[%s229 + $0xb0] sm:$0xff] %v4508
        %4905 = vst [vmem:[%s229 + $0xb8] sm:$0xff] %v4515
        %4906 = vst [vmem:[%s229 + $0xd0] sm:$0xff] %v4522
        %4907 = vst [vmem:[%s229 + $0xd8] sm:$0xff] %v4529
        %4908 = vst [vmem:[%s229 + $0xf0] sm:$0xff] %v4536
        %4909 = vst [vmem:[%s229 + $0xf8] sm:$0xff] %v4543
        %4910 = vst [vmem:[%s229 + $0x110] sm:$0xff] %v4550
        %4911 = vst [vmem:[%s229 + $0x118] sm:$0xff] %v4557
        %4912 = vst [vmem:[%s229 + $0x130] sm:$0xff] %v4564
        %4913 = vst [vmem:[%s229 + $0x138] sm:$0xff] %v4571
        %4914 = vst [vmem:[%s229 + $0x150] sm:$0xff] %v4578
        %4915 = vst [vmem:[%s229 + $0x158] sm:$0xff] %v4585
        %4916 = vst [vmem:[%s229 + $0x170] sm:$0xff] %v4592
        %4917 = vst [vmem:[%s229 + $0x178] sm:$0xff] %v4599
        %4918 = vst [vmem:[%s229 + $0x190] sm:$0xff] %v4606
        %4919 = vst [vmem:[%s229 + $0x198] sm:$0xff] %v4613
        %4920 = vst [vmem:[%s229 + $0x1b0] sm:$0xff] %v4620
        %4921 = vst [vmem:[%s229 + $0x1b8] sm:$0xff] %v4627
        %4922 = vst [vmem:[%s229 + $0x1d0] sm:$0xff] %v4634
        %4923 = vst [vmem:[%s229 + $0x1d8] sm:$0xff] %v4641
        %4924 = vst [vmem:[%s229 + $0x1f0] sm:$0xff] %v4648
        %4925 = vst [vmem:[%s229 + $0x1f8] sm:$0xff] %v4655
        %4926 = vst [vmem:[%s229 + $0x210] sm:$0xff] %v4662
        %4927 = vst [vmem:[%s229 + $0x218] sm:$0xff] %v4669
        %4928 = vst [vmem:[%s229 + $0x230] sm:$0xff] %v4676
        %4929 = vst [vmem:[%s229 + $0x238] sm:$0xff] %v4683
        %4930 = vst [vmem:[%s229 + $0x250] sm:$0xff] %v4690
        %4931 = vst [vmem:[%s229 + $0x258] sm:$0xff] %v4697
        %4932 = vst [vmem:[%s229 + $0x270] sm:$0xff] %v4704
        %4933 = vst [vmem:[%s229 + $0x278] sm:$0xff] %v4711
        %4934 = vst [vmem:[%s229 + $0x290] sm:$0xff] %v4718
        %4935 = vst [vmem:[%s229 + $0x298] sm:$0xff] %v4725
        %4936 = vst [vmem:[%s229 + $0x2b0] sm:$0xff] %v4732
        %4937 = vst [vmem:[%s229 + $0x2b8] sm:$0xff] %v4739
        %4938 = vst [vmem:[%s229 + $0x2d0] sm:$0xff] %v4746
        %4939 = vst [vmem:[%s229 + $0x2d8] sm:$0xff] %v4753
        %4940 = vst [vmem:[%s229 + $0x2f0] sm:$0xff] %v4760
        %4941 = vst [vmem:[%s229 + $0x2f8] sm:$0xff] %v4767
        %4942 = vst [vmem:[%s229 + $0x310] sm:$0xff] %v4774
        %4943 = vst [vmem:[%s229 + $0x318] sm:$0xff] %v4781
        %4944 = vst [vmem:[%s229 + $0x330] sm:$0xff] %v4788
        %4945 = vst [vmem:[%s229 + $0x338] sm:$0xff] %v4795
        %4946 = vst [vmem:[%s229 + $0x350] sm:$0xff] %v4802
        %4947 = vst [vmem:[%s229 + $0x358] sm:$0xff] %v4809
        %4948 = vst [vmem:[%s229 + $0x370] sm:$0xff] %v4816
        %4949 = vst [vmem:[%s229 + $0x378] sm:$0xff] %v4823
        %4950 = vst [vmem:[%s229 + $0x390] sm:$0xff] %v4830
        %4951 = vst [vmem:[%s229 + $0x398] sm:$0xff] %v4837
        %4952 = vst [vmem:[%s229 + $0x3b0] sm:$0xff] %v4844
        %4953 = vst [vmem:[%s229 + $0x3b8] sm:$0xff] %v4851
        %4954 = vst [vmem:[%s229 + $0x3d0] sm:$0xff] %v4858
        %4955 = vst [vmem:[%s229 + $0x3d8] sm:$0xff] %v4865
        %4956 = vst [vmem:[%s229 + $0x3f0] sm:$0xff] %v4872
        %4957 = vst [vmem:[%s229 + $0x3f8] sm:$0xff] %v4879
        %4958 = vst [vmem:[%s229 + $0x410] sm:$0x1] %v4886
        %4959 = vst [vmem:[%s229 + $0x418] sm:$0x1] %v4893
        %s4960 = sand.u32 %s117, 1
        %s4961 = sand.u32 %s117, 1
        %s4962 = smul.addr %s4961, 1056
        %s4963 = scalar_lea.vmem [#allocation2], %s4962
        // Predicated region
        $region33: #{a_call__.1} parent=31 // pred_check
          %p4964 = pneg %p127
        $region34: #{a_call__.1} parent=31 // pred_check_branch
          %4966 = sbr.rel (%p4964) target = $region36
        $region35: #{a_call__.1} parent=31 // pred_region
          %s4967 = smul.u32 4, %s19
          %s4968 = smul.addr %s18, 264
          %s4969 = sadd.s32 %s4967, %s4968
          %s4970 = smul.addr %s4969, 8
          %s4971 = scalar_lea.vmem %s3, %s4970
          // Predicated region
          $region37: #{a_call__.1} parent=35 // pred_check
            _
          $region38: #{a_call__.1} parent=35 // pred_check_branch
            %4973 = sbr.rel (0) target = $region40
          $region39: #{a_call__.1} parent=35 // pred_region
            // Predicated region
            $region41: #{a_call__.1} parent=39 // pred_check
              _
            $region42: #{a_call__.1} parent=39 // pred_check_branch
              %4975 = sbr.rel (0) target = $region44
            $region43: #{a_call__.1} parent=39 // pred_region
              loop: start=0, step=1, limit=1
              $region45: #{a_call__.1} parent=43 // loop_pre_header
                _
              $region46: #{a_call__.1} parent=43 // loop_header
                %s4977 = sphi 0, %s4981
                %p4978 = scmp.ge.s32.totalorder %s4977, 1
                %s4982 = sphi %s4963, %s4963
                %s4983 = sphi %s4971, %s4971
              $region47: #{a_call__.1} parent=43 // loop_header_branch
                %4980 = sbr.rel (%p4978) target = $region51
              $region48: #{a_call__.1} parent=43 // loop_body
                %v4984 = vld [vmem:[%s4982] sm:$0xff]
                %4985 = vst [vmem:[%s4983] sm:$0xff] %v4984
                %v4986 = vld [vmem:[%s4982 + $0x8] sm:$0xff]
                %4987 = vst [vmem:[%s4983 + $0x8] sm:$0xff] %v4986
                %v4988 = vld [vmem:[%s4982 + $0x10] sm:$0xff]
                %4989 = vst [vmem:[%s4983 + $0x10] sm:$0xff] %v4988
                %v4990 = vld [vmem:[%s4982 + $0x18] sm:$0xff]
                %4991 = vst [vmem:[%s4983 + $0x18] sm:$0xff] %v4990
                %v4992 = vld [vmem:[%s4982 + $0x20] sm:$0xff]
                %4993 = vst [vmem:[%s4983 + $0x40] sm:$0xff] %v4992
                %v4994 = vld [vmem:[%s4982 + $0x28] sm:$0xff]
                %4995 = vst [vmem:[%s4983 + $0x48] sm:$0xff] %v4994
                %v4996 = vld [vmem:[%s4982 + $0x30] sm:$0xff]
                %4997 = vst [vmem:[%s4983 + $0x50] sm:$0xff] %v4996
                %v4998 = vld [vmem:[%s4982 + $0x38] sm:$0xff]
                %4999 = vst [vmem:[%s4983 + $0x58] sm:$0xff] %v4998
                %v5000 = vld [vmem:[%s4982 + $0x40] sm:$0xff]
                %5001 = vst [vmem:[%s4983 + $0x80] sm:$0xff] %v5000
                %v5002 = vld [vmem:[%s4982 + $0x48] sm:$0xff]
                %5003 = vst [vmem:[%s4983 + $0x88] sm:$0xff] %v5002
                %v5004 = vld [vmem:[%s4982 + $0x50] sm:$0xff]
                %5005 = vst [vmem:[%s4983 + $0x90] sm:$0xff] %v5004
                %v5006 = vld [vmem:[%s4982 + $0x58] sm:$0xff]
                %5007 = vst [vmem:[%s4983 + $0x98] sm:$0xff] %v5006
                %v5008 = vld [vmem:[%s4982 + $0x60] sm:$0xff]
                %5009 = vst [vmem:[%s4983 + $0xc0] sm:$0xff] %v5008
                %v5010 = vld [vmem:[%s4982 + $0x68] sm:$0xff]
                %5011 = vst [vmem:[%s4983 + $0xc8] sm:$0xff] %v5010
                %v5012 = vld [vmem:[%s4982 + $0x70] sm:$0xff]
                %5013 = vst [vmem:[%s4983 + $0xd0] sm:$0xff] %v5012
                %v5014 = vld [vmem:[%s4982 + $0x78] sm:$0xff]
                %5015 = vst [vmem:[%s4983 + $0xd8] sm:$0xff] %v5014
                %v5016 = vld [vmem:[%s4982 + $0x80] sm:$0xff]
                %5017 = vst [vmem:[%s4983 + $0x100] sm:$0xff] %v5016
                %v5018 = vld [vmem:[%s4982 + $0x88] sm:$0xff]
                %5019 = vst [vmem:[%s4983 + $0x108] sm:$0xff] %v5018
                %v5020 = vld [vmem:[%s4982 + $0x90] sm:$0xff]
                %5021 = vst [vmem:[%s4983 + $0x110] sm:$0xff] %v5020
                %v5022 = vld [vmem:[%s4982 + $0x98] sm:$0xff]
                %5023 = vst [vmem:[%s4983 + $0x118] sm:$0xff] %v5022
                %v5024 = vld [vmem:[%s4982 + $0xa0] sm:$0xff]
                %5025 = vst [vmem:[%s4983 + $0x140] sm:$0xff] %v5024
                %v5026 = vld [vmem:[%s4982 + $0xa8] sm:$0xff]
                %5027 = vst [vmem:[%s4983 + $0x148] sm:$0xff] %v5026
                %v5028 = vld [vmem:[%s4982 + $0xb0] sm:$0xff]
                %5029 = vst [vmem:[%s4983 + $0x150] sm:$0xff] %v5028
                %v5030 = vld [vmem:[%s4982 + $0xb8] sm:$0xff]
                %5031 = vst [vmem:[%s4983 + $0x158] sm:$0xff] %v5030
                %v5032 = vld [vmem:[%s4982 + $0xc0] sm:$0xff]
                %5033 = vst [vmem:[%s4983 + $0x180] sm:$0xff] %v5032
                %v5034 = vld [vmem:[%s4982 + $0xc8] sm:$0xff]
                %5035 = vst [vmem:[%s4983 + $0x188] sm:$0xff] %v5034
                %v5036 = vld [vmem:[%s4982 + $0xd0] sm:$0xff]
                %5037 = vst [vmem:[%s4983 + $0x190] sm:$0xff] %v5036
                %v5038 = vld [vmem:[%s4982 + $0xd8] sm:$0xff]
                %5039 = vst [vmem:[%s4983 + $0x198] sm:$0xff] %v5038
                %v5040 = vld [vmem:[%s4982 + $0xe0] sm:$0xff]
                %5041 = vst [vmem:[%s4983 + $0x1c0] sm:$0xff] %v5040
                %v5042 = vld [vmem:[%s4982 + $0xe8] sm:$0xff]
                %5043 = vst [vmem:[%s4983 + $0x1c8] sm:$0xff] %v5042
                %v5044 = vld [vmem:[%s4982 + $0xf0] sm:$0xff]
                %5045 = vst [vmem:[%s4983 + $0x1d0] sm:$0xff] %v5044
                %v5046 = vld [vmem:[%s4982 + $0xf8] sm:$0xff]
                %5047 = vst [vmem:[%s4983 + $0x1d8] sm:$0xff] %v5046
                %v5048 = vld [vmem:[%s4982 + $0x100] sm:$0xff]
                %5049 = vst [vmem:[%s4983 + $0x200] sm:$0xff] %v5048
                %v5050 = vld [vmem:[%s4982 + $0x108] sm:$0xff]
                %5051 = vst [vmem:[%s4983 + $0x208] sm:$0xff] %v5050
                %v5052 = vld [vmem:[%s4982 + $0x110] sm:$0xff]
                %5053 = vst [vmem:[%s4983 + $0x210] sm:$0xff] %v5052
                %v5054 = vld [vmem:[%s4982 + $0x118] sm:$0xff]
                %5055 = vst [vmem:[%s4983 + $0x218] sm:$0xff] %v5054
                %v5056 = vld [vmem:[%s4982 + $0x120] sm:$0xff]
                %5057 = vst [vmem:[%s4983 + $0x240] sm:$0xff] %v5056
                %v5058 = vld [vmem:[%s4982 + $0x128] sm:$0xff]
                %5059 = vst [vmem:[%s4983 + $0x248] sm:$0xff] %v5058
                %v5060 = vld [vmem:[%s4982 + $0x130] sm:$0xff]
                %5061 = vst [vmem:[%s4983 + $0x250] sm:$0xff] %v5060
                %v5062 = vld [vmem:[%s4982 + $0x138] sm:$0xff]
                %5063 = vst [vmem:[%s4983 + $0x258] sm:$0xff] %v5062
                %v5064 = vld [vmem:[%s4982 + $0x140] sm:$0xff]
                %5065 = vst [vmem:[%s4983 + $0x280] sm:$0xff] %v5064
                %v5066 = vld [vmem:[%s4982 + $0x148] sm:$0xff]
                %5067 = vst [vmem:[%s4983 + $0x288] sm:$0xff] %v5066
                %v5068 = vld [vmem:[%s4982 + $0x150] sm:$0xff]
                %5069 = vst [vmem:[%s4983 + $0x290] sm:$0xff] %v5068
                %v5070 = vld [vmem:[%s4982 + $0x158] sm:$0xff]
                %5071 = vst [vmem:[%s4983 + $0x298] sm:$0xff] %v5070
                %v5072 = vld [vmem:[%s4982 + $0x160] sm:$0xff]
                %5073 = vst [vmem:[%s4983 + $0x2c0] sm:$0xff] %v5072
                %v5074 = vld [vmem:[%s4982 + $0x168] sm:$0xff]
                %5075 = vst [vmem:[%s4983 + $0x2c8] sm:$0xff] %v5074
                %v5076 = vld [vmem:[%s4982 + $0x170] sm:$0xff]
                %5077 = vst [vmem:[%s4983 + $0x2d0] sm:$0xff] %v5076
                %v5078 = vld [vmem:[%s4982 + $0x178] sm:$0xff]
                %5079 = vst [vmem:[%s4983 + $0x2d8] sm:$0xff] %v5078
                %v5080 = vld [vmem:[%s4982 + $0x180] sm:$0xff]
                %5081 = vst [vmem:[%s4983 + $0x300] sm:$0xff] %v5080
                %v5082 = vld [vmem:[%s4982 + $0x188] sm:$0xff]
                %5083 = vst [vmem:[%s4983 + $0x308] sm:$0xff] %v5082
                %v5084 = vld [vmem:[%s4982 + $0x190] sm:$0xff]
                %5085 = vst [vmem:[%s4983 + $0x310] sm:$0xff] %v5084
                %v5086 = vld [vmem:[%s4982 + $0x198] sm:$0xff]
                %5087 = vst [vmem:[%s4983 + $0x318] sm:$0xff] %v5086
                %v5088 = vld [vmem:[%s4982 + $0x1a0] sm:$0xff]
                %5089 = vst [vmem:[%s4983 + $0x340] sm:$0xff] %v5088
                %v5090 = vld [vmem:[%s4982 + $0x1a8] sm:$0xff]
                %5091 = vst [vmem:[%s4983 + $0x348] sm:$0xff] %v5090
                %v5092 = vld [vmem:[%s4982 + $0x1b0] sm:$0xff]
                %5093 = vst [vmem:[%s4983 + $0x350] sm:$0xff] %v5092
                %v5094 = vld [vmem:[%s4982 + $0x1b8] sm:$0xff]
                %5095 = vst [vmem:[%s4983 + $0x358] sm:$0xff] %v5094
                %v5096 = vld [vmem:[%s4982 + $0x1c0] sm:$0xff]
                %5097 = vst [vmem:[%s4983 + $0x380] sm:$0xff] %v5096
                %v5098 = vld [vmem:[%s4982 + $0x1c8] sm:$0xff]
                %5099 = vst [vmem:[%s4983 + $0x388] sm:$0xff] %v5098
                %v5100 = vld [vmem:[%s4982 + $0x1d0] sm:$0xff]
                %5101 = vst [vmem:[%s4983 + $0x390] sm:$0xff] %v5100
                %v5102 = vld [vmem:[%s4982 + $0x1d8] sm:$0xff]
                %5103 = vst [vmem:[%s4983 + $0x398] sm:$0xff] %v5102
                %v5104 = vld [vmem:[%s4982 + $0x1e0] sm:$0xff]
                %5105 = vst [vmem:[%s4983 + $0x3c0] sm:$0xff] %v5104
                %v5106 = vld [vmem:[%s4982 + $0x1e8] sm:$0xff]
                %5107 = vst [vmem:[%s4983 + $0x3c8] sm:$0xff] %v5106
                %v5108 = vld [vmem:[%s4982 + $0x1f0] sm:$0xff]
                %5109 = vst [vmem:[%s4983 + $0x3d0] sm:$0xff] %v5108
                %v5110 = vld [vmem:[%s4982 + $0x1f8] sm:$0xff]
                %5111 = vst [vmem:[%s4983 + $0x3d8] sm:$0xff] %v5110
                %v5112 = vld [vmem:[%s4982 + $0x200] sm:$0xff]
                %5113 = vst [vmem:[%s4983 + $0x400] sm:$0xff] %v5112
                %v5114 = vld [vmem:[%s4982 + $0x208] sm:$0xff]
                %5115 = vst [vmem:[%s4983 + $0x408] sm:$0xff] %v5114
                %v5116 = vld [vmem:[%s4982 + $0x210] sm:$0xff]
                %5117 = vst [vmem:[%s4983 + $0x410] sm:$0xff] %v5116
                %v5118 = vld [vmem:[%s4982 + $0x218] sm:$0xff]
                %5119 = vst [vmem:[%s4983 + $0x418] sm:$0xff] %v5118
                %v5120 = vld [vmem:[%s4982 + $0x220] sm:$0xff]
                %5121 = vst [vmem:[%s4983 + $0x440] sm:$0xff] %v5120
                %v5122 = vld [vmem:[%s4982 + $0x228] sm:$0xff]
                %5123 = vst [vmem:[%s4983 + $0x448] sm:$0xff] %v5122
                %v5124 = vld [vmem:[%s4982 + $0x230] sm:$0xff]
                %5125 = vst [vmem:[%s4983 + $0x450] sm:$0xff] %v5124
                %v5126 = vld [vmem:[%s4982 + $0x238] sm:$0xff]
                %5127 = vst [vmem:[%s4983 + $0x458] sm:$0xff] %v5126
                %v5128 = vld [vmem:[%s4982 + $0x240] sm:$0xff]
                %5129 = vst [vmem:[%s4983 + $0x480] sm:$0xff] %v5128
                %v5130 = vld [vmem:[%s4982 + $0x248] sm:$0xff]
                %5131 = vst [vmem:[%s4983 + $0x488] sm:$0xff] %v5130
                %v5132 = vld [vmem:[%s4982 + $0x250] sm:$0xff]
                %5133 = vst [vmem:[%s4983 + $0x490] sm:$0xff] %v5132
                %v5134 = vld [vmem:[%s4982 + $0x258] sm:$0xff]
                %5135 = vst [vmem:[%s4983 + $0x498] sm:$0xff] %v5134
                %v5136 = vld [vmem:[%s4982 + $0x260] sm:$0xff]
                %5137 = vst [vmem:[%s4983 + $0x4c0] sm:$0xff] %v5136
                %v5138 = vld [vmem:[%s4982 + $0x268] sm:$0xff]
                %5139 = vst [vmem:[%s4983 + $0x4c8] sm:$0xff] %v5138
                %v5140 = vld [vmem:[%s4982 + $0x270] sm:$0xff]
                %5141 = vst [vmem:[%s4983 + $0x4d0] sm:$0xff] %v5140
                %v5142 = vld [vmem:[%s4982 + $0x278] sm:$0xff]
                %5143 = vst [vmem:[%s4983 + $0x4d8] sm:$0xff] %v5142
                %v5144 = vld [vmem:[%s4982 + $0x280] sm:$0xff]
                %5145 = vst [vmem:[%s4983 + $0x500] sm:$0xff] %v5144
                %v5146 = vld [vmem:[%s4982 + $0x288] sm:$0xff]
                %5147 = vst [vmem:[%s4983 + $0x508] sm:$0xff] %v5146
                %v5148 = vld [vmem:[%s4982 + $0x290] sm:$0xff]
                %5149 = vst [vmem:[%s4983 + $0x510] sm:$0xff] %v5148
                %v5150 = vld [vmem:[%s4982 + $0x298] sm:$0xff]
                %5151 = vst [vmem:[%s4983 + $0x518] sm:$0xff] %v5150
                %v5152 = vld [vmem:[%s4982 + $0x2a0] sm:$0xff]
                %5153 = vst [vmem:[%s4983 + $0x540] sm:$0xff] %v5152
                %v5154 = vld [vmem:[%s4982 + $0x2a8] sm:$0xff]
                %5155 = vst [vmem:[%s4983 + $0x548] sm:$0xff] %v5154
                %v5156 = vld [vmem:[%s4982 + $0x2b0] sm:$0xff]
                %5157 = vst [vmem:[%s4983 + $0x550] sm:$0xff] %v5156
                %v5158 = vld [vmem:[%s4982 + $0x2b8] sm:$0xff]
                %5159 = vst [vmem:[%s4983 + $0x558] sm:$0xff] %v5158
                %v5160 = vld [vmem:[%s4982 + $0x2c0] sm:$0xff]
                %5161 = vst [vmem:[%s4983 + $0x580] sm:$0xff] %v5160
                %v5162 = vld [vmem:[%s4982 + $0x2c8] sm:$0xff]
                %5163 = vst [vmem:[%s4983 + $0x588] sm:$0xff] %v5162
                %v5164 = vld [vmem:[%s4982 + $0x2d0] sm:$0xff]
                %5165 = vst [vmem:[%s4983 + $0x590] sm:$0xff] %v5164
                %v5166 = vld [vmem:[%s4982 + $0x2d8] sm:$0xff]
                %5167 = vst [vmem:[%s4983 + $0x598] sm:$0xff] %v5166
                %v5168 = vld [vmem:[%s4982 + $0x2e0] sm:$0xff]
                %5169 = vst [vmem:[%s4983 + $0x5c0] sm:$0xff] %v5168
                %v5170 = vld [vmem:[%s4982 + $0x2e8] sm:$0xff]
                %5171 = vst [vmem:[%s4983 + $0x5c8] sm:$0xff] %v5170
                %v5172 = vld [vmem:[%s4982 + $0x2f0] sm:$0xff]
                %5173 = vst [vmem:[%s4983 + $0x5d0] sm:$0xff] %v5172
                %v5174 = vld [vmem:[%s4982 + $0x2f8] sm:$0xff]
                %5175 = vst [vmem:[%s4983 + $0x5d8] sm:$0xff] %v5174
                %v5176 = vld [vmem:[%s4982 + $0x300] sm:$0xff]
                %5177 = vst [vmem:[%s4983 + $0x600] sm:$0xff] %v5176
                %v5178 = vld [vmem:[%s4982 + $0x308] sm:$0xff]
                %5179 = vst [vmem:[%s4983 + $0x608] sm:$0xff] %v5178
                %v5180 = vld [vmem:[%s4982 + $0x310] sm:$0xff]
                %5181 = vst [vmem:[%s4983 + $0x610] sm:$0xff] %v5180
                %v5182 = vld [vmem:[%s4982 + $0x318] sm:$0xff]
                %5183 = vst [vmem:[%s4983 + $0x618] sm:$0xff] %v5182
                %v5184 = vld [vmem:[%s4982 + $0x320] sm:$0xff]
                %5185 = vst [vmem:[%s4983 + $0x640] sm:$0xff] %v5184
                %v5186 = vld [vmem:[%s4982 + $0x328] sm:$0xff]
                %5187 = vst [vmem:[%s4983 + $0x648] sm:$0xff] %v5186
                %v5188 = vld [vmem:[%s4982 + $0x330] sm:$0xff]
                %5189 = vst [vmem:[%s4983 + $0x650] sm:$0xff] %v5188
                %v5190 = vld [vmem:[%s4982 + $0x338] sm:$0xff]
                %5191 = vst [vmem:[%s4983 + $0x658] sm:$0xff] %v5190
                %v5192 = vld [vmem:[%s4982 + $0x340] sm:$0xff]
                %5193 = vst [vmem:[%s4983 + $0x680] sm:$0xff] %v5192
                %v5194 = vld [vmem:[%s4982 + $0x348] sm:$0xff]
                %5195 = vst [vmem:[%s4983 + $0x688] sm:$0xff] %v5194
                %v5196 = vld [vmem:[%s4982 + $0x350] sm:$0xff]
                %5197 = vst [vmem:[%s4983 + $0x690] sm:$0xff] %v5196
                %v5198 = vld [vmem:[%s4982 + $0x358] sm:$0xff]
                %5199 = vst [vmem:[%s4983 + $0x698] sm:$0xff] %v5198
                %v5200 = vld [vmem:[%s4982 + $0x360] sm:$0xff]
                %5201 = vst [vmem:[%s4983 + $0x6c0] sm:$0xff] %v5200
                %v5202 = vld [vmem:[%s4982 + $0x368] sm:$0xff]
                %5203 = vst [vmem:[%s4983 + $0x6c8] sm:$0xff] %v5202
                %v5204 = vld [vmem:[%s4982 + $0x370] sm:$0xff]
                %5205 = vst [vmem:[%s4983 + $0x6d0] sm:$0xff] %v5204
                %v5206 = vld [vmem:[%s4982 + $0x378] sm:$0xff]
                %5207 = vst [vmem:[%s4983 + $0x6d8] sm:$0xff] %v5206
                %v5208 = vld [vmem:[%s4982 + $0x380] sm:$0xff]
                %5209 = vst [vmem:[%s4983 + $0x700] sm:$0xff] %v5208
                %v5210 = vld [vmem:[%s4982 + $0x388] sm:$0xff]
                %5211 = vst [vmem:[%s4983 + $0x708] sm:$0xff] %v5210
                %v5212 = vld [vmem:[%s4982 + $0x390] sm:$0xff]
                %5213 = vst [vmem:[%s4983 + $0x710] sm:$0xff] %v5212
                %v5214 = vld [vmem:[%s4982 + $0x398] sm:$0xff]
                %5215 = vst [vmem:[%s4983 + $0x718] sm:$0xff] %v5214
                %v5216 = vld [vmem:[%s4982 + $0x3a0] sm:$0xff]
                %5217 = vst [vmem:[%s4983 + $0x740] sm:$0xff] %v5216
                %v5218 = vld [vmem:[%s4982 + $0x3a8] sm:$0xff]
                %5219 = vst [vmem:[%s4983 + $0x748] sm:$0xff] %v5218
                %v5220 = vld [vmem:[%s4982 + $0x3b0] sm:$0xff]
                %5221 = vst [vmem:[%s4983 + $0x750] sm:$0xff] %v5220
                %v5222 = vld [vmem:[%s4982 + $0x3b8] sm:$0xff]
                %5223 = vst [vmem:[%s4983 + $0x758] sm:$0xff] %v5222
                %v5224 = vld [vmem:[%s4982 + $0x3c0] sm:$0xff]
                %5225 = vst [vmem:[%s4983 + $0x780] sm:$0xff] %v5224
                %v5226 = vld [vmem:[%s4982 + $0x3c8] sm:$0xff]
                %5227 = vst [vmem:[%s4983 + $0x788] sm:$0xff] %v5226
                %v5228 = vld [vmem:[%s4982 + $0x3d0] sm:$0xff]
                %5229 = vst [vmem:[%s4983 + $0x790] sm:$0xff] %v5228
                %v5230 = vld [vmem:[%s4982 + $0x3d8] sm:$0xff]
                %5231 = vst [vmem:[%s4983 + $0x798] sm:$0xff] %v5230
                %v5232 = vld [vmem:[%s4982 + $0x3e0] sm:$0xff]
                %5233 = vst [vmem:[%s4983 + $0x7c0] sm:$0xff] %v5232
                %v5234 = vld [vmem:[%s4982 + $0x3e8] sm:$0xff]
                %5235 = vst [vmem:[%s4983 + $0x7c8] sm:$0xff] %v5234
                %v5236 = vld [vmem:[%s4982 + $0x3f0] sm:$0xff]
                %5237 = vst [vmem:[%s4983 + $0x7d0] sm:$0xff] %v5236
                %v5238 = vld [vmem:[%s4982 + $0x3f8] sm:$0xff]
                %5239 = vst [vmem:[%s4983 + $0x7d8] sm:$0xff] %v5238
                %v5240 = vld [vmem:[%s4982 + $0x400] sm:$0xff]
                %5241 = vst [vmem:[%s4983 + $0x800] sm:$0xff] %v5240
                %v5242 = vld [vmem:[%s4982 + $0x408] sm:$0xff]
                %5243 = vst [vmem:[%s4983 + $0x808] sm:$0xff] %v5242
                %v5244 = vld [vmem:[%s4982 + $0x410] sm:$0xff]
                %5245 = vst [vmem:[%s4983 + $0x810] sm:$0xff] %v5244
                %v5246 = vld [vmem:[%s4982 + $0x418] sm:$0xff]
                %5247 = vst [vmem:[%s4983 + $0x818] sm:$0xff] %v5246
              $region49: #{a_call__.1} parent=43 // loop_footer
                %s4981 = sadd.s32 1, %s4977
              $region50: #{a_call__.1} parent=43 // loop_footer_branch
                %4976 = sbr.rel target = $region46
              $region51: #{a_call__.1} parent=43 // loop_exit
                _
            $region44: #{a_call__.1} parent=39 // pred_fallthru
              _
            // Predicated region
            $region52: #{a_call__.1} parent=39 // pred_check
              _
            $region53: #{a_call__.1} parent=39 // pred_check_branch
              %5249 = sbr.rel target = $region55
            $region54: #{a_call__.1} parent=39 // pred_region
              _
            $region55: #{a_call__.1} parent=39 // pred_fallthru
              _
          $region40: #{a_call__.1} parent=35 // pred_fallthru
            _
          %5250 = vnop
        $region36: #{a_call__.1} parent=31 // pred_fallthru
          _
      $region32: #{a_call__.1} parent=5 // pred_fallthru
        _
      %p5251 = scmp.le.s32.totalorder 2, %s9
      // Predicated region
      $region56: #{a_call__.1} parent=5 // pred_check
        %p5252 = pneg %p5251
      $region57: #{a_call__.1} parent=5 // pred_check_branch
        %5254 = sbr.rel (%p5252) target = $region59
      $region58: #{a_call__.1} parent=5 // pred_region
        %s5255 = ssub.s32 %s9, 2
        // Predicated region
        $region60: #{a_call__.1} parent=58 // pred_check
          %p5256 = pneg %p133
        $region61: #{a_call__.1} parent=58 // pred_check_branch
          %5258 = sbr.rel (%p5256) target = $region63
        $region62: #{a_call__.1} parent=58 // pred_region
          %s5259 = sand.u32 %s118, 1
          %s5260 = sand.u32 %s118, 1
          %s5261 = smul.addr %s5260, 1056
          %s5262 = scalar_lea.vmem [#allocation2], %s5261
        $region63: #{a_call__.1} parent=58 // pred_fallthru
          _
      $region59: #{a_call__.1} parent=5 // pred_fallthru
        _
    $region6: #{a_call__.1} parent=1 // loop_footer
      %s13 = sadd.s32 1, %s9
    $region7: #{a_call__.1} parent=1 // loop_footer_branch
      %8 = sbr.rel target = $region3
    $region8: #{a_call__.1} parent=1 // loop_exit
      _

</llo_original>
